<compile_context>
chip_gen: v6e
topology: v6e:2x2x1
jax: 0.10.0
libtpu: 0.0.40
codegen_flags: <defaults>
</compile_context>

<pallas_src>
import functools

import jax
import jax.numpy as jnp
from jax.experimental import pallas as pl
from jax.experimental.pallas import tpu as pltpu


def _rup(x, m):
    return (x + m - 1) // m * m


# ----------------------------------------------------------------------------
# Fully fused forward kernel
# ----------------------------------------------------------------------------
def _network_kernel(x_ref, alpha_ref, wslab_ref, pslab_ref, out_ref, *,
                    n_batch: int, hw: int, in_ch: int, f: int, num_class: int,
                    max_stack: int, neg_slope: float = 0.01, eps: float = 1e-5):
    """Activations live as (C, N*HW) f32 tiles; every 1x1 conv is one (Cout,Cin)@(Cin,N*HW) matmul."""
    inv_hw = 1.0 / hw

    # ---- packed-slab row offsets (must mirror pack_params) ----
    r_pre = 0                                   # prenet_w   (f, in_ch)  in cols [0:in_ch]
    r_exta = f                                  # ext_wa     (f, f)
    r_ce = 2 * f                                # [cls_w ; ext_wb]  (num_class+f, f)
    r_dcl = r_ce + _rup(num_class + f, 8)       # dcl_w      (f, num_class) in cols [0:num_class]
    r_hg = r_dcl + f                            # hg_w[i]    (f, f) each
    b0 = 8                                      # bias-column region row offset in pslab

    def lrelu(y):
        return jnp.maximum(y, neg_slope * y)

    def mm(w, a):
        return jnp.dot(w, a, preferred_element_type=jnp.float32)

    def layernorm_hw(y, g, b):
        # One-pass LayerNorm over each per-sample HW lane-half (both halves are 128-multiples).
        parts = []
        for nb in range(n_batch):
            yn = y[:, nb * hw:(nb + 1) * hw]
            s1 = jnp.sum(yn, axis=-1, keepdims=True)
            s2 = jnp.sum(yn * yn, axis=-1, keepdims=True)
            mean = s1 * inv_hw
            var = s2 * inv_hw - mean * mean
            parts.append((yn - mean) * jax.lax.rsqrt(var + eps) * g + b)
        return parts[0] if n_batch == 1 else jnp.concatenate(parts, axis=-1)

    # Small load-at-use helpers (static ref slices; avoid long live ranges of tiny constants).
    def wmat(r0, rows, cols=None):
        return wslab_ref[r0:r0 + rows, :] if cols is None else wslab_ref[r0:r0 + rows, 0:cols]

    def bias(col, rows):
        return pslab_ref[b0:b0 + rows, col:col + 1]

    def lnp(row):
        return pslab_ref[row:row + 1, :]

    ln1_g, ln1_b = lnp(0), lnp(1)
    ln2_g, ln2_b = lnp(2), lnp(3)
    ln3_g, ln3_b = lnp(4), lnp(5)

    # ---- prenet, batch folded into the lane axis: hidden is (f, n_batch*hw) ----
    # TODO(synk): replace the 1x1-conv + LeakyReLU stand-in with the real prenet body.
    pre_w, pre_b = wmat(r_pre, f, in_ch), bias(0, f)
    hid_parts = [lrelu(mm(pre_w, x_ref[nb]) + pre_b) for nb in range(n_batch)]
    hidden = hid_parts[0] if n_batch == 1 else jnp.concatenate(hid_parts, axis=-1)
    copy_input = hidden

    # Hoisted loop-invariant extractor half: ext_wa @ copy_input + ext_b (copy_input never changes).
    ext_part = (mm(wmat(r_exta, f), copy_input) + bias(1, f)) if max_stack > 1 else None

    residual = None
    ext_hid = None
    for i in range(max_stack):                            # static unroll over stacks
        if i == 0:
            # hidden = hgs[0](hidden)   (stand-in hourglass: 1x1 conv + LeakyReLU)
            # TODO(synk): replace with the real hourglass (base network) body.
            hidden = lrelu(mm(wmat(r_hg, f), hidden) + bias(4, f))
        else:
            # extractor(cat((copy_input, hidden), 1)) without the concat:
            #   ext_part  == ext_w[:, :f] @ copy_input + ext_b   (hoisted)
            #   ext_hid   == ext_w[:, f:] @ hidden               (from the fused matmul below)
            hidden_con = lrelu(layernorm_hw(ext_part + ext_hid, ln1_g, ln1_b))
            hg_in = residual + alpha_ref[i - 1] * hidden_con
            hidden = lrelu(mm(wmat(r_hg + i * f, f), hg_in) + bias(4 + i, f))

        if i < max_stack - 1:
            # Fused classifier + ext_wb matmul on hidden: rows [0:num_class] -> classifier
            # pre-act (cls_b already folded into the packed bias), rows [num_class:] -> ext_wb@hidden.
            cm = mm(wmat(r_ce, num_class + f), hidden) + bias(2, num_class + f)
            segmentation = lrelu(layernorm_hw(cm[0:num_class], ln2_g, ln2_b))
            ext_hid = cm[num_class:num_class + f]
            # residual = alpha[i] * ReLU(bn3(declassifier(segmentation)))
            residual = alpha_ref[i] * lrelu(
                layernorm_hw(mm(wmat(r_dcl, f, num_class), segmentation) + bias(3, f),
                             ln3_g, ln3_b))
        else:
            # Last stack: classifier only (no ext_wb rows needed afterwards).
            segmentation = lrelu(
                layernorm_hw(mm(wmat(r_ce, num_class), hidden) + bias(2, num_class),
                             ln2_g, ln2_b))

        # Lane-dense stores straight into the final (N, max_stack, num_class, HW) layout.
        for nb in range(n_batch):
            out_ref[nb, i] = segmentation[:, nb * hw:(nb + 1) * hw]


# ----------------------------------------------------------------------------
# Host-side parameter packing: 17 tiny operands -> 2 lane-dense slabs (+ alpha in SMEM)
# ----------------------------------------------------------------------------
def pack_params(params, *, in_ch, f, num_class, hw, max_stack):
    assert f % 8 == 0 and in_ch <= f and num_class <= f
    assert hw >= 4 + max_stack and hw % 128 == 0

    r_pre, r_exta, r_ce = 0, f, 2 * f
    r_dcl = r_ce + _rup(num_class + f, 8)
    r_hg = r_dcl + f
    n_rows = r_hg + max_stack * f

    wslab = jnp.zeros((n_rows, f), jnp.float32)
    wslab = wslab.at[r_pre:r_pre + f, 0:in_ch].set(params["prenet_w"])
    wslab = wslab.at[r_exta:r_exta + f, :].set(params["ext_wa"])
    wslab = wslab.at[r_ce:r_ce + num_class, :].set(params["cls_w"])
    wslab = wslab.at[r_ce + num_class:r_ce + num_class + f, :].set(params["ext_wb"])
    wslab = wslab.at[r_dcl:r_dcl + f, 0:num_class].set(params["dcl_w"])
    for i in range(max_stack):
        wslab = wslab.at[r_hg + i * f:r_hg + (i + 1) * f, :].set(params["hg_w"][i])

    b0 = 8
    pslab = jnp.zeros((b0 + _rup(num_class + f, 8), hw), jnp.float32)
    pslab = pslab.at[0, :].set(params["ln1_g"][0])
    pslab = pslab.at[1, :].set(params["ln1_b"][0])
    pslab = pslab.at[2, :].set(params["ln2_g"][0])
    pslab = pslab.at[3, :].set(params["ln2_b"][0])
    pslab = pslab.at[4, :].set(params["ln3_g"][0])
    pslab = pslab.at[5, :].set(params["ln3_b"][0])
    pslab = pslab.at[b0:b0 + f, 0].set(params["prenet_b"][:, 0])          # prenet bias
    pslab = pslab.at[b0:b0 + f, 1].set(params["ext_b"][:, 0])             # extractor bias
    pslab = pslab.at[b0:b0 + num_class, 2].set(params["cls_b"][:, 0])     # [cls_b ; 0] for fused ce
    pslab = pslab.at[b0:b0 + f, 3].set(params["dcl_b"][:, 0])             # declassifier bias
    for i in range(max_stack):
        pslab = pslab.at[b0:b0 + f, 4 + i].set(params["hg_b"][i][:, 0])   # hourglass biases

    # Guard the max_stack == 1 edge case (zero-length SMEM operands may not lower).
    alpha = params["alpha"] if max_stack > 1 else jnp.zeros((1,), jnp.float32)
    return {"wslab": wslab, "pslab": pslab, "alpha": alpha}


# ----------------------------------------------------------------------------
# Wrapper
# ----------------------------------------------------------------------------
def network_forward(x, packed, *, f, num_class, max_stack, H, W):
    n, c_in, h, w = x.shape
    hw = h * w
    xf = x.reshape(n, c_in, hw).astype(jnp.float32)

    vmem = pl.BlockSpec(memory_space=pltpu.MemorySpace.VMEM)
    smem = pl.BlockSpec(memory_space=pltpu.MemorySpace.SMEM)

    lanes = n * hw
    mm_flops = 2 * lanes * (
        f * c_in
        + (f * f if max_stack > 1 else 0)                 # hoisted ext_wa half
        + max_stack * f * f                               # hourglass stand-ins
        + (max_stack - 1) * (num_class + f) * f           # fused cls+ext_wb matmuls
        + num_class * f                                   # last-iter classifier
        + (max_stack - 1) * f * num_class)                # declassifier
    ln_rows = n * (max_stack * num_class + (max_stack - 1) * 2 * f)       # rsqrt count
    bytes_accessed = 4 * (xf.size + packed["wslab"].size + packed["pslab"].size
                          + n * max_stack * num_class * hw)

    kernel = functools.partial(_network_kernel, n_batch=n, hw=hw, in_ch=c_in,
                               f=f, num_class=num_class, max_stack=max_stack)
    out = pl.pallas_call(
        kernel,
        out_shape=jax.ShapeDtypeStruct((n, max_stack, num_class, hw), jnp.float32),
        in_specs=[vmem, smem, vmem, vmem],
        out_specs=vmem,
        cost_estimate=pl.CostEstimate(flops=int(mm_flops), transcendentals=int(ln_rows),
                                      bytes_accessed=int(bytes_accessed)),
    )(xf, packed["alpha"], packed["wslab"], packed["pslab"])
    return out.reshape(n, max_stack, num_class, H, W)


# ----------------------------------------------------------------------------
# Parameters (deterministic init; shapes follow the module's __init__)
# ----------------------------------------------------------------------------
def init_params(key, *, in_ch, f, num_class, H, W, max_stack):
    hw = H * W
    ks = jax.random.split(key, 20)

    def w_init(k, shape, scale=0.1):
        return (scale * jax.random.normal(k, shape)).astype(jnp.float32)

    return {
        "prenet_w": w_init(ks[0], (f, in_ch)),
        "prenet_b": w_init(ks[1], (f, 1)),
        "hg_w": w_init(ks[2], (max_stack, f, f)),
        "hg_b": w_init(ks[3], (max_stack, f, 1)),
        # extractor: Conv2d(2f -> f, 1), split along input channels
        # (ext_wa acts on copy_input = cat half [:f], ext_wb on hidden = cat half [f:])
        "ext_wa": w_init(ks[4], (f, f)),
        "ext_wb": w_init(ks[5], (f, f)),
        "ext_b": w_init(ks[6], (f, 1)),
        "cls_w": w_init(ks[7], (num_class, f)),
        "cls_b": w_init(ks[8], (num_class, 1)),
        "dcl_w": w_init(ks[9], (f, num_class)),
        "dcl_b": w_init(ks[10], (f, 1)),
        # LayerNorm([H, W]) affine params, stored flattened as (1, H*W)
        "ln1_g": jnp.ones((1, hw), jnp.float32) + w_init(ks[11], (1, hw), 0.01),
        "ln1_b": w_init(ks[12], (1, hw), 0.01),
        "ln2_g": jnp.ones((1, hw), jnp.float32) + w_init(ks[13], (1, hw), 0.01),
        "ln2_b": w_init(ks[14], (1, hw), 0.01),
        "ln3_g": jnp.ones((1, hw), jnp.float32) + w_init(ks[15], (1, hw), 0.01),
        "ln3_b": w_init(ks[16], (1, hw), 0.01),
        # alpha: zeros in PyTorch; small non-zero deterministic values so the
        # iterative refinement path does real work.
        "alpha": jnp.linspace(0.25, 0.75, max(max_stack - 1, 1),
                              dtype=jnp.float32)[:max(max_stack - 1, 0)],
    }


# ----------------------------------------------------------------------------
# Pure-JAX reference (same math, un-fused, two-pass LN, HIGHEST precision)
# ----------------------------------------------------------------------------
def _reference_forward(x, params, *, num_class, max_stack, H, W):
    n, c_in, h, w = x.shape
    hw = h * w
    xf = x.reshape(n, c_in, hw).astype(jnp.float32)
    hp = jax.lax.Precision.HIGHEST

    def lrelu(y):
        return jnp.where(y >= 0, y, 0.01 * y)

    def conv(wm, xv, b):
        return jnp.einsum("oc,ncs->nos", wm, xv, precision=hp) + b[None]

    def ln(y, g, b, eps=1e-5):
        mean = jnp.mean(y, axis=-1, keepdims=True)
        var = jnp.mean((y - mean) ** 2, axis=-1, keepdims=True)
        return (y - mean) * jax.lax.rsqrt(var + eps) * g[None] + b[None]

    alpha = params["alpha"]
    hidden = lrelu(conv(params["prenet_w"], xf, params["prenet_b"]))
    copy_input = hidden
    residual = None
    outs = []
    for i in range(max_stack):
        if i == 0:
            hidden = lrelu(conv(params["hg_w"][0], hidden, params["hg_b"][0]))
        else:
            pre = (jnp.einsum("oc,ncs->nos", params["ext_wa"], copy_input, precision=hp)
                   + jnp.einsum("oc,ncs->nos", params["ext_wb"], hidden, precision=hp)
                   + params["ext_b"][None])
            hidden_con = lrelu(ln(pre, params["ln1_g"], params["ln1_b"]))
            hidden = lrelu(conv(params["hg_w"][i],
                                residual + alpha[i - 1] * hidden_con,
                                params["hg_b"][i]))
        seg = lrelu(ln(conv(params["cls_w"], hidden, params["cls_b"]),
                       params["ln2_g"], params["ln2_b"]))
        if i < max_stack - 1:
            residual = alpha[i] * lrelu(ln(conv(params["dcl_w"], seg, params["dcl_b"]),
                                           params["ln3_g"], params["ln3_b"]))
        outs.append(seg)
    out = jnp.stack(outs, axis=1)                      # (N, max_stack, num_class, HW)
    return out.reshape(n, max_stack, num_class, H, W)


# ----------------------------------------------------------------------------
if __name__ == "__main__":
    # Small synthetic config (mirrors config['f'], config['num_class'], config['oup_dim'],
    # config['max_stack'], normalization == 'layerHW')
    N, IN_CH, H, W = 2, 4, 16, 16
    F, NUM_CLASS, MAX_STACK = 32, 8, 3

    key = jax.random.PRNGKey(0)
    k_x, k_p = jax.random.split(key)
    x = jax.random.normal(k_x, (N, IN_CH, H, W), dtype=jnp.float32)     # NCHW input
    params = init_params(k_p, in_ch=IN_CH, f=F, num_class=NUM_CLASS,
                         H=H, W=W, max_stack=MAX_STACK)
    packed = pack_params(params, in_ch=IN_CH, f=F, num_class=NUM_CLASS,
                         hw=H * W, max_stack=MAX_STACK)

    fwd = jax.jit(functools.partial(network_forward, f=F, num_class=NUM_CLASS,
                                    max_stack=MAX_STACK, H=H, W=W))
    out = jax.block_until_ready(fwd(x, packed))

    assert out.shape == (N, MAX_STACK, NUM_CLASS, H, W), out.shape
    assert bool(jnp.all(jnp.isfinite(out)))

    ref = _reference_forward(x, params, num_class=NUM_CLASS,
                             max_stack=MAX_STACK, H=H, W=W)
    assert bool(jnp.allclose(out, ref, atol=1e-2, rtol=1e-2)), \
        float(jnp.max(jnp.abs(out - ref)))

    print("KERNEL_OK")
</pallas_src>

<mosaic_0001>
module attributes {stable_mosaic.version = 11 : i64} {
  func.func @_network_kernel(%arg0: memref<2x4x256xf32, #tpu.memory_space<vmem>>, %arg1: memref<2xf32, #tpu.memory_space<smem>>, %arg2: memref<232x32xf32, #tpu.memory_space<vmem>>, %arg3: memref<48x256xf32, #tpu.memory_space<vmem>>, %arg4: memref<2x3x8x256xf32, #tpu.memory_space<vmem>>) attributes {dimension_semantics = [], scalar_prefetch = 0 : i64, scratch_operands = 0 : i64, tpu.core_type = #tpu.core_type<tc>} {
    %c0 = arith.constant 0 : index
    %c0_0 = arith.constant 0 : index
    %0 = vector.load %arg3[%c0, %c0_0] : memref<48x256xf32, #tpu.memory_space<vmem>>, vector<1x256xf32>
    %c1 = arith.constant 1 : index
    %c0_1 = arith.constant 0 : index
    %1 = vector.load %arg3[%c1, %c0_1] : memref<48x256xf32, #tpu.memory_space<vmem>>, vector<1x256xf32>
    %c2 = arith.constant 2 : index
    %c0_2 = arith.constant 0 : index
    %2 = vector.load %arg3[%c2, %c0_2] : memref<48x256xf32, #tpu.memory_space<vmem>>, vector<1x256xf32>
    %c3 = arith.constant 3 : index
    %c0_3 = arith.constant 0 : index
    %3 = vector.load %arg3[%c3, %c0_3] : memref<48x256xf32, #tpu.memory_space<vmem>>, vector<1x256xf32>
    %c4 = arith.constant 4 : index
    %c0_4 = arith.constant 0 : index
    %4 = vector.load %arg3[%c4, %c0_4] : memref<48x256xf32, #tpu.memory_space<vmem>>, vector<1x256xf32>
    %c5 = arith.constant 5 : index
    %c0_5 = arith.constant 0 : index
    %5 = vector.load %arg3[%c5, %c0_5] : memref<48x256xf32, #tpu.memory_space<vmem>>, vector<1x256xf32>
    %c0_6 = arith.constant 0 : index
    %c0_7 = arith.constant 0 : index
    %6 = vector.load %arg2[%c0_6, %c0_7] : memref<232x32xf32, #tpu.memory_space<vmem>>, vector<32x4xf32>
    %c8 = arith.constant 8 : index
    %c0_8 = arith.constant 0 : index
    %7 = vector.load %arg3[%c8, %c0_8] : memref<48x256xf32, #tpu.memory_space<vmem>>, vector<32x1xf32>
    %c0_9 = arith.constant 0 : index
    %c0_10 = arith.constant 0 : index
    %c0_11 = arith.constant 0 : index
    %8 = vector.load %arg0[%c0_9, %c0_10, %c0_11] : memref<2x4x256xf32, #tpu.memory_space<vmem>>, vector<1x4x256xf32>
    %9 = vector.shape_cast %8 : vector<1x4x256xf32> to vector<4x256xf32>
    %cst = arith.constant dense<0.000000e+00> : vector<32x256xf32>
    %10 = tpu.matmul %6, %9, %cst {dimension_numbers = #tpu.dot_dimension_numbers<[1], [0], [0], [1], [0, 0, 1, 1], [], []>} : vector<32x4xf32>, vector<4x256xf32>, vector<32x256xf32> -> vector<32x256xf32>
    %11 = vector.broadcast %7 : vector<32x1xf32> to vector<32x256xf32>
    %12 = arith.addf %10, %11 : vector<32x256xf32>
    %cst_12 = arith.constant 0.00999999977 : f32
    %13 = vector.broadcast %cst_12 : f32 to vector<32x256xf32>
    %14 = arith.mulf %13, %12 : vector<32x256xf32>
    %15 = arith.maximumf %12, %14 : vector<32x256xf32>
    %c1_13 = arith.constant 1 : index
    %c0_14 = arith.constant 0 : index
    %c0_15 = arith.constant 0 : index
    %16 = vector.load %arg0[%c1_13, %c0_14, %c0_15] : memref<2x4x256xf32, #tpu.memory_space<vmem>>, vector<1x4x256xf32>
    %17 = vector.shape_cast %16 : vector<1x4x256xf32> to vector<4x256xf32>
    %cst_16 = arith.constant dense<0.000000e+00> : vector<32x256xf32>
    %18 = tpu.matmul %6, %17, %cst_16 {dimension_numbers = #tpu.dot_dimension_numbers<[1], [0], [0], [1], [0, 0, 1, 1], [], []>} : vector<32x4xf32>, vector<4x256xf32>, vector<32x256xf32> -> vector<32x256xf32>
    %19 = vector.broadcast %7 : vector<32x1xf32> to vector<32x256xf32>
    %20 = arith.addf %18, %19 : vector<32x256xf32>
    %cst_17 = arith.constant 0.00999999977 : f32
    %21 = vector.broadcast %cst_17 : f32 to vector<32x256xf32>
    %22 = arith.mulf %21, %20 : vector<32x256xf32>
    %23 = arith.maximumf %20, %22 : vector<32x256xf32>
    %24 = tpu.concatenate %15, %23 in 1 : vector<32x256xf32>, vector<32x256xf32> -> vector<32x512xf32>
    %c32 = arith.constant 32 : index
    %c0_18 = arith.constant 0 : index
    %25 = vector.load %arg2[%c32, %c0_18] : memref<232x32xf32, #tpu.memory_space<vmem>>, vector<32x32xf32>
    %cst_19 = arith.constant dense<0.000000e+00> : vector<32x512xf32>
    %26 = tpu.matmul %25, %24, %cst_19 {dimension_numbers = #tpu.dot_dimension_numbers<[1], [0], [0], [1], [0, 0, 1, 1], [], []>} : vector<32x32xf32>, vector<32x512xf32>, vector<32x512xf32> -> vector<32x512xf32>
    %c8_20 = arith.constant 8 : index
    %c1_21 = arith.constant 1 : index
    %27 = vector.load %arg3[%c8_20, %c1_21] : memref<48x256xf32, #tpu.memory_space<vmem>>, vector<32x1xf32>
    %28 = vector.broadcast %27 : vector<32x1xf32> to vector<32x512xf32>
    %29 = arith.addf %26, %28 : vector<32x512xf32>
    %c136 = arith.constant 136 : index
    %c0_22 = arith.constant 0 : index
    %30 = vector.load %arg2[%c136, %c0_22] : memref<232x32xf32, #tpu.memory_space<vmem>>, vector<32x32xf32>
    %cst_23 = arith.constant dense<0.000000e+00> : vector<32x512xf32>
    %31 = tpu.matmul %30, %24, %cst_23 {dimension_numbers = #tpu.dot_dimension_numbers<[1], [0], [0], [1], [0, 0, 1, 1], [], []>} : vector<32x32xf32>, vector<32x512xf32>, vector<32x512xf32> -> vector<32x512xf32>
    %c8_24 = arith.constant 8 : index
    %c4_25 = arith.constant 4 : index
    %32 = vector.load %arg3[%c8_24, %c4_25] : memref<48x256xf32, #tpu.memory_space<vmem>>, vector<32x1xf32>
    %33 = vector.broadcast %32 : vector<32x1xf32> to vector<32x512xf32>
    %34 = arith.addf %31, %33 : vector<32x512xf32>
    %cst_26 = arith.constant 0.00999999977 : f32
    %35 = vector.broadcast %cst_26 : f32 to vector<32x512xf32>
    %36 = arith.mulf %35, %34 : vector<32x512xf32>
    %37 = arith.maximumf %34, %36 : vector<32x512xf32>
    %c64 = arith.constant 64 : index
    %c0_27 = arith.constant 0 : index
    %38 = vector.load %arg2[%c64, %c0_27] : memref<232x32xf32, #tpu.memory_space<vmem>>, vector<40x32xf32>
    %cst_28 = arith.constant dense<0.000000e+00> : vector<40x512xf32>
    %39 = tpu.matmul %38, %37, %cst_28 {dimension_numbers = #tpu.dot_dimension_numbers<[1], [0], [0], [1], [0, 0, 1, 1], [], []>} : vector<40x32xf32>, vector<32x512xf32>, vector<40x512xf32> -> vector<40x512xf32>
    %c8_29 = arith.constant 8 : index
    %c2_30 = arith.constant 2 : index
    %40 = vector.load %arg3[%c8_29, %c2_30] : memref<48x256xf32, #tpu.memory_space<vmem>>, vector<40x1xf32>
    %41 = vector.broadcast %40 : vector<40x1xf32> to vector<40x512xf32>
    %42 = arith.addf %39, %41 : vector<40x512xf32>
    %43 = vector.extract_strided_slice %42 {offsets = [0, 0], sizes = [8, 512], strides = [1, 1]} : vector<40x512xf32> to vector<8x512xf32>
    %44 = vector.extract_strided_slice %43 {offsets = [0, 0], sizes = [8, 256], strides = [1, 1]} : vector<8x512xf32> to vector<8x256xf32>
    %cst_31 = arith.constant dense<0.000000e+00> : vector<8xf32>
    %45 = vector.multi_reduction <add>, %44, %cst_31 [1] : vector<8x256xf32> to vector<8xf32>
    %46 = vector.shape_cast %45 : vector<8xf32> to vector<8x1xf32>
    %47 = arith.mulf %44, %44 : vector<8x256xf32>
    %cst_32 = arith.constant dense<0.000000e+00> : vector<8xf32>
    %48 = vector.multi_reduction <add>, %47, %cst_32 [1] : vector<8x256xf32> to vector<8xf32>
    %49 = vector.shape_cast %48 : vector<8xf32> to vector<8x1xf32>
    %cst_33 = arith.constant 3.906250e-03 : f32
    %50 = vector.broadcast %cst_33 : f32 to vector<8x1xf32>
    %51 = arith.mulf %46, %50 : vector<8x1xf32>
    %cst_34 = arith.constant 3.906250e-03 : f32
    %52 = vector.broadcast %cst_34 : f32 to vector<8x1xf32>
    %53 = arith.mulf %49, %52 : vector<8x1xf32>
    %54 = arith.mulf %51, %51 : vector<8x1xf32>
    %55 = arith.subf %53, %54 : vector<8x1xf32>
    %56 = vector.broadcast %51 : vector<8x1xf32> to vector<8x256xf32>
    %57 = arith.subf %44, %56 : vector<8x256xf32>
    %cst_35 = arith.constant 9.99999974E-6 : f32
    %58 = vector.broadcast %cst_35 : f32 to vector<8x1xf32>
    %59 = arith.addf %55, %58 : vector<8x1xf32>
    %60 = math.rsqrt %59 : vector<8x1xf32>
    %61 = vector.broadcast %60 : vector<8x1xf32> to vector<8x256xf32>
    %62 = arith.mulf %57, %61 : vector<8x256xf32>
    %63 = vector.broadcast %2 : vector<1x256xf32> to vector<8x256xf32>
    %64 = arith.mulf %62, %63 : vector<8x256xf32>
    %65 = vector.broadcast %3 : vector<1x256xf32> to vector<8x256xf32>
    %66 = arith.addf %64, %65 : vector<8x256xf32>
    %67 = vector.extract_strided_slice %43 {offsets = [0, 256], sizes = [8, 256], strides = [1, 1]} : vector<8x512xf32> to vector<8x256xf32>
    %cst_36 = arith.constant dense<0.000000e+00> : vector<8xf32>
    %68 = vector.multi_reduction <add>, %67, %cst_36 [1] : vector<8x256xf32> to vector<8xf32>
    %69 = vector.shape_cast %68 : vector<8xf32> to vector<8x1xf32>
    %70 = arith.mulf %67, %67 : vector<8x256xf32>
    %cst_37 = arith.constant dense<0.000000e+00> : vector<8xf32>
    %71 = vector.multi_reduction <add>, %70, %cst_37 [1] : vector<8x256xf32> to vector<8xf32>
    %72 = vector.shape_cast %71 : vector<8xf32> to vector<8x1xf32>
    %cst_38 = arith.constant 3.906250e-03 : f32
    %73 = vector.broadcast %cst_38 : f32 to vector<8x1xf32>
    %74 = arith.mulf %69, %73 : vector<8x1xf32>
    %cst_39 = arith.constant 3.906250e-03 : f32
    %75 = vector.broadcast %cst_39 : f32 to vector<8x1xf32>
    %76 = arith.mulf %72, %75 : vector<8x1xf32>
    %77 = arith.mulf %74, %74 : vector<8x1xf32>
    %78 = arith.subf %76, %77 : vector<8x1xf32>
    %79 = vector.broadcast %74 : vector<8x1xf32> to vector<8x256xf32>
    %80 = arith.subf %67, %79 : vector<8x256xf32>
    %cst_40 = arith.constant 9.99999974E-6 : f32
    %81 = vector.broadcast %cst_40 : f32 to vector<8x1xf32>
    %82 = arith.addf %78, %81 : vector<8x1xf32>
    %83 = math.rsqrt %82 : vector<8x1xf32>
    %84 = vector.broadcast %83 : vector<8x1xf32> to vector<8x256xf32>
    %85 = arith.mulf %80, %84 : vector<8x256xf32>
    %86 = vector.broadcast %2 : vector<1x256xf32> to vector<8x256xf32>
    %87 = arith.mulf %85, %86 : vector<8x256xf32>
    %88 = vector.broadcast %3 : vector<1x256xf32> to vector<8x256xf32>
    %89 = arith.addf %87, %88 : vector<8x256xf32>
    %90 = tpu.concatenate %66, %89 in 1 : vector<8x256xf32>, vector<8x256xf32> -> vector<8x512xf32>
    %cst_41 = arith.constant 0.00999999977 : f32
    %91 = vector.broadcast %cst_41 : f32 to vector<8x512xf32>
    %92 = arith.mulf %91, %90 : vector<8x512xf32>
    %93 = arith.maximumf %90, %92 : vector<8x512xf32>
    %94 = vector.extract_strided_slice %42 {offsets = [8, 0], sizes = [32, 512], strides = [1, 1]} : vector<40x512xf32> to vector<32x512xf32>
    %c0_42 = arith.constant 0 : index
    %95 = memref.load %arg1[%c0_42] : memref<2xf32, #tpu.memory_space<smem>>
    %c104 = arith.constant 104 : index
    %c0_43 = arith.constant 0 : index
    %96 = vector.load %arg2[%c104, %c0_43] : memref<232x32xf32, #tpu.memory_space<vmem>>, vector<32x8xf32>
    %cst_44 = arith.constant dense<0.000000e+00> : vector<32x512xf32>
    %97 = tpu.matmul %96, %93, %cst_44 {dimension_numbers = #tpu.dot_dimension_numbers<[1], [0], [0], [1], [0, 0, 1, 1], [], []>} : vector<32x8xf32>, vector<8x512xf32>, vector<32x512xf32> -> vector<32x512xf32>
    %c8_45 = arith.constant 8 : index
    %c3_46 = arith.constant 3 : index
    %98 = vector.load %arg3[%c8_45, %c3_46] : memref<48x256xf32, #tpu.memory_space<vmem>>, vector<32x1xf32>
    %99 = vector.broadcast %98 : vector<32x1xf32> to vector<32x512xf32>
    %100 = arith.addf %97, %99 : vector<32x512xf32>
    %101 = vector.extract_strided_slice %100 {offsets = [0, 0], sizes = [32, 256], strides = [1, 1]} : vector<32x512xf32> to vector<32x256xf32>
    %cst_47 = arith.constant dense<0.000000e+00> : vector<32xf32>
    %102 = vector.multi_reduction <add>, %101, %cst_47 [1] : vector<32x256xf32> to vector<32xf32>
    %103 = vector.shape_cast %102 : vector<32xf32> to vector<32x1xf32>
    %104 = arith.mulf %101, %101 : vector<32x256xf32>
    %cst_48 = arith.constant dense<0.000000e+00> : vector<32xf32>
    %105 = vector.multi_reduction <add>, %104, %cst_48 [1] : vector<32x256xf32> to vector<32xf32>
    %106 = vector.shape_cast %105 : vector<32xf32> to vector<32x1xf32>
    %cst_49 = arith.constant 3.906250e-03 : f32
    %107 = vector.broadcast %cst_49 : f32 to vector<32x1xf32>
    %108 = arith.mulf %103, %107 : vector<32x1xf32>
    %cst_50 = arith.constant 3.906250e-03 : f32
    %109 = vector.broadcast %cst_50 : f32 to vector<32x1xf32>
    %110 = arith.mulf %106, %109 : vector<32x1xf32>
    %111 = arith.mulf %108, %108 : vector<32x1xf32>
    %112 = arith.subf %110, %111 : vector<32x1xf32>
    %113 = vector.broadcast %108 : vector<32x1xf32> to vector<32x256xf32>
    %114 = arith.subf %101, %113 : vector<32x256xf32>
    %cst_51 = arith.constant 9.99999974E-6 : f32
    %115 = vector.broadcast %cst_51 : f32 to vector<32x1xf32>
    %116 = arith.addf %112, %115 : vector<32x1xf32>
    %117 = math.rsqrt %116 : vector<32x1xf32>
    %118 = vector.broadcast %117 : vector<32x1xf32> to vector<32x256xf32>
    %119 = arith.mulf %114, %118 : vector<32x256xf32>
    %120 = vector.broadcast %4 : vector<1x256xf32> to vector<32x256xf32>
    %121 = arith.mulf %119, %120 : vector<32x256xf32>
    %122 = vector.broadcast %5 : vector<1x256xf32> to vector<32x256xf32>
    %123 = arith.addf %121, %122 : vector<32x256xf32>
    %124 = vector.extract_strided_slice %100 {offsets = [0, 256], sizes = [32, 256], strides = [1, 1]} : vector<32x512xf32> to vector<32x256xf32>
    %cst_52 = arith.constant dense<0.000000e+00> : vector<32xf32>
    %125 = vector.multi_reduction <add>, %124, %cst_52 [1] : vector<32x256xf32> to vector<32xf32>
    %126 = vector.shape_cast %125 : vector<32xf32> to vector<32x1xf32>
    %127 = arith.mulf %124, %124 : vector<32x256xf32>
    %cst_53 = arith.constant dense<0.000000e+00> : vector<32xf32>
    %128 = vector.multi_reduction <add>, %127, %cst_53 [1] : vector<32x256xf32> to vector<32xf32>
    %129 = vector.shape_cast %128 : vector<32xf32> to vector<32x1xf32>
    %cst_54 = arith.constant 3.906250e-03 : f32
    %130 = vector.broadcast %cst_54 : f32 to vector<32x1xf32>
    %131 = arith.mulf %126, %130 : vector<32x1xf32>
    %cst_55 = arith.constant 3.906250e-03 : f32
    %132 = vector.broadcast %cst_55 : f32 to vector<32x1xf32>
    %133 = arith.mulf %129, %132 : vector<32x1xf32>
    %134 = arith.mulf %131, %131 : vector<32x1xf32>
    %135 = arith.subf %133, %134 : vector<32x1xf32>
    %136 = vector.broadcast %131 : vector<32x1xf32> to vector<32x256xf32>
    %137 = arith.subf %124, %136 : vector<32x256xf32>
    %cst_56 = arith.constant 9.99999974E-6 : f32
    %138 = vector.broadcast %cst_56 : f32 to vector<32x1xf32>
    %139 = arith.addf %135, %138 : vector<32x1xf32>
    %140 = math.rsqrt %139 : vector<32x1xf32>
    %141 = vector.broadcast %140 : vector<32x1xf32> to vector<32x256xf32>
    %142 = arith.mulf %137, %141 : vector<32x256xf32>
    %143 = vector.broadcast %4 : vector<1x256xf32> to vector<32x256xf32>
    %144 = arith.mulf %142, %143 : vector<32x256xf32>
    %145 = vector.broadcast %5 : vector<1x256xf32> to vector<32x256xf32>
    %146 = arith.addf %144, %145 : vector<32x256xf32>
    %147 = tpu.concatenate %123, %146 in 1 : vector<32x256xf32>, vector<32x256xf32> -> vector<32x512xf32>
    %cst_57 = arith.constant 0.00999999977 : f32
    %148 = vector.broadcast %cst_57 : f32 to vector<32x512xf32>
    %149 = arith.mulf %148, %147 : vector<32x512xf32>
    %150 = arith.maximumf %147, %149 : vector<32x512xf32>
    %151 = vector.broadcast %95 : f32 to vector<32x512xf32>
    %152 = arith.mulf %151, %150 : vector<32x512xf32>
    %153 = vector.extract_strided_slice %93 {offsets = [0, 0], sizes = [8, 256], strides = [1, 1]} : vector<8x512xf32> to vector<8x256xf32>
    %c0_58 = arith.constant 0 : index
    %c0_59 = arith.constant 0 : index
    %c0_60 = arith.constant 0 : index
    %c0_61 = arith.constant 0 : index
    %154 = vector.load %arg4[%c0_58, %c0_59, %c0_60, %c0_61] : memref<2x3x8x256xf32, #tpu.memory_space<vmem>>, vector<1x1x8x256xf32>
    %155 = vector.shape_cast %154 : vector<1x1x8x256xf32> to vector<8x256xf32>
    %156 = vector.shape_cast %153 : vector<8x256xf32> to vector<1x1x8x256xf32>
    tpu.vector_store %arg4[%c0_58, %c0_59, %c0_60, %c0_61], %156 {strides = array<i32>} : memref<2x3x8x256xf32, #tpu.memory_space<vmem>>, vector<1x1x8x256xf32>,
    %157 = vector.extract_strided_slice %93 {offsets = [0, 256], sizes = [8, 256], strides = [1, 1]} : vector<8x512xf32> to vector<8x256xf32>
    %c1_62 = arith.constant 1 : index
    %c0_63 = arith.constant 0 : index
    %c0_64 = arith.constant 0 : index
    %c0_65 = arith.constant 0 : index
    %158 = vector.load %arg4[%c1_62, %c0_63, %c0_64, %c0_65] : memref<2x3x8x256xf32, #tpu.memory_space<vmem>>, vector<1x1x8x256xf32>
    %159 = vector.shape_cast %158 : vector<1x1x8x256xf32> to vector<8x256xf32>
    %160 = vector.shape_cast %157 : vector<8x256xf32> to vector<1x1x8x256xf32>
    tpu.vector_store %arg4[%c1_62, %c0_63, %c0_64, %c0_65], %160 {strides = array<i32>} : memref<2x3x8x256xf32, #tpu.memory_space<vmem>>, vector<1x1x8x256xf32>,
    %161 = arith.addf %29, %94 : vector<32x512xf32>
    %162 = vector.extract_strided_slice %161 {offsets = [0, 0], sizes = [32, 256], strides = [1, 1]} : vector<32x512xf32> to vector<32x256xf32>
    %cst_66 = arith.constant dense<0.000000e+00> : vector<32xf32>
    %163 = vector.multi_reduction <add>, %162, %cst_66 [1] : vector<32x256xf32> to vector<32xf32>
    %164 = vector.shape_cast %163 : vector<32xf32> to vector<32x1xf32>
    %165 = arith.mulf %162, %162 : vector<32x256xf32>
    %cst_67 = arith.constant dense<0.000000e+00> : vector<32xf32>
    %166 = vector.multi_reduction <add>, %165, %cst_67 [1] : vector<32x256xf32> to vector<32xf32>
    %167 = vector.shape_cast %166 : vector<32xf32> to vector<32x1xf32>
    %cst_68 = arith.constant 3.906250e-03 : f32
    %168 = vector.broadcast %cst_68 : f32 to vector<32x1xf32>
    %169 = arith.mulf %164, %168 : vector<32x1xf32>
    %cst_69 = arith.constant 3.906250e-03 : f32
    %170 = vector.broadcast %cst_69 : f32 to vector<32x1xf32>
    %171 = arith.mulf %167, %170 : vector<32x1xf32>
    %172 = arith.mulf %169, %169 : vector<32x1xf32>
    %173 = arith.subf %171, %172 : vector<32x1xf32>
    %174 = vector.broadcast %169 : vector<32x1xf32> to vector<32x256xf32>
    %175 = arith.subf %162, %174 : vector<32x256xf32>
    %cst_70 = arith.constant 9.99999974E-6 : f32
    %176 = vector.broadcast %cst_70 : f32 to vector<32x1xf32>
    %177 = arith.addf %173, %176 : vector<32x1xf32>
    %178 = math.rsqrt %177 : vector<32x1xf32>
    %179 = vector.broadcast %178 : vector<32x1xf32> to vector<32x256xf32>
    %180 = arith.mulf %175, %179 : vector<32x256xf32>
    %181 = vector.broadcast %0 : vector<1x256xf32> to vector<32x256xf32>
    %182 = arith.mulf %180, %181 : vector<32x256xf32>
    %183 = vector.broadcast %1 : vector<1x256xf32> to vector<32x256xf32>
    %184 = arith.addf %182, %183 : vector<32x256xf32>
    %185 = vector.extract_strided_slice %161 {offsets = [0, 256], sizes = [32, 256], strides = [1, 1]} : vector<32x512xf32> to vector<32x256xf32>
    %cst_71 = arith.constant dense<0.000000e+00> : vector<32xf32>
    %186 = vector.multi_reduction <add>, %185, %cst_71 [1] : vector<32x256xf32> to vector<32xf32>
    %187 = vector.shape_cast %186 : vector<32xf32> to vector<32x1xf32>
    %188 = arith.mulf %185, %185 : vector<32x256xf32>
    %cst_72 = arith.constant dense<0.000000e+00> : vector<32xf32>
    %189 = vector.multi_reduction <add>, %188, %cst_72 [1] : vector<32x256xf32> to vector<32xf32>
    %190 = vector.shape_cast %189 : vector<32xf32> to vector<32x1xf32>
    %cst_73 = arith.constant 3.906250e-03 : f32
    %191 = vector.broadcast %cst_73 : f32 to vector<32x1xf32>
    %192 = arith.mulf %187, %191 : vector<32x1xf32>
    %cst_74 = arith.constant 3.906250e-03 : f32
    %193 = vector.broadcast %cst_74 : f32 to vector<32x1xf32>
    %194 = arith.mulf %190, %193 : vector<32x1xf32>
    %195 = arith.mulf %192, %192 : vector<32x1xf32>
    %196 = arith.subf %194, %195 : vector<32x1xf32>
    %197 = vector.broadcast %192 : vector<32x1xf32> to vector<32x256xf32>
    %198 = arith.subf %185, %197 : vector<32x256xf32>
    %cst_75 = arith.constant 9.99999974E-6 : f32
    %199 = vector.broadcast %cst_75 : f32 to vector<32x1xf32>
    %200 = arith.addf %196, %199 : vector<32x1xf32>
    %201 = math.rsqrt %200 : vector<32x1xf32>
    %202 = vector.broadcast %201 : vector<32x1xf32> to vector<32x256xf32>
    %203 = arith.mulf %198, %202 : vector<32x256xf32>
    %204 = vector.broadcast %0 : vector<1x256xf32> to vector<32x256xf32>
    %205 = arith.mulf %203, %204 : vector<32x256xf32>
    %206 = vector.broadcast %1 : vector<1x256xf32> to vector<32x256xf32>
    %207 = arith.addf %205, %206 : vector<32x256xf32>
    %208 = tpu.concatenate %184, %207 in 1 : vector<32x256xf32>, vector<32x256xf32> -> vector<32x512xf32>
    %cst_76 = arith.constant 0.00999999977 : f32
    %209 = vector.broadcast %cst_76 : f32 to vector<32x512xf32>
    %210 = arith.mulf %209, %208 : vector<32x512xf32>
    %211 = arith.maximumf %208, %210 : vector<32x512xf32>
    %c0_77 = arith.constant 0 : index
    %212 = memref.load %arg1[%c0_77] : memref<2xf32, #tpu.memory_space<smem>>
    %213 = vector.broadcast %212 : f32 to vector<32x512xf32>
    %214 = arith.mulf %213, %211 : vector<32x512xf32>
    %215 = arith.addf %152, %214 : vector<32x512xf32>
    %c168 = arith.constant 168 : index
    %c0_78 = arith.constant 0 : index
    %216 = vector.load %arg2[%c168, %c0_78] : memref<232x32xf32, #tpu.memory_space<vmem>>, vector<32x32xf32>
    %cst_79 = arith.constant dense<0.000000e+00> : vector<32x512xf32>
    %217 = tpu.matmul %216, %215, %cst_79 {dimension_numbers = #tpu.dot_dimension_numbers<[1], [0], [0], [1], [0, 0, 1, 1], [], []>} : vector<32x32xf32>, vector<32x512xf32>, vector<32x512xf32> -> vector<32x512xf32>
    %c8_80 = arith.constant 8 : index
    %c5_81 = arith.constant 5 : index
    %218 = vector.load %arg3[%c8_80, %c5_81] : memref<48x256xf32, #tpu.memory_space<vmem>>, vector<32x1xf32>
    %219 = vector.broadcast %218 : vector<32x1xf32> to vector<32x512xf32>
    %220 = arith.addf %217, %219 : vector<32x512xf32>
    %cst_82 = arith.constant 0.00999999977 : f32
    %221 = vector.broadcast %cst_82 : f32 to vector<32x512xf32>
    %222 = arith.mulf %221, %220 : vector<32x512xf32>
    %223 = arith.maximumf %220, %222 : vector<32x512xf32>
    %c64_83 = arith.constant 64 : index
    %c0_84 = arith.constant 0 : index
    %224 = vector.load %arg2[%c64_83, %c0_84] : memref<232x32xf32, #tpu.memory_space<vmem>>, vector<40x32xf32>
    %cst_85 = arith.constant dense<0.000000e+00> : vector<40x512xf32>
    %225 = tpu.matmul %224, %223, %cst_85 {dimension_numbers = #tpu.dot_dimension_numbers<[1], [0], [0], [1], [0, 0, 1, 1], [], []>} : vector<40x32xf32>, vector<32x512xf32>, vector<40x512xf32> -> vector<40x512xf32>
    %c8_86 = arith.constant 8 : index
    %c2_87 = arith.constant 2 : index
    %226 = vector.load %arg3[%c8_86, %c2_87] : memref<48x256xf32, #tpu.memory_space<vmem>>, vector<40x1xf32>
    %227 = vector.broadcast %226 : vector<40x1xf32> to vector<40x512xf32>
    %228 = arith.addf %225, %227 : vector<40x512xf32>
    %229 = vector.extract_strided_slice %228 {offsets = [0, 0], sizes = [8, 512], strides = [1, 1]} : vector<40x512xf32> to vector<8x512xf32>
    %230 = vector.extract_strided_slice %229 {offsets = [0, 0], sizes = [8, 256], strides = [1, 1]} : vector<8x512xf32> to vector<8x256xf32>
    %cst_88 = arith.constant dense<0.000000e+00> : vector<8xf32>
    %231 = vector.multi_reduction <add>, %230, %cst_88 [1] : vector<8x256xf32> to vector<8xf32>
    %232 = vector.shape_cast %231 : vector<8xf32> to vector<8x1xf32>
    %233 = arith.mulf %230, %230 : vector<8x256xf32>
    %cst_89 = arith.constant dense<0.000000e+00> : vector<8xf32>
    %234 = vector.multi_reduction <add>, %233, %cst_89 [1] : vector<8x256xf32> to vector<8xf32>
    %235 = vector.shape_cast %234 : vector<8xf32> to vector<8x1xf32>
    %cst_90 = arith.constant 3.906250e-03 : f32
    %236 = vector.broadcast %cst_90 : f32 to vector<8x1xf32>
    %237 = arith.mulf %232, %236 : vector<8x1xf32>
    %cst_91 = arith.constant 3.906250e-03 : f32
    %238 = vector.broadcast %cst_91 : f32 to vector<8x1xf32>
    %239 = arith.mulf %235, %238 : vector<8x1xf32>
    %240 = arith.mulf %237, %237 : vector<8x1xf32>
    %241 = arith.subf %239, %240 : vector<8x1xf32>
    %242 = vector.broadcast %237 : vector<8x1xf32> to vector<8x256xf32>
    %243 = arith.subf %230, %242 : vector<8x256xf32>
    %cst_92 = arith.constant 9.99999974E-6 : f32
    %244 = vector.broadcast %cst_92 : f32 to vector<8x1xf32>
    %245 = arith.addf %241, %244 : vector<8x1xf32>
    %246 = math.rsqrt %245 : vector<8x1xf32>
    %247 = vector.broadcast %246 : vector<8x1xf32> to vector<8x256xf32>
    %248 = arith.mulf %243, %247 : vector<8x256xf32>
    %249 = vector.broadcast %2 : vector<1x256xf32> to vector<8x256xf32>
    %250 = arith.mulf %248, %249 : vector<8x256xf32>
    %251 = vector.broadcast %3 : vector<1x256xf32> to vector<8x256xf32>
    %252 = arith.addf %250, %251 : vector<8x256xf32>
    %253 = vector.extract_strided_slice %229 {offsets = [0, 256], sizes = [8, 256], strides = [1, 1]} : vector<8x512xf32> to vector<8x256xf32>
    %cst_93 = arith.constant dense<0.000000e+00> : vector<8xf32>
    %254 = vector.multi_reduction <add>, %253, %cst_93 [1] : vector<8x256xf32> to vector<8xf32>
    %255 = vector.shape_cast %254 : vector<8xf32> to vector<8x1xf32>
    %256 = arith.mulf %253, %253 : vector<8x256xf32>
    %cst_94 = arith.constant dense<0.000000e+00> : vector<8xf32>
    %257 = vector.multi_reduction <add>, %256, %cst_94 [1] : vector<8x256xf32> to vector<8xf32>
    %258 = vector.shape_cast %257 : vector<8xf32> to vector<8x1xf32>
    %cst_95 = arith.constant 3.906250e-03 : f32
    %259 = vector.broadcast %cst_95 : f32 to vector<8x1xf32>
    %260 = arith.mulf %255, %259 : vector<8x1xf32>
    %cst_96 = arith.constant 3.906250e-03 : f32
    %261 = vector.broadcast %cst_96 : f32 to vector<8x1xf32>
    %262 = arith.mulf %258, %261 : vector<8x1xf32>
    %263 = arith.mulf %260, %260 : vector<8x1xf32>
    %264 = arith.subf %262, %263 : vector<8x1xf32>
    %265 = vector.broadcast %260 : vector<8x1xf32> to vector<8x256xf32>
    %266 = arith.subf %253, %265 : vector<8x256xf32>
    %cst_97 = arith.constant 9.99999974E-6 : f32
    %267 = vector.broadcast %cst_97 : f32 to vector<8x1xf32>
    %268 = arith.addf %264, %267 : vector<8x1xf32>
    %269 = math.rsqrt %268 : vector<8x1xf32>
    %270 = vector.broadcast %269 : vector<8x1xf32> to vector<8x256xf32>
    %271 = arith.mulf %266, %270 : vector<8x256xf32>
    %272 = vector.broadcast %2 : vector<1x256xf32> to vector<8x256xf32>
    %273 = arith.mulf %271, %272 : vector<8x256xf32>
    %274 = vector.broadcast %3 : vector<1x256xf32> to vector<8x256xf32>
    %275 = arith.addf %273, %274 : vector<8x256xf32>
    %276 = tpu.concatenate %252, %275 in 1 : vector<8x256xf32>, vector<8x256xf32> -> vector<8x512xf32>
    %cst_98 = arith.constant 0.00999999977 : f32
    %277 = vector.broadcast %cst_98 : f32 to vector<8x512xf32>
    %278 = arith.mulf %277, %276 : vector<8x512xf32>
    %279 = arith.maximumf %276, %278 : vector<8x512xf32>
    %280 = vector.extract_strided_slice %228 {offsets = [8, 0], sizes = [32, 512], strides = [1, 1]} : vector<40x512xf32> to vector<32x512xf32>
    %c1_99 = arith.constant 1 : index
    %281 = memref.load %arg1[%c1_99] : memref<2xf32, #tpu.memory_space<smem>>
    %c104_100 = arith.constant 104 : index
    %c0_101 = arith.constant 0 : index
    %282 = vector.load %arg2[%c104_100, %c0_101] : memref<232x32xf32, #tpu.memory_space<vmem>>, vector<32x8xf32>
    %cst_102 = arith.constant dense<0.000000e+00> : vector<32x512xf32>
    %283 = tpu.matmul %282, %279, %cst_102 {dimension_numbers = #tpu.dot_dimension_numbers<[1], [0], [0], [1], [0, 0, 1, 1], [], []>} : vector<32x8xf32>, vector<8x512xf32>, vector<32x512xf32> -> vector<32x512xf32>
    %c8_103 = arith.constant 8 : index
    %c3_104 = arith.constant 3 : index
    %284 = vector.load %arg3[%c8_103, %c3_104] : memref<48x256xf32, #tpu.memory_space<vmem>>, vector<32x1xf32>
    %285 = vector.broadcast %284 : vector<32x1xf32> to vector<32x512xf32>
    %286 = arith.addf %283, %285 : vector<32x512xf32>
    %287 = vector.extract_strided_slice %286 {offsets = [0, 0], sizes = [32, 256], strides = [1, 1]} : vector<32x512xf32> to vector<32x256xf32>
    %cst_105 = arith.constant dense<0.000000e+00> : vector<32xf32>
    %288 = vector.multi_reduction <add>, %287, %cst_105 [1] : vector<32x256xf32> to vector<32xf32>
    %289 = vector.shape_cast %288 : vector<32xf32> to vector<32x1xf32>
    %290 = arith.mulf %287, %287 : vector<32x256xf32>
    %cst_106 = arith.constant dense<0.000000e+00> : vector<32xf32>
    %291 = vector.multi_reduction <add>, %290, %cst_106 [1] : vector<32x256xf32> to vector<32xf32>
    %292 = vector.shape_cast %291 : vector<32xf32> to vector<32x1xf32>
    %cst_107 = arith.constant 3.906250e-03 : f32
    %293 = vector.broadcast %cst_107 : f32 to vector<32x1xf32>
    %294 = arith.mulf %289, %293 : vector<32x1xf32>
    %cst_108 = arith.constant 3.906250e-03 : f32
    %295 = vector.broadcast %cst_108 : f32 to vector<32x1xf32>
    %296 = arith.mulf %292, %295 : vector<32x1xf32>
    %297 = arith.mulf %294, %294 : vector<32x1xf32>
    %298 = arith.subf %296, %297 : vector<32x1xf32>
    %299 = vector.broadcast %294 : vector<32x1xf32> to vector<32x256xf32>
    %300 = arith.subf %287, %299 : vector<32x256xf32>
    %cst_109 = arith.constant 9.99999974E-6 : f32
    %301 = vector.broadcast %cst_109 : f32 to vector<32x1xf32>
    %302 = arith.addf %298, %301 : vector<32x1xf32>
    %303 = math.rsqrt %302 : vector<32x1xf32>
    %304 = vector.broadcast %303 : vector<32x1xf32> to vector<32x256xf32>
    %305 = arith.mulf %300, %304 : vector<32x256xf32>
    %306 = vector.broadcast %4 : vector<1x256xf32> to vector<32x256xf32>
    %307 = arith.mulf %305, %306 : vector<32x256xf32>
    %308 = vector.broadcast %5 : vector<1x256xf32> to vector<32x256xf32>
    %309 = arith.addf %307, %308 : vector<32x256xf32>
    %310 = vector.extract_strided_slice %286 {offsets = [0, 256], sizes = [32, 256], strides = [1, 1]} : vector<32x512xf32> to vector<32x256xf32>
    %cst_110 = arith.constant dense<0.000000e+00> : vector<32xf32>
    %311 = vector.multi_reduction <add>, %310, %cst_110 [1] : vector<32x256xf32> to vector<32xf32>
    %312 = vector.shape_cast %311 : vector<32xf32> to vector<32x1xf32>
    %313 = arith.mulf %310, %310 : vector<32x256xf32>
    %cst_111 = arith.constant dense<0.000000e+00> : vector<32xf32>
    %314 = vector.multi_reduction <add>, %313, %cst_111 [1] : vector<32x256xf32> to vector<32xf32>
    %315 = vector.shape_cast %314 : vector<32xf32> to vector<32x1xf32>
    %cst_112 = arith.constant 3.906250e-03 : f32
    %316 = vector.broadcast %cst_112 : f32 to vector<32x1xf32>
    %317 = arith.mulf %312, %316 : vector<32x1xf32>
    %cst_113 = arith.constant 3.906250e-03 : f32
    %318 = vector.broadcast %cst_113 : f32 to vector<32x1xf32>
    %319 = arith.mulf %315, %318 : vector<32x1xf32>
    %320 = arith.mulf %317, %317 : vector<32x1xf32>
    %321 = arith.subf %319, %320 : vector<32x1xf32>
    %322 = vector.broadcast %317 : vector<32x1xf32> to vector<32x256xf32>
    %323 = arith.subf %310, %322 : vector<32x256xf32>
    %cst_114 = arith.constant 9.99999974E-6 : f32
    %324 = vector.broadcast %cst_114 : f32 to vector<32x1xf32>
    %325 = arith.addf %321, %324 : vector<32x1xf32>
    %326 = math.rsqrt %325 : vector<32x1xf32>
    %327 = vector.broadcast %326 : vector<32x1xf32> to vector<32x256xf32>
    %328 = arith.mulf %323, %327 : vector<32x256xf32>
    %329 = vector.broadcast %4 : vector<1x256xf32> to vector<32x256xf32>
    %330 = arith.mulf %328, %329 : vector<32x256xf32>
    %331 = vector.broadcast %5 : vector<1x256xf32> to vector<32x256xf32>
    %332 = arith.addf %330, %331 : vector<32x256xf32>
    %333 = tpu.concatenate %309, %332 in 1 : vector<32x256xf32>, vector<32x256xf32> -> vector<32x512xf32>
    %cst_115 = arith.constant 0.00999999977 : f32
    %334 = vector.broadcast %cst_115 : f32 to vector<32x512xf32>
    %335 = arith.mulf %334, %333 : vector<32x512xf32>
    %336 = arith.maximumf %333, %335 : vector<32x512xf32>
    %337 = vector.broadcast %281 : f32 to vector<32x512xf32>
    %338 = arith.mulf %337, %336 : vector<32x512xf32>
    %339 = vector.extract_strided_slice %279 {offsets = [0, 0], sizes = [8, 256], strides = [1, 1]} : vector<8x512xf32> to vector<8x256xf32>
    %c0_116 = arith.constant 0 : index
    %c1_117 = arith.constant 1 : index
    %c0_118 = arith.constant 0 : index
    %c0_119 = arith.constant 0 : index
    %340 = vector.load %arg4[%c0_116, %c1_117, %c0_118, %c0_119] : memref<2x3x8x256xf32, #tpu.memory_space<vmem>>, vector<1x1x8x256xf32>
    %341 = vector.shape_cast %340 : vector<1x1x8x256xf32> to vector<8x256xf32>
    %342 = vector.shape_cast %339 : vector<8x256xf32> to vector<1x1x8x256xf32>
    tpu.vector_store %arg4[%c0_116, %c1_117, %c0_118, %c0_119], %342 {strides = array<i32>} : memref<2x3x8x256xf32, #tpu.memory_space<vmem>>, vector<1x1x8x256xf32>,
    %343 = vector.extract_strided_slice %279 {offsets = [0, 256], sizes = [8, 256], strides = [1, 1]} : vector<8x512xf32> to vector<8x256xf32>
    %c1_120 = arith.constant 1 : index
    %c1_121 = arith.constant 1 : index
    %c0_122 = arith.constant 0 : index
    %c0_123 = arith.constant 0 : index
    %344 = vector.load %arg4[%c1_120, %c1_121, %c0_122, %c0_123] : memref<2x3x8x256xf32, #tpu.memory_space<vmem>>, vector<1x1x8x256xf32>
    %345 = vector.shape_cast %344 : vector<1x1x8x256xf32> to vector<8x256xf32>
    %346 = vector.shape_cast %343 : vector<8x256xf32> to vector<1x1x8x256xf32>
    tpu.vector_store %arg4[%c1_120, %c1_121, %c0_122, %c0_123], %346 {strides = array<i32>} : memref<2x3x8x256xf32, #tpu.memory_space<vmem>>, vector<1x1x8x256xf32>,
    %347 = arith.addf %29, %280 : vector<32x512xf32>
    %348 = vector.extract_strided_slice %347 {offsets = [0, 0], sizes = [32, 256], strides = [1, 1]} : vector<32x512xf32> to vector<32x256xf32>
    %cst_124 = arith.constant dense<0.000000e+00> : vector<32xf32>
    %349 = vector.multi_reduction <add>, %348, %cst_124 [1] : vector<32x256xf32> to vector<32xf32>
    %350 = vector.shape_cast %349 : vector<32xf32> to vector<32x1xf32>
    %351 = arith.mulf %348, %348 : vector<32x256xf32>
    %cst_125 = arith.constant dense<0.000000e+00> : vector<32xf32>
    %352 = vector.multi_reduction <add>, %351, %cst_125 [1] : vector<32x256xf32> to vector<32xf32>
    %353 = vector.shape_cast %352 : vector<32xf32> to vector<32x1xf32>
    %cst_126 = arith.constant 3.906250e-03 : f32
    %354 = vector.broadcast %cst_126 : f32 to vector<32x1xf32>
    %355 = arith.mulf %350, %354 : vector<32x1xf32>
    %cst_127 = arith.constant 3.906250e-03 : f32
    %356 = vector.broadcast %cst_127 : f32 to vector<32x1xf32>
    %357 = arith.mulf %353, %356 : vector<32x1xf32>
    %358 = arith.mulf %355, %355 : vector<32x1xf32>
    %359 = arith.subf %357, %358 : vector<32x1xf32>
    %360 = vector.broadcast %355 : vector<32x1xf32> to vector<32x256xf32>
    %361 = arith.subf %348, %360 : vector<32x256xf32>
    %cst_128 = arith.constant 9.99999974E-6 : f32
    %362 = vector.broadcast %cst_128 : f32 to vector<32x1xf32>
    %363 = arith.addf %359, %362 : vector<32x1xf32>
    %364 = math.rsqrt %363 : vector<32x1xf32>
    %365 = vector.broadcast %364 : vector<32x1xf32> to vector<32x256xf32>
    %366 = arith.mulf %361, %365 : vector<32x256xf32>
    %367 = vector.broadcast %0 : vector<1x256xf32> to vector<32x256xf32>
    %368 = arith.mulf %366, %367 : vector<32x256xf32>
    %369 = vector.broadcast %1 : vector<1x256xf32> to vector<32x256xf32>
    %370 = arith.addf %368, %369 : vector<32x256xf32>
    %371 = vector.extract_strided_slice %347 {offsets = [0, 256], sizes = [32, 256], strides = [1, 1]} : vector<32x512xf32> to vector<32x256xf32>
    %cst_129 = arith.constant dense<0.000000e+00> : vector<32xf32>
    %372 = vector.multi_reduction <add>, %371, %cst_129 [1] : vector<32x256xf32> to vector<32xf32>
    %373 = vector.shape_cast %372 : vector<32xf32> to vector<32x1xf32>
    %374 = arith.mulf %371, %371 : vector<32x256xf32>
    %cst_130 = arith.constant dense<0.000000e+00> : vector<32xf32>
    %375 = vector.multi_reduction <add>, %374, %cst_130 [1] : vector<32x256xf32> to vector<32xf32>
    %376 = vector.shape_cast %375 : vector<32xf32> to vector<32x1xf32>
    %cst_131 = arith.constant 3.906250e-03 : f32
    %377 = vector.broadcast %cst_131 : f32 to vector<32x1xf32>
    %378 = arith.mulf %373, %377 : vector<32x1xf32>
    %cst_132 = arith.constant 3.906250e-03 : f32
    %379 = vector.broadcast %cst_132 : f32 to vector<32x1xf32>
    %380 = arith.mulf %376, %379 : vector<32x1xf32>
    %381 = arith.mulf %378, %378 : vector<32x1xf32>
    %382 = arith.subf %380, %381 : vector<32x1xf32>
    %383 = vector.broadcast %378 : vector<32x1xf32> to vector<32x256xf32>
    %384 = arith.subf %371, %383 : vector<32x256xf32>
    %cst_133 = arith.constant 9.99999974E-6 : f32
    %385 = vector.broadcast %cst_133 : f32 to vector<32x1xf32>
    %386 = arith.addf %382, %385 : vector<32x1xf32>
    %387 = math.rsqrt %386 : vector<32x1xf32>
    %388 = vector.broadcast %387 : vector<32x1xf32> to vector<32x256xf32>
    %389 = arith.mulf %384, %388 : vector<32x256xf32>
    %390 = vector.broadcast %0 : vector<1x256xf32> to vector<32x256xf32>
    %391 = arith.mulf %389, %390 : vector<32x256xf32>
    %392 = vector.broadcast %1 : vector<1x256xf32> to vector<32x256xf32>
    %393 = arith.addf %391, %392 : vector<32x256xf32>
    %394 = tpu.concatenate %370, %393 in 1 : vector<32x256xf32>, vector<32x256xf32> -> vector<32x512xf32>
    %cst_134 = arith.constant 0.00999999977 : f32
    %395 = vector.broadcast %cst_134 : f32 to vector<32x512xf32>
    %396 = arith.mulf %395, %394 : vector<32x512xf32>
    %397 = arith.maximumf %394, %396 : vector<32x512xf32>
    %c1_135 = arith.constant 1 : index
    %398 = memref.load %arg1[%c1_135] : memref<2xf32, #tpu.memory_space<smem>>
    %399 = vector.broadcast %398 : f32 to vector<32x512xf32>
    %400 = arith.mulf %399, %397 : vector<32x512xf32>
    %401 = arith.addf %338, %400 : vector<32x512xf32>
    %c200 = arith.constant 200 : index
    %c0_136 = arith.constant 0 : index
    %402 = vector.load %arg2[%c200, %c0_136] : memref<232x32xf32, #tpu.memory_space<vmem>>, vector<32x32xf32>
    %cst_137 = arith.constant dense<0.000000e+00> : vector<32x512xf32>
    %403 = tpu.matmul %402, %401, %cst_137 {dimension_numbers = #tpu.dot_dimension_numbers<[1], [0], [0], [1], [0, 0, 1, 1], [], []>} : vector<32x32xf32>, vector<32x512xf32>, vector<32x512xf32> -> vector<32x512xf32>
    %c8_138 = arith.constant 8 : index
    %c6 = arith.constant 6 : index
    %404 = vector.load %arg3[%c8_138, %c6] : memref<48x256xf32, #tpu.memory_space<vmem>>, vector<32x1xf32>
    %405 = vector.broadcast %404 : vector<32x1xf32> to vector<32x512xf32>
    %406 = arith.addf %403, %405 : vector<32x512xf32>
    %cst_139 = arith.constant 0.00999999977 : f32
    %407 = vector.broadcast %cst_139 : f32 to vector<32x512xf32>
    %408 = arith.mulf %407, %406 : vector<32x512xf32>
    %409 = arith.maximumf %406, %408 : vector<32x512xf32>
    %c64_140 = arith.constant 64 : index
    %c0_141 = arith.constant 0 : index
    %410 = vector.load %arg2[%c64_140, %c0_141] : memref<232x32xf32, #tpu.memory_space<vmem>>, vector<8x32xf32>
    %cst_142 = arith.constant dense<0.000000e+00> : vector<8x512xf32>
    %411 = tpu.matmul %410, %409, %cst_142 {dimension_numbers = #tpu.dot_dimension_numbers<[1], [0], [0], [1], [0, 0, 1, 1], [], []>} : vector<8x32xf32>, vector<32x512xf32>, vector<8x512xf32> -> vector<8x512xf32>
    %c8_143 = arith.constant 8 : index
    %c2_144 = arith.constant 2 : index
    %412 = vector.load %arg3[%c8_143, %c2_144] : memref<48x256xf32, #tpu.memory_space<vmem>>, vector<8x1xf32>
    %413 = vector.broadcast %412 : vector<8x1xf32> to vector<8x512xf32>
    %414 = arith.addf %411, %413 : vector<8x512xf32>
    %415 = vector.extract_strided_slice %414 {offsets = [0, 0], sizes = [8, 256], strides = [1, 1]} : vector<8x512xf32> to vector<8x256xf32>
    %cst_145 = arith.constant dense<0.000000e+00> : vector<8xf32>
    %416 = vector.multi_reduction <add>, %415, %cst_145 [1] : vector<8x256xf32> to vector<8xf32>
    %417 = vector.shape_cast %416 : vector<8xf32> to vector<8x1xf32>
    %418 = arith.mulf %415, %415 : vector<8x256xf32>
    %cst_146 = arith.constant dense<0.000000e+00> : vector<8xf32>
    %419 = vector.multi_reduction <add>, %418, %cst_146 [1] : vector<8x256xf32> to vector<8xf32>
    %420 = vector.shape_cast %419 : vector<8xf32> to vector<8x1xf32>
    %cst_147 = arith.constant 3.906250e-03 : f32
    %421 = vector.broadcast %cst_147 : f32 to vector<8x1xf32>
    %422 = arith.mulf %417, %421 : vector<8x1xf32>
    %cst_148 = arith.constant 3.906250e-03 : f32
    %423 = vector.broadcast %cst_148 : f32 to vector<8x1xf32>
    %424 = arith.mulf %420, %423 : vector<8x1xf32>
    %425 = arith.mulf %422, %422 : vector<8x1xf32>
    %426 = arith.subf %424, %425 : vector<8x1xf32>
    %427 = vector.broadcast %422 : vector<8x1xf32> to vector<8x256xf32>
    %428 = arith.subf %415, %427 : vector<8x256xf32>
    %cst_149 = arith.constant 9.99999974E-6 : f32
    %429 = vector.broadcast %cst_149 : f32 to vector<8x1xf32>
    %430 = arith.addf %426, %429 : vector<8x1xf32>
    %431 = math.rsqrt %430 : vector<8x1xf32>
    %432 = vector.broadcast %431 : vector<8x1xf32> to vector<8x256xf32>
    %433 = arith.mulf %428, %432 : vector<8x256xf32>
    %434 = vector.broadcast %2 : vector<1x256xf32> to vector<8x256xf32>
    %435 = arith.mulf %433, %434 : vector<8x256xf32>
    %436 = vector.broadcast %3 : vector<1x256xf32> to vector<8x256xf32>
    %437 = arith.addf %435, %436 : vector<8x256xf32>
    %438 = vector.extract_strided_slice %414 {offsets = [0, 256], sizes = [8, 256], strides = [1, 1]} : vector<8x512xf32> to vector<8x256xf32>
    %cst_150 = arith.constant dense<0.000000e+00> : vector<8xf32>
    %439 = vector.multi_reduction <add>, %438, %cst_150 [1] : vector<8x256xf32> to vector<8xf32>
    %440 = vector.shape_cast %439 : vector<8xf32> to vector<8x1xf32>
    %441 = arith.mulf %438, %438 : vector<8x256xf32>
    %cst_151 = arith.constant dense<0.000000e+00> : vector<8xf32>
    %442 = vector.multi_reduction <add>, %441, %cst_151 [1] : vector<8x256xf32> to vector<8xf32>
    %443 = vector.shape_cast %442 : vector<8xf32> to vector<8x1xf32>
    %cst_152 = arith.constant 3.906250e-03 : f32
    %444 = vector.broadcast %cst_152 : f32 to vector<8x1xf32>
    %445 = arith.mulf %440, %444 : vector<8x1xf32>
    %cst_153 = arith.constant 3.906250e-03 : f32
    %446 = vector.broadcast %cst_153 : f32 to vector<8x1xf32>
    %447 = arith.mulf %443, %446 : vector<8x1xf32>
    %448 = arith.mulf %445, %445 : vector<8x1xf32>
    %449 = arith.subf %447, %448 : vector<8x1xf32>
    %450 = vector.broadcast %445 : vector<8x1xf32> to vector<8x256xf32>
    %451 = arith.subf %438, %450 : vector<8x256xf32>
    %cst_154 = arith.constant 9.99999974E-6 : f32
    %452 = vector.broadcast %cst_154 : f32 to vector<8x1xf32>
    %453 = arith.addf %449, %452 : vector<8x1xf32>
    %454 = math.rsqrt %453 : vector<8x1xf32>
    %455 = vector.broadcast %454 : vector<8x1xf32> to vector<8x256xf32>
    %456 = arith.mulf %451, %455 : vector<8x256xf32>
    %457 = vector.broadcast %2 : vector<1x256xf32> to vector<8x256xf32>
    %458 = arith.mulf %456, %457 : vector<8x256xf32>
    %459 = vector.broadcast %3 : vector<1x256xf32> to vector<8x256xf32>
    %460 = arith.addf %458, %459 : vector<8x256xf32>
    %461 = tpu.concatenate %437, %460 in 1 : vector<8x256xf32>, vector<8x256xf32> -> vector<8x512xf32>
    %cst_155 = arith.constant 0.00999999977 : f32
    %462 = vector.broadcast %cst_155 : f32 to vector<8x512xf32>
    %463 = arith.mulf %462, %461 : vector<8x512xf32>
    %464 = arith.maximumf %461, %463 : vector<8x512xf32>
    %465 = vector.extract_strided_slice %464 {offsets = [0, 0], sizes = [8, 256], strides = [1, 1]} : vector<8x512xf32> to vector<8x256xf32>
    %c0_156 = arith.constant 0 : index
    %c2_157 = arith.constant 2 : index
    %c0_158 = arith.constant 0 : index
    %c0_159 = arith.constant 0 : index
    %466 = vector.load %arg4[%c0_156, %c2_157, %c0_158, %c0_159] : memref<2x3x8x256xf32, #tpu.memory_space<vmem>>, vector<1x1x8x256xf32>
    %467 = vector.shape_cast %466 : vector<1x1x8x256xf32> to vector<8x256xf32>
    %468 = vector.shape_cast %465 : vector<8x256xf32> to vector<1x1x8x256xf32>
    tpu.vector_store %arg4[%c0_156, %c2_157, %c0_158, %c0_159], %468 {strides = array<i32>} : memref<2x3x8x256xf32, #tpu.memory_space<vmem>>, vector<1x1x8x256xf32>,
    %469 = vector.extract_strided_slice %464 {offsets = [0, 256], sizes = [8, 256], strides = [1, 1]} : vector<8x512xf32> to vector<8x256xf32>
    %c1_160 = arith.constant 1 : index
    %c2_161 = arith.constant 2 : index
    %c0_162 = arith.constant 0 : index
    %c0_163 = arith.constant 0 : index
    %470 = vector.load %arg4[%c1_160, %c2_161, %c0_162, %c0_163] : memref<2x3x8x256xf32, #tpu.memory_space<vmem>>, vector<1x1x8x256xf32>
    %471 = vector.shape_cast %470 : vector<1x1x8x256xf32> to vector<8x256xf32>
    %472 = vector.shape_cast %469 : vector<8x256xf32> to vector<1x1x8x256xf32>
    tpu.vector_store %arg4[%c1_160, %c2_161, %c0_162, %c0_163], %472 {strides = array<i32>} : memref<2x3x8x256xf32, #tpu.memory_space<vmem>>, vector<1x1x8x256xf32>,
    return
  }
}

</mosaic_0001>

<llo_original>
// kernel: network_forward.1
$region0: #{network_forward.1}
  #allocation0 [shape = 'u32[]', space=smem, size = 0x4, offset = 0x4, fixed_abs, tag = 'smem constant byte address 0x4 - core index']
  #allocation1 [shape = 'u32[144,128]{1,0:T(1,128)}', space=vmem, size = 0x12000, scoped, tag = 'internal scratch']
  %s0 = inlined_call_operand.vmem [shape: f32[2,4,256], index: 0, kind: input, shape index: {}]
  %s1 = inlined_call_operand.vmem [shape: f32[2], index: 1, kind: input, shape index: {}]
  %s2 = inlined_call_operand.vmem [shape: f32[232,32], index: 2, kind: input, shape index: {}]
  %s3 = inlined_call_operand.vmem [shape: f32[48,256], index: 3, kind: input, shape index: {}]
  %s4 = inlined_call_operand.vmem [shape: f32[2,3,8,256], index: 4, kind: output, shape index: {}]
  %s5 = sld [smem:[#allocation0]]
  $region30: #{network_forward.1} parent=0
    _
  %s7 = ssub.s32 1, %s5
  %s8 = scalar_select 0, %s7, %s5
  $region1: #{network_forward.1} parent=0
    #allocation2 [shape = 'u8[512]{0}', space=smem, size = 0x200, scoped, tag = 'input window, operand 1, single buffered']
    #allocation3 [shape = 's32[1]{0}', space=sflag, size = 0x4, scoped, tag = 'scoped memory for network_forward.1']
    %9 = vsyncpa [#allocation3], 0
    // Predicated region
    $region2: #{network_forward.1} parent=1 // pred_check
      _
    $region3: #{network_forward.1} parent=1 // pred_check_branch
      %11 = sbr.rel (0) target = $region5
    $region4: #{network_forward.1} parent=1 // pred_region
      _
    $region5: #{network_forward.1} parent=1 // pred_fallthru
      _
    // Predicated region
    $region6: #{network_forward.1} parent=1 // pred_check
      _
    $region7: #{network_forward.1} parent=1 // pred_check_branch
      %13 = sbr.rel (0) target = $region9
    $region8: #{network_forward.1} parent=1 // pred_region
      %s15 = ssub.s32 16, 16
      %16 = vsyncadd [#allocation3], %s15
      %s18 = sshll.u32 %s1, 4
      %s19 = int_to_ptr.vmem [resolvable:$true] %s18
      %21 = dma.vmem_to_smem %s19, 16, [#allocation2], [#allocation3]
    $region9: #{network_forward.1} parent=1 // pred_fallthru
      _
    // Predicated region
    $region10: #{network_forward.1} parent=1 // pred_check
      _
    $region11: #{network_forward.1} parent=1 // pred_check_branch
      %23 = sbr.rel (0) target = $region13
    $region12: #{network_forward.1} parent=1 // pred_region
      _
    $region13: #{network_forward.1} parent=1 // pred_fallthru
      _
    // Predicated region
    $region14: #{network_forward.1} parent=1 // pred_check
      _
    $region15: #{network_forward.1} parent=1 // pred_check_branch
      %25 = sbr.rel (0) target = $region17
    $region16: #{network_forward.1} parent=1 // pred_region
      _
    $region17: #{network_forward.1} parent=1 // pred_fallthru
      _
    // Predicated region
    $region18: #{network_forward.1} parent=1 // pred_check
      _
    $region19: #{network_forward.1} parent=1 // pred_check_branch
      %27 = sbr.rel (0) target = $region21
    $region20: #{network_forward.1} parent=1 // pred_region
      %28 = dma.done [#allocation3], 16
    $region21: #{network_forward.1} parent=1 // pred_fallthru
      _
    %29 = sfence
    %v30 = vld [vmem:[%s3] ss:$8 sm:$0x3]
    %s31 = scalar_lea.vmem %s3, 1
    %v32 = vld [vmem:[%s31] ss:$8 sm:$0x3]
    %s33 = scalar_lea.vmem %s3, 2
    %v34 = vld [vmem:[%s33] ss:$8 sm:$0x3]
    %s35 = scalar_lea.vmem %s3, 3
    %v36 = vld [vmem:[%s35] ss:$8 sm:$0x3]
    %s37 = scalar_lea.vmem %s3, 4
    %v38 = vld [vmem:[%s37] ss:$8 sm:$0x3]
    %s39 = scalar_lea.vmem %s3, 5
    %v40 = vld [vmem:[%s39] ss:$8 sm:$0x3]
    %v41 = vld [vmem:[%s2] sm:$0xff]
    %v42 = vld [vmem:[%s2 + $0x8] sm:$0xff]
    %v43 = vld [vmem:[%s2 + $0x10] sm:$0xff]
    %v44 = vld [vmem:[%s2 + $0x18] sm:$0xff]
    %v45 = vld [vmem:[%s3 + $0x10] sm:$0xff]
    %v46 = vld [vmem:[%s3 + $0x20] sm:$0xff]
    %v47 = vld [vmem:[%s3 + $0x30] sm:$0xff]
    %v48 = vld [vmem:[%s3 + $0x40] sm:$0xff]
    %v49 = vld [vmem:[%s0] sm:$0xff]
    %51 = vset.pattern.permute.xlu0 0
    %52 = vperm.xlu0 %51, %v45
    %v53 = vpop.permute.xlu0 %52
    %56 = vset.pattern.permute.xlu0 0
    %57 = vperm.xlu0 %56, %v46
    %v58 = vpop.permute.xlu0 %57
    %61 = vset.pattern.permute.xlu0 0
    %62 = vperm.xlu0 %61, %v47
    %v63 = vpop.permute.xlu0 %62
    %66 = vset.pattern.permute.xlu0 0
    %67 = vperm.xlu0 %66, %v48
    %v68 = vpop.permute.xlu0 %67
    %v71 = vcombine.high %v49, %v49
    %vm72 = vcmask 31744
    %v74 = vsel %vm72, %v41, 0
    %v77 = vsel %vm72, %v42, 0
    %v80 = vsel %vm72, %v43, 0
    %v83 = vsel %vm72, %v44, 0
    %vm85 = vcmask 1043456
    %v86 = vsel %vm85, %v49, 0
    %v88 = vsel %vm85, %v71, 0
    %90 = vmatprep.subr.mxu0 0.0
    %91 = vmatpush1.msra.mxu0 0.0
    %92 = vmatprep.subr.mxu0 0.0
    %93 = vmatpush1.msra.mxu0 0.0
    %94 = vmatprep.subr.mxu0 0.0
    %95 = vmatpush1.msra.mxu0 0.0
    %96 = vmatprep.subr.mxu0 0.0
    %97 = vmatpush1.msra.mxu0 0.0
    %98 = vmatprep.subr.mxu0 0.0
    %99 = vmatpush1.msra.mxu0 0.0
    %100 = vmatprep.subr.mxu0 0.0
    %101 = vmatpush1.msra.mxu0 0.0
    %102 = vmatprep.subr.mxu0 0.0
    %103 = vmatpush1.msra.mxu0 0.0
    %104 = vmatprep.subr.mxu0 0.0
    %105 = vmatpush1.msra.mxu0 0.0
    %106 = vmatprep.subr.mxu0 0.0
    %107 = vmatpush1.msra.mxu0 0.0
    %108 = vmatprep.subr.mxu0 0.0
    %109 = vmatpush1.msra.mxu0 0.0
    %110 = vmatprep.subr.mxu0 0.0
    %111 = vmatpush1.msra.mxu0 0.0
    %112 = vmatprep.subr.mxu0 0.0
    %113 = vmatpush1.msra.mxu0 0.0
    %114 = vmatprep.subr.mxu0 0.0
    %115 = vmatpush1.msra.mxu0 0.0
    %116 = vmatprep.subr.mxu0 0.0
    %117 = vmatpush1.msra.mxu0 0.0
    %118 = vmatprep.subr.mxu0 0.0
    %119 = vmatpush1.msra.mxu0 0.0
    %120 = vmatprep.subr.mxu0 %v88
    %121 = vmatpush1.msra.mxu0 %v86
    %122 = vmatprep.subr.mxu0 0.0
    %123 = vmatpush2.msra.mxu0 0.0
    %124 = vmatprep.subr.mxu0 0.0
    %125 = vmatpush2.msra.mxu0 0.0
    %126 = vmatprep.subr.mxu0 0.0
    %127 = vmatpush2.msra.mxu0 0.0
    %128 = vmatprep.subr.mxu0 0.0
    %129 = vmatpush2.msra.mxu0 0.0
    %130 = vmatprep.subr.mxu0 0.0
    %131 = vmatpush2.msra.mxu0 0.0
    %132 = vmatprep.subr.mxu0 0.0
    %133 = vmatpush2.msra.mxu0 0.0
    %134 = vmatprep.subr.mxu0 0.0
    %135 = vmatpush2.msra.mxu0 0.0
    %136 = vmatprep.subr.mxu0 0.0
    %137 = vmatpush2.msra.mxu0 0.0
    %138 = vmatprep.subr.mxu0 0.0
    %139 = vmatpush2.msra.mxu0 0.0
    %140 = vmatprep.subr.mxu0 0.0
    %141 = vmatpush2.msra.mxu0 0.0
    %142 = vmatprep.subr.mxu0 0.0
    %143 = vmatpush2.msra.mxu0 0.0
    %144 = vmatprep.subr.mxu0 0.0
    %145 = vmatpush2.msra.mxu0 0.0
    %146 = vmatprep.subr.mxu0 0.0
    %147 = vmatpush2.msra.mxu0 0.0
    %148 = vmatprep.subr.mxu0 0.0
    %149 = vmatpush2.msra.mxu0 0.0
    %150 = vmatprep.subr.mxu0 0.0
    %151 = vmatpush2.msra.mxu0 0.0
    %152 = vmatprep.subr.mxu0 0.0
    %153 = vmatpush2.msra.mxu0 0.0
    %154 = vmatprep.mubr.f32.mxu0 0.0
    %155 = vmatmul.mubr.f32.gmra.mxu0 %v74
    %v156 = vpop.f32.mrf.mxu0
    %v157 = vadd.f32 %v53, %v156
    %v158 = vpop.f32.mrf.mxu0
    %v159 = vadd.f32 %v53, %v158
    %160 = vmatprep.mubr.f32.mxu0 0.0
    %161 = vmatmul.mubr.f32.gmra.mxu0 %v77
    %v162 = vpop.f32.mrf.mxu0
    %v163 = vadd.f32 %v58, %v162
    %v164 = vpop.f32.mrf.mxu0
    %v165 = vadd.f32 %v58, %v164
    %166 = vmatprep.mubr.f32.mxu0 0.0
    %167 = vmatmul.mubr.f32.gmra.mxu0 %v80
    %v168 = vpop.f32.mrf.mxu0
    %v169 = vadd.f32 %v63, %v168
    %v170 = vpop.f32.mrf.mxu0
    %v171 = vadd.f32 %v63, %v170
    %172 = vmatprep.mubr.f32.mxu0 0.0
    %173 = vmatmul.mubr.f32.gmra.mxu0 %v83
    %v174 = vpop.f32.mrf.mxu0
    %v175 = vadd.f32 %v68, %v174
    %v176 = vpop.f32.mrf.mxu0
    %v177 = vadd.f32 %v68, %v176
    %178 = vdwg.mxu0
    %v179 = vmul.f32 %v157, 0.01
    %v180 = vmul.f32 %v159, 0.01
    %v181 = vmul.f32 %v163, 0.01
    %v182 = vmul.f32 %v165, 0.01
    %v183 = vmul.f32 %v169, 0.01
    %v184 = vmul.f32 %v171, 0.01
    %v185 = vmul.f32 %v175, 0.01
    %v186 = vmul.f32 %v177, 0.01
    %v187 = vmax.f32 %v157, %v179
    %v188 = vmax.f32 %v159, %v180
    %v189 = vmax.f32 %v163, %v181
    %v190 = vmax.f32 %v165, %v182
    %v191 = vmax.f32 %v169, %v183
    %v192 = vmax.f32 %v171, %v184
    %v193 = vmax.f32 %v175, %v185
    %v194 = vmax.f32 %v177, %v186
    %s195 = scalar_lea.vmem %s0, 8
    %v196 = vld [vmem:[%s195] sm:$0xff]
    %v198 = vcombine.high %v196, %v196
    %v199 = vsel %vm85, %v196, 0
    %v201 = vsel %vm85, %v198, 0
    %203 = vmatprep.subr.mxu0 0.0
    %204 = vmatpush1.msra.mxu0 0.0
    %205 = vmatprep.subr.mxu0 0.0
    %206 = vmatpush1.msra.mxu0 0.0
    %207 = vmatprep.subr.mxu0 0.0
    %208 = vmatpush1.msra.mxu0 0.0
    %209 = vmatprep.subr.mxu0 0.0
    %210 = vmatpush1.msra.mxu0 0.0
    %211 = vmatprep.subr.mxu0 0.0
    %212 = vmatpush1.msra.mxu0 0.0
    %213 = vmatprep.subr.mxu0 0.0
    %214 = vmatpush1.msra.mxu0 0.0
    %215 = vmatprep.subr.mxu0 0.0
    %216 = vmatpush1.msra.mxu0 0.0
    %217 = vmatprep.subr.mxu0 0.0
    %218 = vmatpush1.msra.mxu0 0.0
    %219 = vmatprep.subr.mxu0 0.0
    %220 = vmatpush1.msra.mxu0 0.0
    %221 = vmatprep.subr.mxu0 0.0
    %222 = vmatpush1.msra.mxu0 0.0
    %223 = vmatprep.subr.mxu0 0.0
    %224 = vmatpush1.msra.mxu0 0.0
    %225 = vmatprep.subr.mxu0 0.0
    %226 = vmatpush1.msra.mxu0 0.0
    %227 = vmatprep.subr.mxu0 0.0
    %228 = vmatpush1.msra.mxu0 0.0
    %229 = vmatprep.subr.mxu0 0.0
    %230 = vmatpush1.msra.mxu0 0.0
    %231 = vmatprep.subr.mxu0 0.0
    %232 = vmatpush1.msra.mxu0 0.0
    %233 = vmatprep.subr.mxu0 %v201
    %234 = vmatpush1.msra.mxu0 %v199
    %235 = vmatprep.subr.mxu0 0.0
    %236 = vmatpush2.msra.mxu0 0.0
    %237 = vmatprep.subr.mxu0 0.0
    %238 = vmatpush2.msra.mxu0 0.0
    %239 = vmatprep.subr.mxu0 0.0
    %240 = vmatpush2.msra.mxu0 0.0
    %241 = vmatprep.subr.mxu0 0.0
    %242 = vmatpush2.msra.mxu0 0.0
    %243 = vmatprep.subr.mxu0 0.0
    %244 = vmatpush2.msra.mxu0 0.0
    %245 = vmatprep.subr.mxu0 0.0
    %246 = vmatpush2.msra.mxu0 0.0
    %247 = vmatprep.subr.mxu0 0.0
    %248 = vmatpush2.msra.mxu0 0.0
    %249 = vmatprep.subr.mxu0 0.0
    %250 = vmatpush2.msra.mxu0 0.0
    %251 = vmatprep.subr.mxu0 0.0
    %252 = vmatpush2.msra.mxu0 0.0
    %253 = vmatprep.subr.mxu0 0.0
    %254 = vmatpush2.msra.mxu0 0.0
    %255 = vmatprep.subr.mxu0 0.0
    %256 = vmatpush2.msra.mxu0 0.0
    %257 = vmatprep.subr.mxu0 0.0
    %258 = vmatpush2.msra.mxu0 0.0
    %259 = vmatprep.subr.mxu0 0.0
    %260 = vmatpush2.msra.mxu0 0.0
    %261 = vmatprep.subr.mxu0 0.0
    %262 = vmatpush2.msra.mxu0 0.0
    %263 = vmatprep.subr.mxu0 0.0
    %264 = vmatpush2.msra.mxu0 0.0
    %265 = vmatprep.subr.mxu0 0.0
    %266 = vmatpush2.msra.mxu0 0.0
    %267 = vmatprep.mubr.f32.mxu0 0.0
    %268 = vmatmul.mubr.f32.gmra.mxu0 %v74
    %v269 = vpop.f32.mrf.mxu0
    %v270 = vadd.f32 %v53, %v269
    %v271 = vpop.f32.mrf.mxu0
    %v272 = vadd.f32 %v53, %v271
    %273 = vmatprep.mubr.f32.mxu0 0.0
    %274 = vmatmul.mubr.f32.gmra.mxu0 %v77
    %v275 = vpop.f32.mrf.mxu0
    %v276 = vadd.f32 %v58, %v275
    %v277 = vpop.f32.mrf.mxu0
    %v278 = vadd.f32 %v58, %v277
    %279 = vmatprep.mubr.f32.mxu0 0.0
    %280 = vmatmul.mubr.f32.gmra.mxu0 %v80
    %v281 = vpop.f32.mrf.mxu0
    %v282 = vadd.f32 %v63, %v281
    %v283 = vpop.f32.mrf.mxu0
    %v284 = vadd.f32 %v63, %v283
    %285 = vmatprep.mubr.f32.mxu0 0.0
    %286 = vmatmul.mubr.f32.gmra.mxu0 %v83
    %v287 = vpop.f32.mrf.mxu0
    %v288 = vadd.f32 %v68, %v287
    %v289 = vpop.f32.mrf.mxu0
    %v290 = vadd.f32 %v68, %v289
    %291 = vdwg.mxu0
    %v292 = vmul.f32 %v270, 0.01
    %v293 = vmul.f32 %v272, 0.01
    %v294 = vmul.f32 %v276, 0.01
    %v295 = vmul.f32 %v278, 0.01
    %v296 = vmul.f32 %v282, 0.01
    %v297 = vmul.f32 %v284, 0.01
    %v298 = vmul.f32 %v288, 0.01
    %v299 = vmul.f32 %v290, 0.01
    %v300 = vmax.f32 %v270, %v292
    %v301 = vmax.f32 %v272, %v293
    %v302 = vmax.f32 %v276, %v294
    %v303 = vmax.f32 %v278, %v295
    %v304 = vmax.f32 %v282, %v296
    %v305 = vmax.f32 %v284, %v297
    %v306 = vmax.f32 %v288, %v298
    %v307 = vmax.f32 %v290, %v299
    %v308 = vld [vmem:[%s2 + $0x20] sm:$0xff]
    %v309 = vld [vmem:[%s2 + $0x28] sm:$0xff]
    %v310 = vld [vmem:[%s2 + $0x30] sm:$0xff]
    %v311 = vld [vmem:[%s2 + $0x38] sm:$0xff]
    %v312 = vld [vmem:[%s3 + $0x10] sm:$0xff]
    %v313 = vld [vmem:[%s3 + $0x20] sm:$0xff]
    %v314 = vld [vmem:[%s3 + $0x30] sm:$0xff]
    %v315 = vld [vmem:[%s3 + $0x40] sm:$0xff]
    %317 = vset.pattern.permute.xlu0 1
    %318 = vperm.xlu0 %317, %v312
    %v319 = vpop.permute.xlu0 %318
    %322 = vset.pattern.permute.xlu0 1
    %323 = vperm.xlu0 %322, %v313
    %v324 = vpop.permute.xlu0 %323
    %327 = vset.pattern.permute.xlu0 1
    %328 = vperm.xlu0 %327, %v314
    %v329 = vpop.permute.xlu0 %328
    %332 = vset.pattern.permute.xlu0 1
    %333 = vperm.xlu0 %332, %v315
    %v334 = vpop.permute.xlu0 %333
    %vm336 = vcmask 261120
    %v338 = vsel %vm336, %v308, 0
    %v341 = vsel %vm336, %v309, 0
    %v344 = vsel %vm336, %v310, 0
    %v347 = vsel %vm336, %v311, 0
    %349 = vmatprep.subr.mxu0 0.0
    %350 = vmatpush1.msra.mxu0 0.0
    %351 = vmatprep.subr.mxu0 0.0
    %352 = vmatpush1.msra.mxu0 0.0
    %353 = vmatprep.subr.mxu0 0.0
    %354 = vmatpush1.msra.mxu0 0.0
    %355 = vmatprep.subr.mxu0 0.0
    %356 = vmatpush1.msra.mxu0 0.0
    %357 = vmatprep.subr.mxu0 0.0
    %358 = vmatpush1.msra.mxu0 0.0
    %359 = vmatprep.subr.mxu0 0.0
    %360 = vmatpush1.msra.mxu0 0.0
    %361 = vmatprep.subr.mxu0 0.0
    %362 = vmatpush1.msra.mxu0 0.0
    %363 = vmatprep.subr.mxu0 0.0
    %364 = vmatpush1.msra.mxu0 0.0
    %365 = vmatprep.subr.mxu0 0.0
    %366 = vmatpush1.msra.mxu0 0.0
    %367 = vmatprep.subr.mxu0 0.0
    %368 = vmatpush1.msra.mxu0 0.0
    %369 = vmatprep.subr.mxu0 0.0
    %370 = vmatpush1.msra.mxu0 0.0
    %371 = vmatprep.subr.mxu0 0.0
    %372 = vmatpush1.msra.mxu0 0.0
    %373 = vmatprep.subr.mxu0 %v194
    %374 = vmatpush1.msra.mxu0 %v193
    %375 = vmatprep.subr.mxu0 %v192
    %376 = vmatpush1.msra.mxu0 %v191
    %377 = vmatprep.subr.mxu0 %v190
    %378 = vmatpush1.msra.mxu0 %v189
    %379 = vmatprep.subr.mxu0 %v188
    %380 = vmatpush1.msra.mxu0 %v187
    %381 = vmatprep.subr.mxu0 0.0
    %382 = vmatpush2.msra.mxu0 0.0
    %383 = vmatprep.subr.mxu0 0.0
    %384 = vmatpush2.msra.mxu0 0.0
    %385 = vmatprep.subr.mxu0 0.0
    %386 = vmatpush2.msra.mxu0 0.0
    %387 = vmatprep.subr.mxu0 0.0
    %388 = vmatpush2.msra.mxu0 0.0
    %389 = vmatprep.subr.mxu0 0.0
    %390 = vmatpush2.msra.mxu0 0.0
    %391 = vmatprep.subr.mxu0 0.0
    %392 = vmatpush2.msra.mxu0 0.0
    %393 = vmatprep.subr.mxu0 0.0
    %394 = vmatpush2.msra.mxu0 0.0
    %395 = vmatprep.subr.mxu0 0.0
    %396 = vmatpush2.msra.mxu0 0.0
    %397 = vmatprep.subr.mxu0 0.0
    %398 = vmatpush2.msra.mxu0 0.0
    %399 = vmatprep.subr.mxu0 0.0
    %400 = vmatpush2.msra.mxu0 0.0
    %401 = vmatprep.subr.mxu0 0.0
    %402 = vmatpush2.msra.mxu0 0.0
    %403 = vmatprep.subr.mxu0 0.0
    %404 = vmatpush2.msra.mxu0 0.0
    %405 = vmatprep.subr.mxu0 0.0
    %406 = vmatpush2.msra.mxu0 0.0
    %407 = vmatprep.subr.mxu0 0.0
    %408 = vmatpush2.msra.mxu0 0.0
    %409 = vmatprep.subr.mxu0 0.0
    %410 = vmatpush2.msra.mxu0 0.0
    %411 = vmatprep.subr.mxu0 0.0
    %412 = vmatpush2.msra.mxu0 0.0
    %413 = vmatprep.mubr.f32.mxu0 0.0
    %414 = vmatmul.mubr.f32.gmra.mxu0 %v338
    %v415 = vpop.f32.mrf.mxu0
    %v416 = vadd.f32 %v319, %v415
    %v417 = vpop.f32.mrf.mxu0
    %v418 = vadd.f32 %v319, %v417
    %419 = vmatprep.mubr.f32.mxu0 0.0
    %420 = vmatmul.mubr.f32.gmra.mxu0 %v341
    %v421 = vpop.f32.mrf.mxu0
    %v422 = vadd.f32 %v324, %v421
    %v423 = vpop.f32.mrf.mxu0
    %v424 = vadd.f32 %v324, %v423
    %425 = vmatprep.mubr.f32.mxu0 0.0
    %426 = vmatmul.mubr.f32.gmra.mxu0 %v344
    %v427 = vpop.f32.mrf.mxu0
    %v428 = vadd.f32 %v329, %v427
    %v429 = vpop.f32.mrf.mxu0
    %v430 = vadd.f32 %v329, %v429
    %431 = vmatprep.mubr.f32.mxu0 0.0
    %432 = vmatmul.mubr.f32.gmra.mxu0 %v347
    %v433 = vpop.f32.mrf.mxu0
    %v434 = vadd.f32 %v334, %v433
    %v435 = vpop.f32.mrf.mxu0
    %v436 = vadd.f32 %v334, %v435
    %437 = vdwg.mxu0
    %438 = vmatprep.subr.mxu0 0.0
    %439 = vmatpush1.msra.mxu0 0.0
    %440 = vmatprep.subr.mxu0 0.0
    %441 = vmatpush1.msra.mxu0 0.0
    %442 = vmatprep.subr.mxu0 0.0
    %443 = vmatpush1.msra.mxu0 0.0
    %444 = vmatprep.subr.mxu0 0.0
    %445 = vmatpush1.msra.mxu0 0.0
    %446 = vmatprep.subr.mxu0 0.0
    %447 = vmatpush1.msra.mxu0 0.0
    %448 = vmatprep.subr.mxu0 0.0
    %449 = vmatpush1.msra.mxu0 0.0
    %450 = vmatprep.subr.mxu0 0.0
    %451 = vmatpush1.msra.mxu0 0.0
    %452 = vmatprep.subr.mxu0 0.0
    %453 = vmatpush1.msra.mxu0 0.0
    %454 = vmatprep.subr.mxu0 0.0
    %455 = vmatpush1.msra.mxu0 0.0
    %456 = vmatprep.subr.mxu0 0.0
    %457 = vmatpush1.msra.mxu0 0.0
    %458 = vmatprep.subr.mxu0 0.0
    %459 = vmatpush1.msra.mxu0 0.0
    %460 = vmatprep.subr.mxu0 0.0
    %461 = vmatpush1.msra.mxu0 0.0
    %462 = vmatprep.subr.mxu0 %v307
    %463 = vmatpush1.msra.mxu0 %v306
    %464 = vmatprep.subr.mxu0 %v305
    %465 = vmatpush1.msra.mxu0 %v304
    %466 = vmatprep.subr.mxu0 %v303
    %467 = vmatpush1.msra.mxu0 %v302
    %468 = vmatprep.subr.mxu0 %v301
    %469 = vmatpush1.msra.mxu0 %v300
    %470 = vmatprep.subr.mxu0 0.0
    %471 = vmatpush2.msra.mxu0 0.0
    %472 = vmatprep.subr.mxu0 0.0
    %473 = vmatpush2.msra.mxu0 0.0
    %474 = vmatprep.subr.mxu0 0.0
    %475 = vmatpush2.msra.mxu0 0.0
    %476 = vmatprep.subr.mxu0 0.0
    %477 = vmatpush2.msra.mxu0 0.0
    %478 = vmatprep.subr.mxu0 0.0
    %479 = vmatpush2.msra.mxu0 0.0
    %480 = vmatprep.subr.mxu0 0.0
    %481 = vmatpush2.msra.mxu0 0.0
    %482 = vmatprep.subr.mxu0 0.0
    %483 = vmatpush2.msra.mxu0 0.0
    %484 = vmatprep.subr.mxu0 0.0
    %485 = vmatpush2.msra.mxu0 0.0
    %486 = vmatprep.subr.mxu0 0.0
    %487 = vmatpush2.msra.mxu0 0.0
    %488 = vmatprep.subr.mxu0 0.0
    %489 = vmatpush2.msra.mxu0 0.0
    %490 = vmatprep.subr.mxu0 0.0
    %491 = vmatpush2.msra.mxu0 0.0
    %492 = vmatprep.subr.mxu0 0.0
    %493 = vmatpush2.msra.mxu0 0.0
    %494 = vmatprep.subr.mxu0 0.0
    %495 = vmatpush2.msra.mxu0 0.0
    %496 = vmatprep.subr.mxu0 0.0
    %497 = vmatpush2.msra.mxu0 0.0
    %498 = vmatprep.subr.mxu0 0.0
    %499 = vmatpush2.msra.mxu0 0.0
    %500 = vmatprep.subr.mxu0 0.0
    %501 = vmatpush2.msra.mxu0 0.0
    %502 = vmatprep.mubr.f32.mxu0 0.0
    %503 = vmatmul.mubr.f32.gmra.mxu0 %v338
    %v504 = vpop.f32.mrf.mxu0
    %v505 = vadd.f32 %v319, %v504
    %v506 = vpop.f32.mrf.mxu0
    %v507 = vadd.f32 %v319, %v506
    %508 = vmatprep.mubr.f32.mxu0 0.0
    %509 = vmatmul.mubr.f32.gmra.mxu0 %v341
    %v510 = vpop.f32.mrf.mxu0
    %v511 = vadd.f32 %v324, %v510
    %v512 = vpop.f32.mrf.mxu0
    %v513 = vadd.f32 %v324, %v512
    %514 = vmatprep.mubr.f32.mxu0 0.0
    %515 = vmatmul.mubr.f32.gmra.mxu0 %v344
    %v516 = vpop.f32.mrf.mxu0
    %v517 = vadd.f32 %v329, %v516
    %v518 = vpop.f32.mrf.mxu0
    %v519 = vadd.f32 %v329, %v518
    %520 = vmatprep.mubr.f32.mxu0 0.0
    %521 = vmatmul.mubr.f32.gmra.mxu0 %v347
    %v522 = vpop.f32.mrf.mxu0
    %v523 = vadd.f32 %v334, %v522
    %v524 = vpop.f32.mrf.mxu0
    %v525 = vadd.f32 %v334, %v524
    %526 = vdwg.mxu0
    %v527 = vld [vmem:[%s2 + $0x88] sm:$0xff]
    %v528 = vld [vmem:[%s2 + $0x90] sm:$0xff]
    %v529 = vld [vmem:[%s2 + $0x98] sm:$0xff]
    %v530 = vld [vmem:[%s2 + $0xa0] sm:$0xff]
    %531 = vset.pattern.permute.xlu0 4
    %532 = vperm.xlu0 %531, %v312
    %v533 = vpop.permute.xlu0 %532
    %535 = vset.pattern.permute.xlu0 4
    %536 = vperm.xlu0 %535, %v313
    %v537 = vpop.permute.xlu0 %536
    %539 = vset.pattern.permute.xlu0 4
    %540 = vperm.xlu0 %539, %v314
    %v541 = vpop.permute.xlu0 %540
    %543 = vset.pattern.permute.xlu0 4
    %544 = vperm.xlu0 %543, %v315
    %v545 = vpop.permute.xlu0 %544
    %v548 = vsel %vm336, %v527, 0
    %v551 = vsel %vm336, %v528, 0
    %v554 = vsel %vm336, %v529, 0
    %v557 = vsel %vm336, %v530, 0
    %559 = vmatprep.subr.mxu0 0.0
    %560 = vmatpush1.msra.mxu0 0.0
    %561 = vmatprep.subr.mxu0 0.0
    %562 = vmatpush1.msra.mxu0 0.0
    %563 = vmatprep.subr.mxu0 0.0
    %564 = vmatpush1.msra.mxu0 0.0
    %565 = vmatprep.subr.mxu0 0.0
    %566 = vmatpush1.msra.mxu0 0.0
    %567 = vmatprep.subr.mxu0 0.0
    %568 = vmatpush1.msra.mxu0 0.0
    %569 = vmatprep.subr.mxu0 0.0
    %570 = vmatpush1.msra.mxu0 0.0
    %571 = vmatprep.subr.mxu0 0.0
    %572 = vmatpush1.msra.mxu0 0.0
    %573 = vmatprep.subr.mxu0 0.0
    %574 = vmatpush1.msra.mxu0 0.0
    %575 = vmatprep.subr.mxu0 0.0
    %576 = vmatpush1.msra.mxu0 0.0
    %577 = vmatprep.subr.mxu0 0.0
    %578 = vmatpush1.msra.mxu0 0.0
    %579 = vmatprep.subr.mxu0 0.0
    %580 = vmatpush1.msra.mxu0 0.0
    %581 = vmatprep.subr.mxu0 0.0
    %582 = vmatpush1.msra.mxu0 0.0
    %583 = vmatprep.subr.mxu0 %v194
    %584 = vmatpush1.msra.mxu0 %v193
    %585 = vmatprep.subr.mxu0 %v192
    %586 = vmatpush1.msra.mxu0 %v191
    %587 = vmatprep.subr.mxu0 %v190
    %588 = vmatpush1.msra.mxu0 %v189
    %589 = vmatprep.subr.mxu0 %v188
    %590 = vmatpush1.msra.mxu0 %v187
    %591 = vmatprep.subr.mxu0 0.0
    %592 = vmatpush2.msra.mxu0 0.0
    %593 = vmatprep.subr.mxu0 0.0
    %594 = vmatpush2.msra.mxu0 0.0
    %595 = vmatprep.subr.mxu0 0.0
    %596 = vmatpush2.msra.mxu0 0.0
    %597 = vmatprep.subr.mxu0 0.0
    %598 = vmatpush2.msra.mxu0 0.0
    %599 = vmatprep.subr.mxu0 0.0
    %600 = vmatpush2.msra.mxu0 0.0
    %601 = vmatprep.subr.mxu0 0.0
    %602 = vmatpush2.msra.mxu0 0.0
    %603 = vmatprep.subr.mxu0 0.0
    %604 = vmatpush2.msra.mxu0 0.0
    %605 = vmatprep.subr.mxu0 0.0
    %606 = vmatpush2.msra.mxu0 0.0
    %607 = vmatprep.subr.mxu0 0.0
    %608 = vmatpush2.msra.mxu0 0.0
    %609 = vmatprep.subr.mxu0 0.0
    %610 = vmatpush2.msra.mxu0 0.0
    %611 = vmatprep.subr.mxu0 0.0
    %612 = vmatpush2.msra.mxu0 0.0
    %613 = vmatprep.subr.mxu0 0.0
    %614 = vmatpush2.msra.mxu0 0.0
    %615 = vmatprep.subr.mxu0 0.0
    %616 = vmatpush2.msra.mxu0 0.0
    %617 = vmatprep.subr.mxu0 0.0
    %618 = vmatpush2.msra.mxu0 0.0
    %619 = vmatprep.subr.mxu0 0.0
    %620 = vmatpush2.msra.mxu0 0.0
    %621 = vmatprep.subr.mxu0 0.0
    %622 = vmatpush2.msra.mxu0 0.0
    %623 = vmatprep.mubr.f32.mxu0 0.0
    %624 = vmatmul.mubr.f32.gmra.mxu0 %v548
    %v625 = vpop.f32.mrf.mxu0
    %v626 = vadd.f32 %v533, %v625
    %v627 = vpop.f32.mrf.mxu0
    %v628 = vadd.f32 %v533, %v627
    %629 = vmatprep.mubr.f32.mxu0 0.0
    %630 = vmatmul.mubr.f32.gmra.mxu0 %v551
    %v631 = vpop.f32.mrf.mxu0
    %v632 = vadd.f32 %v537, %v631
    %v633 = vpop.f32.mrf.mxu0
    %v634 = vadd.f32 %v537, %v633
    %635 = vmatprep.mubr.f32.mxu0 0.0
    %636 = vmatmul.mubr.f32.gmra.mxu0 %v554
    %v637 = vpop.f32.mrf.mxu0
    %v638 = vadd.f32 %v541, %v637
    %v639 = vpop.f32.mrf.mxu0
    %v640 = vadd.f32 %v541, %v639
    %641 = vmatprep.mubr.f32.mxu0 0.0
    %642 = vmatmul.mubr.f32.gmra.mxu0 %v557
    %v643 = vpop.f32.mrf.mxu0
    %v644 = vadd.f32 %v545, %v643
    %v645 = vpop.f32.mrf.mxu0
    %v646 = vadd.f32 %v545, %v645
    %647 = vdwg.mxu0
    %648 = vmatprep.subr.mxu0 0.0
    %649 = vmatpush1.msra.mxu0 0.0
    %650 = vmatprep.subr.mxu0 0.0
    %651 = vmatpush1.msra.mxu0 0.0
    %652 = vmatprep.subr.mxu0 0.0
    %653 = vmatpush1.msra.mxu0 0.0
    %654 = vmatprep.subr.mxu0 0.0
    %655 = vmatpush1.msra.mxu0 0.0
    %656 = vmatprep.subr.mxu0 0.0
    %657 = vmatpush1.msra.mxu0 0.0
    %658 = vmatprep.subr.mxu0 0.0
    %659 = vmatpush1.msra.mxu0 0.0
    %660 = vmatprep.subr.mxu0 0.0
    %661 = vmatpush1.msra.mxu0 0.0
    %662 = vmatprep.subr.mxu0 0.0
    %663 = vmatpush1.msra.mxu0 0.0
    %664 = vmatprep.subr.mxu0 0.0
    %665 = vmatpush1.msra.mxu0 0.0
    %666 = vmatprep.subr.mxu0 0.0
    %667 = vmatpush1.msra.mxu0 0.0
    %668 = vmatprep.subr.mxu0 0.0
    %669 = vmatpush1.msra.mxu0 0.0
    %670 = vmatprep.subr.mxu0 0.0
    %671 = vmatpush1.msra.mxu0 0.0
    %672 = vmatprep.subr.mxu0 %v307
    %673 = vmatpush1.msra.mxu0 %v306
    %674 = vmatprep.subr.mxu0 %v305
    %675 = vmatpush1.msra.mxu0 %v304
    %676 = vmatprep.subr.mxu0 %v303
    %677 = vmatpush1.msra.mxu0 %v302
    %678 = vmatprep.subr.mxu0 %v301
    %679 = vmatpush1.msra.mxu0 %v300
    %680 = vmatprep.subr.mxu0 0.0
    %681 = vmatpush2.msra.mxu0 0.0
    %682 = vmatprep.subr.mxu0 0.0
    %683 = vmatpush2.msra.mxu0 0.0
    %684 = vmatprep.subr.mxu0 0.0
    %685 = vmatpush2.msra.mxu0 0.0
    %686 = vmatprep.subr.mxu0 0.0
    %687 = vmatpush2.msra.mxu0 0.0
    %688 = vmatprep.subr.mxu0 0.0
    %689 = vmatpush2.msra.mxu0 0.0
    %690 = vmatprep.subr.mxu0 0.0
    %691 = vmatpush2.msra.mxu0 0.0
    %692 = vmatprep.subr.mxu0 0.0
    %693 = vmatpush2.msra.mxu0 0.0
    %694 = vmatprep.subr.mxu0 0.0
    %695 = vmatpush2.msra.mxu0 0.0
    %696 = vmatprep.subr.mxu0 0.0
    %697 = vmatpush2.msra.mxu0 0.0
    %698 = vmatprep.subr.mxu0 0.0
    %699 = vmatpush2.msra.mxu0 0.0
    %700 = vmatprep.subr.mxu0 0.0
    %701 = vmatpush2.msra.mxu0 0.0
    %702 = vmatprep.subr.mxu0 0.0
    %703 = vmatpush2.msra.mxu0 0.0
    %704 = vmatprep.subr.mxu0 0.0
    %705 = vmatpush2.msra.mxu0 0.0
    %706 = vmatprep.subr.mxu0 0.0
    %707 = vmatpush2.msra.mxu0 0.0
    %708 = vmatprep.subr.mxu0 0.0
    %709 = vmatpush2.msra.mxu0 0.0
    %710 = vmatprep.subr.mxu0 0.0
    %711 = vmatpush2.msra.mxu0 0.0
    %712 = vmatprep.mubr.f32.mxu0 0.0
    %713 = vmatmul.mubr.f32.gmra.mxu0 %v548
    %v714 = vpop.f32.mrf.mxu0
    %v715 = vadd.f32 %v533, %v714
    %v716 = vpop.f32.mrf.mxu0
    %v717 = vadd.f32 %v533, %v716
    %718 = vmatprep.mubr.f32.mxu0 0.0
    %719 = vmatmul.mubr.f32.gmra.mxu0 %v551
    %v720 = vpop.f32.mrf.mxu0
    %v721 = vadd.f32 %v537, %v720
    %v722 = vpop.f32.mrf.mxu0
    %v723 = vadd.f32 %v537, %v722
    %724 = vmatprep.mubr.f32.mxu0 0.0
    %725 = vmatmul.mubr.f32.gmra.mxu0 %v554
    %v726 = vpop.f32.mrf.mxu0
    %v727 = vadd.f32 %v541, %v726
    %v728 = vpop.f32.mrf.mxu0
    %v729 = vadd.f32 %v541, %v728
    %730 = vmatprep.mubr.f32.mxu0 0.0
    %731 = vmatmul.mubr.f32.gmra.mxu0 %v557
    %v732 = vpop.f32.mrf.mxu0
    %v733 = vadd.f32 %v545, %v732
    %v734 = vpop.f32.mrf.mxu0
    %v735 = vadd.f32 %v545, %v734
    %736 = vdwg.mxu0
    %v737 = vmul.f32 %v626, 0.01
    %v738 = vmul.f32 %v628, 0.01
    %v739 = vmul.f32 %v715, 0.01
    %v740 = vmul.f32 %v717, 0.01
    %v741 = vmul.f32 %v632, 0.01
    %v742 = vmul.f32 %v634, 0.01
    %v743 = vmul.f32 %v721, 0.01
    %v744 = vmul.f32 %v723, 0.01
    %v745 = vmul.f32 %v638, 0.01
    %v746 = vmul.f32 %v640, 0.01
    %v747 = vmul.f32 %v727, 0.01
    %v748 = vmul.f32 %v729, 0.01
    %v749 = vmul.f32 %v644, 0.01
    %v750 = vmul.f32 %v646, 0.01
    %v751 = vmul.f32 %v733, 0.01
    %v752 = vmul.f32 %v735, 0.01
    %v753 = vmax.f32 %v626, %v737
    %v754 = vmax.f32 %v628, %v738
    %v755 = vmax.f32 %v715, %v739
    %v756 = vmax.f32 %v717, %v740
    %v757 = vmax.f32 %v632, %v741
    %v758 = vmax.f32 %v634, %v742
    %v759 = vmax.f32 %v721, %v743
    %v760 = vmax.f32 %v723, %v744
    %v761 = vmax.f32 %v638, %v745
    %v762 = vmax.f32 %v640, %v746
    %v763 = vmax.f32 %v727, %v747
    %v764 = vmax.f32 %v729, %v748
    %v765 = vmax.f32 %v644, %v749
    %v766 = vmax.f32 %v646, %v750
    %v767 = vmax.f32 %v733, %v751
    %v768 = vmax.f32 %v735, %v752
    %v769 = vld [vmem:[%s2 + $0x40] sm:$0xff]
    %v770 = vld [vmem:[%s2 + $0x48] sm:$0xff]
    %v771 = vld [vmem:[%s2 + $0x50] sm:$0xff]
    %v772 = vld [vmem:[%s2 + $0x58] sm:$0xff]
    %v773 = vld [vmem:[%s2 + $0x60] sm:$0xff]
    %v774 = vld [vmem:[%s3 + $0x10] sm:$0xff]
    %v775 = vld [vmem:[%s3 + $0x20] sm:$0xff]
    %v776 = vld [vmem:[%s3 + $0x30] sm:$0xff]
    %v777 = vld [vmem:[%s3 + $0x40] sm:$0xff]
    %v778 = vld [vmem:[%s3 + $0x50] sm:$0xff]
    %780 = vset.pattern.permute.xlu0 2
    %781 = vperm.xlu0 %780, %v774
    %v782 = vpop.permute.xlu0 %781
    %785 = vset.pattern.permute.xlu0 2
    %786 = vperm.xlu0 %785, %v775
    %v787 = vpop.permute.xlu0 %786
    %790 = vset.pattern.permute.xlu0 2
    %791 = vperm.xlu0 %790, %v776
    %v792 = vpop.permute.xlu0 %791
    %795 = vset.pattern.permute.xlu0 2
    %796 = vperm.xlu0 %795, %v777
    %v797 = vpop.permute.xlu0 %796
    %800 = vset.pattern.permute.xlu0 2
    %801 = vperm.xlu0 %800, %v778
    %v802 = vpop.permute.xlu0 %801
    %v805 = vsel %vm336, %v769, 0
    %v808 = vsel %vm336, %v770, 0
    %v811 = vsel %vm336, %v771, 0
    %v814 = vsel %vm336, %v772, 0
    %v817 = vsel %vm336, %v773, 0
    %819 = vmatprep.subr.mxu0 0.0
    %820 = vmatpush1.msra.mxu0 0.0
    %821 = vmatprep.subr.mxu0 0.0
    %822 = vmatpush1.msra.mxu0 0.0
    %823 = vmatprep.subr.mxu0 0.0
    %824 = vmatpush1.msra.mxu0 0.0
    %825 = vmatprep.subr.mxu0 0.0
    %826 = vmatpush1.msra.mxu0 0.0
    %827 = vmatprep.subr.mxu0 0.0
    %828 = vmatpush1.msra.mxu0 0.0
    %829 = vmatprep.subr.mxu0 0.0
    %830 = vmatpush1.msra.mxu0 0.0
    %831 = vmatprep.subr.mxu0 0.0
    %832 = vmatpush1.msra.mxu0 0.0
    %833 = vmatprep.subr.mxu0 0.0
    %834 = vmatpush1.msra.mxu0 0.0
    %835 = vmatprep.subr.mxu0 0.0
    %836 = vmatpush1.msra.mxu0 0.0
    %837 = vmatprep.subr.mxu0 0.0
    %838 = vmatpush1.msra.mxu0 0.0
    %839 = vmatprep.subr.mxu0 0.0
    %840 = vmatpush1.msra.mxu0 0.0
    %841 = vmatprep.subr.mxu0 0.0
    %842 = vmatpush1.msra.mxu0 0.0
    %843 = vmatprep.subr.mxu0 %v766
    %844 = vmatpush1.msra.mxu0 %v765
    %845 = vmatprep.subr.mxu0 %v762
    %846 = vmatpush1.msra.mxu0 %v761
    %847 = vmatprep.subr.mxu0 %v758
    %848 = vmatpush1.msra.mxu0 %v757
    %849 = vmatprep.subr.mxu0 %v754
    %850 = vmatpush1.msra.mxu0 %v753
    %851 = vmatprep.subr.mxu0 0.0
    %852 = vmatpush2.msra.mxu0 0.0
    %853 = vmatprep.subr.mxu0 0.0
    %854 = vmatpush2.msra.mxu0 0.0
    %855 = vmatprep.subr.mxu0 0.0
    %856 = vmatpush2.msra.mxu0 0.0
    %857 = vmatprep.subr.mxu0 0.0
    %858 = vmatpush2.msra.mxu0 0.0
    %859 = vmatprep.subr.mxu0 0.0
    %860 = vmatpush2.msra.mxu0 0.0
    %861 = vmatprep.subr.mxu0 0.0
    %862 = vmatpush2.msra.mxu0 0.0
    %863 = vmatprep.subr.mxu0 0.0
    %864 = vmatpush2.msra.mxu0 0.0
    %865 = vmatprep.subr.mxu0 0.0
    %866 = vmatpush2.msra.mxu0 0.0
    %867 = vmatprep.subr.mxu0 0.0
    %868 = vmatpush2.msra.mxu0 0.0
    %869 = vmatprep.subr.mxu0 0.0
    %870 = vmatpush2.msra.mxu0 0.0
    %871 = vmatprep.subr.mxu0 0.0
    %872 = vmatpush2.msra.mxu0 0.0
    %873 = vmatprep.subr.mxu0 0.0
    %874 = vmatpush2.msra.mxu0 0.0
    %875 = vmatprep.subr.mxu0 0.0
    %876 = vmatpush2.msra.mxu0 0.0
    %877 = vmatprep.subr.mxu0 0.0
    %878 = vmatpush2.msra.mxu0 0.0
    %879 = vmatprep.subr.mxu0 0.0
    %880 = vmatpush2.msra.mxu0 0.0
    %881 = vmatprep.subr.mxu0 0.0
    %882 = vmatpush2.msra.mxu0 0.0
    %883 = vmatprep.mubr.f32.mxu0 0.0
    %884 = vmatmul.mubr.f32.gmra.mxu0 %v805
    %v885 = vpop.f32.mrf.mxu0
    %v886 = vadd.f32 %v782, %v885
    %v887 = vpop.f32.mrf.mxu0
    %v888 = vadd.f32 %v782, %v887
    %889 = vmatprep.mubr.f32.mxu0 0.0
    %890 = vmatmul.mubr.f32.gmra.mxu0 %v808
    %v891 = vpop.f32.mrf.mxu0
    %v892 = vadd.f32 %v787, %v891
    %v893 = vpop.f32.mrf.mxu0
    %v894 = vadd.f32 %v787, %v893
    %895 = vmatprep.mubr.f32.mxu0 0.0
    %896 = vmatmul.mubr.f32.gmra.mxu0 %v811
    %v897 = vpop.f32.mrf.mxu0
    %v898 = vadd.f32 %v792, %v897
    %v899 = vpop.f32.mrf.mxu0
    %v900 = vadd.f32 %v792, %v899
    %901 = vmatprep.mubr.f32.mxu0 0.0
    %902 = vmatmul.mubr.f32.gmra.mxu0 %v814
    %v903 = vpop.f32.mrf.mxu0
    %v904 = vadd.f32 %v797, %v903
    %v905 = vpop.f32.mrf.mxu0
    %v906 = vadd.f32 %v797, %v905
    %907 = vmatprep.mubr.f32.mxu0 0.0
    %908 = vmatmul.mubr.f32.gmra.mxu0 %v817
    %v909 = vpop.f32.mrf.mxu0
    %v910 = vadd.f32 %v802, %v909
    %v911 = vpop.f32.mrf.mxu0
    %v912 = vadd.f32 %v802, %v911
    %913 = vdwg.mxu0
    %914 = vmatprep.subr.mxu0 0.0
    %915 = vmatpush1.msra.mxu0 0.0
    %916 = vmatprep.subr.mxu0 0.0
    %917 = vmatpush1.msra.mxu0 0.0
    %918 = vmatprep.subr.mxu0 0.0
    %919 = vmatpush1.msra.mxu0 0.0
    %920 = vmatprep.subr.mxu0 0.0
    %921 = vmatpush1.msra.mxu0 0.0
    %922 = vmatprep.subr.mxu0 0.0
    %923 = vmatpush1.msra.mxu0 0.0
    %924 = vmatprep.subr.mxu0 0.0
    %925 = vmatpush1.msra.mxu0 0.0
    %926 = vmatprep.subr.mxu0 0.0
    %927 = vmatpush1.msra.mxu0 0.0
    %928 = vmatprep.subr.mxu0 0.0
    %929 = vmatpush1.msra.mxu0 0.0
    %930 = vmatprep.subr.mxu0 0.0
    %931 = vmatpush1.msra.mxu0 0.0
    %932 = vmatprep.subr.mxu0 0.0
    %933 = vmatpush1.msra.mxu0 0.0
    %934 = vmatprep.subr.mxu0 0.0
    %935 = vmatpush1.msra.mxu0 0.0
    %936 = vmatprep.subr.mxu0 0.0
    %937 = vmatpush1.msra.mxu0 0.0
    %938 = vmatprep.subr.mxu0 %v768
    %939 = vmatpush1.msra.mxu0 %v767
    %940 = vmatprep.subr.mxu0 %v764
    %941 = vmatpush1.msra.mxu0 %v763
    %942 = vmatprep.subr.mxu0 %v760
    %943 = vmatpush1.msra.mxu0 %v759
    %944 = vmatprep.subr.mxu0 %v756
    %945 = vmatpush1.msra.mxu0 %v755
    %946 = vmatprep.subr.mxu0 0.0
    %947 = vmatpush2.msra.mxu0 0.0
    %948 = vmatprep.subr.mxu0 0.0
    %949 = vmatpush2.msra.mxu0 0.0
    %950 = vmatprep.subr.mxu0 0.0
    %951 = vmatpush2.msra.mxu0 0.0
    %952 = vmatprep.subr.mxu0 0.0
    %953 = vmatpush2.msra.mxu0 0.0
    %954 = vmatprep.subr.mxu0 0.0
    %955 = vmatpush2.msra.mxu0 0.0
    %956 = vmatprep.subr.mxu0 0.0
    %957 = vmatpush2.msra.mxu0 0.0
    %958 = vmatprep.subr.mxu0 0.0
    %959 = vmatpush2.msra.mxu0 0.0
    %960 = vmatprep.subr.mxu0 0.0
    %961 = vmatpush2.msra.mxu0 0.0
    %962 = vmatprep.subr.mxu0 0.0
    %963 = vmatpush2.msra.mxu0 0.0
    %964 = vmatprep.subr.mxu0 0.0
    %965 = vmatpush2.msra.mxu0 0.0
    %966 = vmatprep.subr.mxu0 0.0
    %967 = vmatpush2.msra.mxu0 0.0
    %968 = vmatprep.subr.mxu0 0.0
    %969 = vmatpush2.msra.mxu0 0.0
    %970 = vmatprep.subr.mxu0 0.0
    %971 = vmatpush2.msra.mxu0 0.0
    %972 = vmatprep.subr.mxu0 0.0
    %973 = vmatpush2.msra.mxu0 0.0
    %974 = vmatprep.subr.mxu0 0.0
    %975 = vmatpush2.msra.mxu0 0.0
    %976 = vmatprep.subr.mxu0 0.0
    %977 = vmatpush2.msra.mxu0 0.0
    %978 = vmatprep.mubr.f32.mxu0 0.0
    %979 = vmatmul.mubr.f32.gmra.mxu0 %v805
    %v980 = vpop.f32.mrf.mxu0
    %v981 = vadd.f32 %v782, %v980
    %v982 = vpop.f32.mrf.mxu0
    %v983 = vadd.f32 %v782, %v982
    %984 = vmatprep.mubr.f32.mxu0 0.0
    %985 = vmatmul.mubr.f32.gmra.mxu0 %v808
    %v986 = vpop.f32.mrf.mxu0
    %v987 = vadd.f32 %v787, %v986
    %v988 = vpop.f32.mrf.mxu0
    %v989 = vadd.f32 %v787, %v988
    %990 = vmatprep.mubr.f32.mxu0 0.0
    %991 = vmatmul.mubr.f32.gmra.mxu0 %v811
    %v992 = vpop.f32.mrf.mxu0
    %v993 = vadd.f32 %v792, %v992
    %v994 = vpop.f32.mrf.mxu0
    %v995 = vadd.f32 %v792, %v994
    %996 = vmatprep.mubr.f32.mxu0 0.0
    %997 = vmatmul.mubr.f32.gmra.mxu0 %v814
    %v998 = vpop.f32.mrf.mxu0
    %v999 = vadd.f32 %v797, %v998
    %v1000 = vpop.f32.mrf.mxu0
    %v1001 = vadd.f32 %v797, %v1000
    %1002 = vmatprep.mubr.f32.mxu0 0.0
    %1003 = vmatmul.mubr.f32.gmra.mxu0 %v817
    %v1004 = vpop.f32.mrf.mxu0
    %v1005 = vadd.f32 %v802, %v1004
    %v1006 = vpop.f32.mrf.mxu0
    %v1007 = vadd.f32 %v802, %v1006
    %1008 = vdwg.mxu0
    %v1009 = vadd.f32 %v886, %v888
    %1010 = vadd.xlane.f32.xlu0 %v1009
    %v1011 = vpop.xlane.xlu0 %1010
    %v1012 = vmul.f32 %v886, %v886
    %v1013 = vmul.f32 %v888, %v888
    %v1014 = vadd.f32 %v1012, %v1013
    %1015 = vadd.xlane.f32.xlu0 %v1014
    %v1016 = vpop.xlane.xlu0 %1015
    %v1017 = vmul.f32 %v1011, 0.00390625
    %v1018 = vmul.f32 %v1016, 0.00390625
    %v1019 = vmul.f32 %v1017, %v1017
    %v1020 = vsub.f32 %v1018, %v1019
    %v1021 = vsub.f32 %v886, %v1017
    %v1022 = vsub.f32 %v888, %v1017
    %v1023 = vadd.f32 %v1020, 1e-05
    %v1024 = vrsqrt.pop %v1023
    %v1025 = vmul.f32 %v1021, %v1024
    %v1026 = vmul.f32 %v1022, %v1024
    %v1028 = vlaneseq
    %v1029 = vshrl.u32 %v1028, 7
    %v1030 = vsub.s32 0, %v1029
    %v1031 = vrot.slane %v34, %v1030
    %v1032 = vlaneseq
    %v1033 = vshrl.u32 %v1032, 7
    %v1034 = vsub.s32 1, %v1033
    %v1035 = vrot.slane %v34, %v1034
    %v1038 = vmul.f32 %v1025, %v1031
    %v1039 = vmul.f32 %v1026, %v1035
    %v1041 = vlaneseq
    %v1042 = vshrl.u32 %v1041, 7
    %v1043 = vsub.s32 0, %v1042
    %v1044 = vrot.slane %v36, %v1043
    %v1045 = vlaneseq
    %v1046 = vshrl.u32 %v1045, 7
    %v1047 = vsub.s32 1, %v1046
    %v1048 = vrot.slane %v36, %v1047
    %v1051 = vadd.f32 %v1038, %v1044
    %v1052 = vadd.f32 %v1039, %v1048
    %v1053 = vadd.f32 %v981, %v983
    %1054 = vadd.xlane.f32.xlu0 %v1053
    %v1055 = vpop.xlane.xlu0 %1054
    %v1056 = vmul.f32 %v981, %v981
    %v1057 = vmul.f32 %v983, %v983
    %v1058 = vadd.f32 %v1056, %v1057
    %1059 = vadd.xlane.f32.xlu0 %v1058
    %v1060 = vpop.xlane.xlu0 %1059
    %v1061 = vmul.f32 %v1055, 0.00390625
    %v1062 = vmul.f32 %v1060, 0.00390625
    %v1063 = vmul.f32 %v1061, %v1061
    %v1064 = vsub.f32 %v1062, %v1063
    %v1065 = vsub.f32 %v981, %v1061
    %v1066 = vsub.f32 %v983, %v1061
    %v1067 = vadd.f32 %v1064, 1e-05
    %v1068 = vrsqrt.pop %v1067
    %v1069 = vmul.f32 %v1065, %v1068
    %v1070 = vmul.f32 %v1066, %v1068
    %v1071 = vmul.f32 %v1069, %v1031
    %v1072 = vmul.f32 %v1070, %v1035
    %v1073 = vadd.f32 %v1071, %v1044
    %v1074 = vadd.f32 %v1072, %v1048
    %v1075 = vmul.f32 %v1051, 0.01
    %v1076 = vmul.f32 %v1052, 0.01
    %v1077 = vmul.f32 %v1073, 0.01
    %v1078 = vmul.f32 %v1074, 0.01
    %v1079 = vmax.f32 %v1051, %v1075
    %v1080 = vmax.f32 %v1052, %v1076
    %v1081 = vmax.f32 %v1073, %v1077
    %v1082 = vmax.f32 %v1074, %v1078
    %s1083 = sld [smem:[#allocation2]]
    %v1084 = vld [vmem:[%s2 + $0x68] sm:$0xff]
    %v1085 = vld [vmem:[%s2 + $0x70] sm:$0xff]
    %v1086 = vld [vmem:[%s2 + $0x78] sm:$0xff]
    %v1087 = vld [vmem:[%s2 + $0x80] sm:$0xff]
    %1088 = vset.pattern.permute.xlu0 3
    %1089 = vperm.xlu0 %1088, %v312
    %v1090 = vpop.permute.xlu0 %1089
    %1092 = vset.pattern.permute.xlu0 3
    %1093 = vperm.xlu0 %1092, %v313
    %v1094 = vpop.permute.xlu0 %1093
    %1096 = vset.pattern.permute.xlu0 3
    %1097 = vperm.xlu0 %1096, %v314
    %v1098 = vpop.permute.xlu0 %1097
    %1100 = vset.pattern.permute.xlu0 3
    %1101 = vperm.xlu0 %1100, %v315
    %v1102 = vpop.permute.xlu0 %1101
    %vm1104 = vcmask 64512
    %v1106 = vsel %vm1104, %v1084, 0
    %v1109 = vsel %vm1104, %v1085, 0
    %v1112 = vsel %vm1104, %v1086, 0
    %v1115 = vsel %vm1104, %v1087, 0
    %1117 = vmatprep.subr.mxu0 0.0
    %1118 = vmatpush1.msra.mxu0 0.0
    %1119 = vmatprep.subr.mxu0 0.0
    %1120 = vmatpush1.msra.mxu0 0.0
    %1121 = vmatprep.subr.mxu0 0.0
    %1122 = vmatpush1.msra.mxu0 0.0
    %1123 = vmatprep.subr.mxu0 0.0
    %1124 = vmatpush1.msra.mxu0 0.0
    %1125 = vmatprep.subr.mxu0 0.0
    %1126 = vmatpush1.msra.mxu0 0.0
    %1127 = vmatprep.subr.mxu0 0.0
    %1128 = vmatpush1.msra.mxu0 0.0
    %1129 = vmatprep.subr.mxu0 0.0
    %1130 = vmatpush1.msra.mxu0 0.0
    %1131 = vmatprep.subr.mxu0 0.0
    %1132 = vmatpush1.msra.mxu0 0.0
    %1133 = vmatprep.subr.mxu0 0.0
    %1134 = vmatpush1.msra.mxu0 0.0
    %1135 = vmatprep.subr.mxu0 0.0
    %1136 = vmatpush1.msra.mxu0 0.0
    %1137 = vmatprep.subr.mxu0 0.0
    %1138 = vmatpush1.msra.mxu0 0.0
    %1139 = vmatprep.subr.mxu0 0.0
    %1140 = vmatpush1.msra.mxu0 0.0
    %1141 = vmatprep.subr.mxu0 0.0
    %1142 = vmatpush1.msra.mxu0 0.0
    %1143 = vmatprep.subr.mxu0 0.0
    %1144 = vmatpush1.msra.mxu0 0.0
    %1145 = vmatprep.subr.mxu0 0.0
    %1146 = vmatpush1.msra.mxu0 0.0
    %1147 = vmatprep.subr.mxu0 %v1080
    %1148 = vmatpush1.msra.mxu0 %v1079
    %1149 = vmatprep.subr.mxu0 0.0
    %1150 = vmatpush2.msra.mxu0 0.0
    %1151 = vmatprep.subr.mxu0 0.0
    %1152 = vmatpush2.msra.mxu0 0.0
    %1153 = vmatprep.subr.mxu0 0.0
    %1154 = vmatpush2.msra.mxu0 0.0
    %1155 = vmatprep.subr.mxu0 0.0
    %1156 = vmatpush2.msra.mxu0 0.0
    %1157 = vmatprep.subr.mxu0 0.0
    %1158 = vmatpush2.msra.mxu0 0.0
    %1159 = vmatprep.subr.mxu0 0.0
    %1160 = vmatpush2.msra.mxu0 0.0
    %1161 = vmatprep.subr.mxu0 0.0
    %1162 = vmatpush2.msra.mxu0 0.0
    %1163 = vmatprep.subr.mxu0 0.0
    %1164 = vmatpush2.msra.mxu0 0.0
    %1165 = vmatprep.subr.mxu0 0.0
    %1166 = vmatpush2.msra.mxu0 0.0
    %1167 = vmatprep.subr.mxu0 0.0
    %1168 = vmatpush2.msra.mxu0 0.0
    %1169 = vmatprep.subr.mxu0 0.0
    %1170 = vmatpush2.msra.mxu0 0.0
    %1171 = vmatprep.subr.mxu0 0.0
    %1172 = vmatpush2.msra.mxu0 0.0
    %1173 = vmatprep.subr.mxu0 0.0
    %1174 = vmatpush2.msra.mxu0 0.0
    %1175 = vmatprep.subr.mxu0 0.0
    %1176 = vmatpush2.msra.mxu0 0.0
    %1177 = vmatprep.subr.mxu0 0.0
    %1178 = vmatpush2.msra.mxu0 0.0
    %1179 = vmatprep.subr.mxu0 0.0
    %1180 = vmatpush2.msra.mxu0 0.0
    %1181 = vmatprep.mubr.f32.mxu0 0.0
    %1182 = vmatmul.mubr.f32.gmra.mxu0 %v1106
    %v1183 = vpop.f32.mrf.mxu0
    %v1184 = vadd.f32 %v1090, %v1183
    %v1185 = vpop.f32.mrf.mxu0
    %v1186 = vadd.f32 %v1090, %v1185
    %1187 = vmatprep.mubr.f32.mxu0 0.0
    %1188 = vmatmul.mubr.f32.gmra.mxu0 %v1109
    %v1189 = vpop.f32.mrf.mxu0
    %v1190 = vadd.f32 %v1094, %v1189
    %v1191 = vpop.f32.mrf.mxu0
    %v1192 = vadd.f32 %v1094, %v1191
    %1193 = vmatprep.mubr.f32.mxu0 0.0
    %1194 = vmatmul.mubr.f32.gmra.mxu0 %v1112
    %v1195 = vpop.f32.mrf.mxu0
    %v1196 = vadd.f32 %v1098, %v1195
    %v1197 = vpop.f32.mrf.mxu0
    %v1198 = vadd.f32 %v1098, %v1197
    %1199 = vmatprep.mubr.f32.mxu0 0.0
    %1200 = vmatmul.mubr.f32.gmra.mxu0 %v1115
    %v1201 = vpop.f32.mrf.mxu0
    %v1202 = vadd.f32 %v1102, %v1201
    %v1203 = vpop.f32.mrf.mxu0
    %v1204 = vadd.f32 %v1102, %v1203
    %1205 = vdwg.mxu0
    %1206 = vmatprep.subr.mxu0 0.0
    %1207 = vmatpush1.msra.mxu0 0.0
    %1208 = vmatprep.subr.mxu0 0.0
    %1209 = vmatpush1.msra.mxu0 0.0
    %1210 = vmatprep.subr.mxu0 0.0
    %1211 = vmatpush1.msra.mxu0 0.0
    %1212 = vmatprep.subr.mxu0 0.0
    %1213 = vmatpush1.msra.mxu0 0.0
    %1214 = vmatprep.subr.mxu0 0.0
    %1215 = vmatpush1.msra.mxu0 0.0
    %1216 = vmatprep.subr.mxu0 0.0
    %1217 = vmatpush1.msra.mxu0 0.0
    %1218 = vmatprep.subr.mxu0 0.0
    %1219 = vmatpush1.msra.mxu0 0.0
    %1220 = vmatprep.subr.mxu0 0.0
    %1221 = vmatpush1.msra.mxu0 0.0
    %1222 = vmatprep.subr.mxu0 0.0
    %1223 = vmatpush1.msra.mxu0 0.0
    %1224 = vmatprep.subr.mxu0 0.0
    %1225 = vmatpush1.msra.mxu0 0.0
    %1226 = vmatprep.subr.mxu0 0.0
    %1227 = vmatpush1.msra.mxu0 0.0
    %1228 = vmatprep.subr.mxu0 0.0
    %1229 = vmatpush1.msra.mxu0 0.0
    %1230 = vmatprep.subr.mxu0 0.0
    %1231 = vmatpush1.msra.mxu0 0.0
    %1232 = vmatprep.subr.mxu0 0.0
    %1233 = vmatpush1.msra.mxu0 0.0
    %1234 = vmatprep.subr.mxu0 0.0
    %1235 = vmatpush1.msra.mxu0 0.0
    %1236 = vmatprep.subr.mxu0 %v1082
    %1237 = vmatpush1.msra.mxu0 %v1081
    %1238 = vmatprep.subr.mxu0 0.0
    %1239 = vmatpush2.msra.mxu0 0.0
    %1240 = vmatprep.subr.mxu0 0.0
    %1241 = vmatpush2.msra.mxu0 0.0
    %1242 = vmatprep.subr.mxu0 0.0
    %1243 = vmatpush2.msra.mxu0 0.0
    %1244 = vmatprep.subr.mxu0 0.0
    %1245 = vmatpush2.msra.mxu0 0.0
    %1246 = vmatprep.subr.mxu0 0.0
    %1247 = vmatpush2.msra.mxu0 0.0
    %1248 = vmatprep.subr.mxu0 0.0
    %1249 = vmatpush2.msra.mxu0 0.0
    %1250 = vmatprep.subr.mxu0 0.0
    %1251 = vmatpush2.msra.mxu0 0.0
    %1252 = vmatprep.subr.mxu0 0.0
    %1253 = vmatpush2.msra.mxu0 0.0
    %1254 = vmatprep.subr.mxu0 0.0
    %1255 = vmatpush2.msra.mxu0 0.0
    %1256 = vmatprep.subr.mxu0 0.0
    %1257 = vmatpush2.msra.mxu0 0.0
    %1258 = vmatprep.subr.mxu0 0.0
    %1259 = vmatpush2.msra.mxu0 0.0
    %1260 = vmatprep.subr.mxu0 0.0
    %1261 = vmatpush2.msra.mxu0 0.0
    %1262 = vmatprep.subr.mxu0 0.0
    %1263 = vmatpush2.msra.mxu0 0.0
    %1264 = vmatprep.subr.mxu0 0.0
    %1265 = vmatpush2.msra.mxu0 0.0
    %1266 = vmatprep.subr.mxu0 0.0
    %1267 = vmatpush2.msra.mxu0 0.0
    %1268 = vmatprep.subr.mxu0 0.0
    %1269 = vmatpush2.msra.mxu0 0.0
    %1270 = vmatprep.mubr.f32.mxu0 0.0
    %1271 = vmatmul.mubr.f32.gmra.mxu0 %v1106
    %v1272 = vpop.f32.mrf.mxu0
    %v1273 = vadd.f32 %v1090, %v1272
    %v1274 = vpop.f32.mrf.mxu0
    %v1275 = vadd.f32 %v1090, %v1274
    %1276 = vmatprep.mubr.f32.mxu0 0.0
    %1277 = vmatmul.mubr.f32.gmra.mxu0 %v1109
    %v1278 = vpop.f32.mrf.mxu0
    %v1279 = vadd.f32 %v1094, %v1278
    %v1280 = vpop.f32.mrf.mxu0
    %v1281 = vadd.f32 %v1094, %v1280
    %1282 = vmatprep.mubr.f32.mxu0 0.0
    %1283 = vmatmul.mubr.f32.gmra.mxu0 %v1112
    %v1284 = vpop.f32.mrf.mxu0
    %v1285 = vadd.f32 %v1098, %v1284
    %v1286 = vpop.f32.mrf.mxu0
    %v1287 = vadd.f32 %v1098, %v1286
    %1288 = vmatprep.mubr.f32.mxu0 0.0
    %1289 = vmatmul.mubr.f32.gmra.mxu0 %v1115
    %v1290 = vpop.f32.mrf.mxu0
    %v1291 = vadd.f32 %v1102, %v1290
    %v1292 = vpop.f32.mrf.mxu0
    %v1293 = vadd.f32 %v1102, %v1292
    %1294 = vdwg.mxu0
    %v1295 = vadd.f32 %v1184, %v1186
    %1296 = vadd.xlane.f32.xlu0 %v1295
    %v1297 = vpop.xlane.xlu0 %1296
    %v1298 = vadd.f32 %v1190, %v1192
    %1299 = vadd.xlane.f32.xlu0 %v1298
    %v1300 = vpop.xlane.xlu0 %1299
    %v1301 = vadd.f32 %v1196, %v1198
    %1302 = vadd.xlane.f32.xlu0 %v1301
    %v1303 = vpop.xlane.xlu0 %1302
    %v1304 = vadd.f32 %v1202, %v1204
    %1305 = vadd.xlane.f32.xlu0 %v1304
    %v1306 = vpop.xlane.xlu0 %1305
    %v1307 = vmul.f32 %v1184, %v1184
    %v1308 = vmul.f32 %v1186, %v1186
    %v1309 = vmul.f32 %v1190, %v1190
    %v1310 = vmul.f32 %v1192, %v1192
    %v1311 = vmul.f32 %v1196, %v1196
    %v1312 = vmul.f32 %v1198, %v1198
    %v1313 = vmul.f32 %v1202, %v1202
    %v1314 = vmul.f32 %v1204, %v1204
    %v1315 = vadd.f32 %v1307, %v1308
    %1316 = vadd.xlane.f32.xlu0 %v1315
    %v1317 = vpop.xlane.xlu0 %1316
    %v1318 = vadd.f32 %v1309, %v1310
    %1319 = vadd.xlane.f32.xlu0 %v1318
    %v1320 = vpop.xlane.xlu0 %1319
    %v1321 = vadd.f32 %v1311, %v1312
    %1322 = vadd.xlane.f32.xlu0 %v1321
    %v1323 = vpop.xlane.xlu0 %1322
    %v1324 = vadd.f32 %v1313, %v1314
    %1325 = vadd.xlane.f32.xlu0 %v1324
    %v1326 = vpop.xlane.xlu0 %1325
    %v1327 = vmul.f32 %v1297, 0.00390625
    %v1328 = vmul.f32 %v1300, 0.00390625
    %v1329 = vmul.f32 %v1303, 0.00390625
    %v1330 = vmul.f32 %v1306, 0.00390625
    %v1331 = vmul.f32 %v1317, 0.00390625
    %v1332 = vmul.f32 %v1320, 0.00390625
    %v1333 = vmul.f32 %v1323, 0.00390625
    %v1334 = vmul.f32 %v1326, 0.00390625
    %v1335 = vmul.f32 %v1327, %v1327
    %v1336 = vmul.f32 %v1328, %v1328
    %v1337 = vmul.f32 %v1329, %v1329
    %v1338 = vmul.f32 %v1330, %v1330
    %v1339 = vsub.f32 %v1331, %v1335
    %v1340 = vsub.f32 %v1332, %v1336
    %v1341 = vsub.f32 %v1333, %v1337
    %v1342 = vsub.f32 %v1334, %v1338
    %v1343 = vsub.f32 %v1184, %v1327
    %v1344 = vsub.f32 %v1186, %v1327
    %v1345 = vsub.f32 %v1190, %v1328
    %v1346 = vsub.f32 %v1192, %v1328
    %v1347 = vsub.f32 %v1196, %v1329
    %v1348 = vsub.f32 %v1198, %v1329
    %v1349 = vsub.f32 %v1202, %v1330
    %v1350 = vsub.f32 %v1204, %v1330
    %v1351 = vadd.f32 %v1339, 1e-05
    %v1352 = vadd.f32 %v1340, 1e-05
    %v1353 = vadd.f32 %v1341, 1e-05
    %v1354 = vadd.f32 %v1342, 1e-05
    %v1355 = vrsqrt.pop %v1351
    %v1356 = vrsqrt.pop %v1352
    %v1357 = vrsqrt.pop %v1353
    %v1358 = vrsqrt.pop %v1354
    %v1359 = vmul.f32 %v1343, %v1355
    %v1360 = vmul.f32 %v1344, %v1355
    %v1361 = vmul.f32 %v1345, %v1356
    %v1362 = vmul.f32 %v1346, %v1356
    %v1363 = vmul.f32 %v1347, %v1357
    %v1364 = vmul.f32 %v1348, %v1357
    %v1365 = vmul.f32 %v1349, %v1358
    %v1366 = vmul.f32 %v1350, %v1358
    %v1368 = vlaneseq
    %v1369 = vshrl.u32 %v1368, 7
    %v1370 = vsub.s32 0, %v1369
    %v1371 = vrot.slane %v38, %v1370
    %v1372 = vlaneseq
    %v1373 = vshrl.u32 %v1372, 7
    %v1374 = vsub.s32 1, %v1373
    %v1375 = vrot.slane %v38, %v1374
    %v1378 = vmul.f32 %v1359, %v1371
    %v1379 = vmul.f32 %v1360, %v1375
    %v1380 = vmul.f32 %v1361, %v1371
    %v1381 = vmul.f32 %v1362, %v1375
    %v1382 = vmul.f32 %v1363, %v1371
    %v1383 = vmul.f32 %v1364, %v1375
    %v1384 = vmul.f32 %v1365, %v1371
    %v1385 = vmul.f32 %v1366, %v1375
    %v1387 = vlaneseq
    %v1388 = vshrl.u32 %v1387, 7
    %v1389 = vsub.s32 0, %v1388
    %v1390 = vrot.slane %v40, %v1389
    %v1391 = vlaneseq
    %v1392 = vshrl.u32 %v1391, 7
    %v1393 = vsub.s32 1, %v1392
    %v1394 = vrot.slane %v40, %v1393
    %v1397 = vadd.f32 %v1378, %v1390
    %v1398 = vadd.f32 %v1379, %v1394
    %v1399 = vadd.f32 %v1380, %v1390
    %v1400 = vadd.f32 %v1381, %v1394
    %v1401 = vadd.f32 %v1382, %v1390
    %v1402 = vadd.f32 %v1383, %v1394
    %v1403 = vadd.f32 %v1384, %v1390
    %v1404 = vadd.f32 %v1385, %v1394
    %v1405 = vadd.f32 %v1273, %v1275
    %1406 = vadd.xlane.f32.xlu0 %v1405
    %v1407 = vpop.xlane.xlu0 %1406
    %v1408 = vadd.f32 %v1279, %v1281
    %1409 = vadd.xlane.f32.xlu0 %v1408
    %v1410 = vpop.xlane.xlu0 %1409
    %v1411 = vadd.f32 %v1285, %v1287
    %1412 = vadd.xlane.f32.xlu0 %v1411
    %v1413 = vpop.xlane.xlu0 %1412
    %v1414 = vadd.f32 %v1291, %v1293
    %1415 = vadd.xlane.f32.xlu0 %v1414
    %v1416 = vpop.xlane.xlu0 %1415
    %v1417 = vmul.f32 %v1273, %v1273
    %v1418 = vmul.f32 %v1275, %v1275
    %v1419 = vmul.f32 %v1279, %v1279
    %v1420 = vmul.f32 %v1281, %v1281
    %v1421 = vmul.f32 %v1285, %v1285
    %v1422 = vmul.f32 %v1287, %v1287
    %v1423 = vmul.f32 %v1291, %v1291
    %v1424 = vmul.f32 %v1293, %v1293
    %v1425 = vadd.f32 %v1417, %v1418
    %1426 = vadd.xlane.f32.xlu0 %v1425
    %v1427 = vpop.xlane.xlu0 %1426
    %v1428 = vadd.f32 %v1419, %v1420
    %1429 = vadd.xlane.f32.xlu0 %v1428
    %v1430 = vpop.xlane.xlu0 %1429
    %v1431 = vadd.f32 %v1421, %v1422
    %1432 = vadd.xlane.f32.xlu0 %v1431
    %v1433 = vpop.xlane.xlu0 %1432
    %v1434 = vadd.f32 %v1423, %v1424
    %1435 = vadd.xlane.f32.xlu0 %v1434
    %v1436 = vpop.xlane.xlu0 %1435
    %v1437 = vmul.f32 %v1407, 0.00390625
    %v1438 = vmul.f32 %v1410, 0.00390625
    %v1439 = vmul.f32 %v1413, 0.00390625
    %v1440 = vmul.f32 %v1416, 0.00390625
    %v1441 = vmul.f32 %v1427, 0.00390625
    %v1442 = vmul.f32 %v1430, 0.00390625
    %v1443 = vmul.f32 %v1433, 0.00390625
    %v1444 = vmul.f32 %v1436, 0.00390625
    %v1445 = vmul.f32 %v1437, %v1437
    %v1446 = vmul.f32 %v1438, %v1438
    %v1447 = vmul.f32 %v1439, %v1439
    %v1448 = vmul.f32 %v1440, %v1440
    %v1449 = vsub.f32 %v1441, %v1445
    %v1450 = vsub.f32 %v1442, %v1446
    %v1451 = vsub.f32 %v1443, %v1447
    %v1452 = vsub.f32 %v1444, %v1448
    %v1453 = vsub.f32 %v1273, %v1437
    %v1454 = vsub.f32 %v1275, %v1437
    %v1455 = vsub.f32 %v1279, %v1438
    %v1456 = vsub.f32 %v1281, %v1438
    %v1457 = vsub.f32 %v1285, %v1439
    %v1458 = vsub.f32 %v1287, %v1439
    %v1459 = vsub.f32 %v1291, %v1440
    %v1460 = vsub.f32 %v1293, %v1440
    %v1461 = vadd.f32 %v1449, 1e-05
    %v1462 = vadd.f32 %v1450, 1e-05
    %v1463 = vadd.f32 %v1451, 1e-05
    %v1464 = vadd.f32 %v1452, 1e-05
    %v1465 = vrsqrt.pop %v1461
    %v1466 = vrsqrt.pop %v1462
    %v1467 = vrsqrt.pop %v1463
    %v1468 = vrsqrt.pop %v1464
    %v1469 = vmul.f32 %v1453, %v1465
    %v1470 = vmul.f32 %v1454, %v1465
    %v1471 = vmul.f32 %v1455, %v1466
    %v1472 = vmul.f32 %v1456, %v1466
    %v1473 = vmul.f32 %v1457, %v1467
    %v1474 = vmul.f32 %v1458, %v1467
    %v1475 = vmul.f32 %v1459, %v1468
    %v1476 = vmul.f32 %v1460, %v1468
    %v1477 = vmul.f32 %v1469, %v1371
    %v1478 = vmul.f32 %v1470, %v1375
    %v1479 = vmul.f32 %v1471, %v1371
    %v1480 = vmul.f32 %v1472, %v1375
    %v1481 = vmul.f32 %v1473, %v1371
    %v1482 = vmul.f32 %v1474, %v1375
    %v1483 = vmul.f32 %v1475, %v1371
    %v1484 = vmul.f32 %v1476, %v1375
    %v1485 = vadd.f32 %v1477, %v1390
    %v1486 = vadd.f32 %v1478, %v1394
    %v1487 = vadd.f32 %v1479, %v1390
    %v1488 = vadd.f32 %v1480, %v1394
    %v1489 = vadd.f32 %v1481, %v1390
    %v1490 = vadd.f32 %v1482, %v1394
    %v1491 = vadd.f32 %v1483, %v1390
    %v1492 = vadd.f32 %v1484, %v1394
    %v1493 = vmul.f32 %v1397, 0.01
    %v1494 = vmul.f32 %v1398, 0.01
    %v1495 = vmul.f32 %v1485, 0.01
    %v1496 = vmul.f32 %v1486, 0.01
    %v1497 = vmul.f32 %v1399, 0.01
    %v1498 = vmul.f32 %v1400, 0.01
    %v1499 = vmul.f32 %v1487, 0.01
    %v1500 = vmul.f32 %v1488, 0.01
    %v1501 = vmul.f32 %v1401, 0.01
    %v1502 = vmul.f32 %v1402, 0.01
    %v1503 = vmul.f32 %v1489, 0.01
    %v1504 = vmul.f32 %v1490, 0.01
    %v1505 = vmul.f32 %v1403, 0.01
    %v1506 = vmul.f32 %v1404, 0.01
    %v1507 = vmul.f32 %v1491, 0.01
    %v1508 = vmul.f32 %v1492, 0.01
    %v1509 = vmax.f32 %v1397, %v1493
    %v1510 = vmax.f32 %v1398, %v1494
    %v1511 = vmax.f32 %v1485, %v1495
    %v1512 = vmax.f32 %v1486, %v1496
    %v1513 = vmax.f32 %v1399, %v1497
    %v1514 = vmax.f32 %v1400, %v1498
    %v1515 = vmax.f32 %v1487, %v1499
    %v1516 = vmax.f32 %v1488, %v1500
    %v1517 = vmax.f32 %v1401, %v1501
    %v1518 = vmax.f32 %v1402, %v1502
    %v1519 = vmax.f32 %v1489, %v1503
    %v1520 = vmax.f32 %v1490, %v1504
    %v1521 = vmax.f32 %v1403, %v1505
    %v1522 = vmax.f32 %v1404, %v1506
    %v1523 = vmax.f32 %v1491, %v1507
    %v1524 = vmax.f32 %v1492, %v1508
    %v1525 = vstv %s1083
    %v1526 = vmul.f32 %v1525, %v1509
    %v1527 = vmul.f32 %v1525, %v1510
    %v1528 = vmul.f32 %v1525, %v1511
    %v1529 = vmul.f32 %v1525, %v1512
    %v1530 = vmul.f32 %v1525, %v1513
    %v1531 = vmul.f32 %v1525, %v1514
    %v1532 = vmul.f32 %v1525, %v1515
    %v1533 = vmul.f32 %v1525, %v1516
    %v1534 = vmul.f32 %v1525, %v1517
    %v1535 = vmul.f32 %v1525, %v1518
    %v1536 = vmul.f32 %v1525, %v1519
    %v1537 = vmul.f32 %v1525, %v1520
    %v1538 = vmul.f32 %v1525, %v1521
    %v1539 = vmul.f32 %v1525, %v1522
    %v1540 = vmul.f32 %v1525, %v1523
    %v1541 = vmul.f32 %v1525, %v1524
    %1542 = vst [vmem:[%s4] sm:$0xff] %v1079
    %1543 = vst [vmem:[%s4 + $0x8] sm:$0xff] %v1080
    %s1544 = scalar_lea.vmem %s4, 48
    %1545 = vst [vmem:[%s1544] sm:$0xff] %v1081
    %1546 = vst [vmem:[%s1544 + $0x8] sm:$0xff] %v1082
    %v1547 = vadd.f32 %v416, %v892
    %v1548 = vadd.f32 %v418, %v894
    %v1549 = vadd.f32 %v505, %v987
    %v1550 = vadd.f32 %v507, %v989
    %v1551 = vadd.f32 %v422, %v898
    %v1552 = vadd.f32 %v424, %v900
    %v1553 = vadd.f32 %v511, %v993
    %v1554 = vadd.f32 %v513, %v995
    %v1555 = vadd.f32 %v428, %v904
    %v1556 = vadd.f32 %v430, %v906
    %v1557 = vadd.f32 %v517, %v999
    %v1558 = vadd.f32 %v519, %v1001
    %v1559 = vadd.f32 %v434, %v910
    %v1560 = vadd.f32 %v436, %v912
    %v1561 = vadd.f32 %v523, %v1005
    %v1562 = vadd.f32 %v525, %v1007
    %v1563 = vadd.f32 %v1547, %v1548
    %1564 = vadd.xlane.f32.xlu0 %v1563
    %v1565 = vpop.xlane.xlu0 %1564
    %v1566 = vadd.f32 %v1551, %v1552
    %1567 = vadd.xlane.f32.xlu0 %v1566
    %v1568 = vpop.xlane.xlu0 %1567
    %v1569 = vadd.f32 %v1555, %v1556
    %1570 = vadd.xlane.f32.xlu0 %v1569
    %v1571 = vpop.xlane.xlu0 %1570
    %v1572 = vadd.f32 %v1559, %v1560
    %1573 = vadd.xlane.f32.xlu0 %v1572
    %v1574 = vpop.xlane.xlu0 %1573
    %v1575 = vmul.f32 %v1547, %v1547
    %v1576 = vmul.f32 %v1548, %v1548
    %v1577 = vmul.f32 %v1551, %v1551
    %v1578 = vmul.f32 %v1552, %v1552
    %v1579 = vmul.f32 %v1555, %v1555
    %v1580 = vmul.f32 %v1556, %v1556
    %v1581 = vmul.f32 %v1559, %v1559
    %v1582 = vmul.f32 %v1560, %v1560
    %v1583 = vadd.f32 %v1575, %v1576
    %1584 = vadd.xlane.f32.xlu0 %v1583
    %v1585 = vpop.xlane.xlu0 %1584
    %v1586 = vadd.f32 %v1577, %v1578
    %1587 = vadd.xlane.f32.xlu0 %v1586
    %v1588 = vpop.xlane.xlu0 %1587
    %v1589 = vadd.f32 %v1579, %v1580
    %1590 = vadd.xlane.f32.xlu0 %v1589
    %v1591 = vpop.xlane.xlu0 %1590
    %v1592 = vadd.f32 %v1581, %v1582
    %1593 = vadd.xlane.f32.xlu0 %v1592
    %v1594 = vpop.xlane.xlu0 %1593
    %v1595 = vmul.f32 %v1565, 0.00390625
    %v1596 = vmul.f32 %v1568, 0.00390625
    %v1597 = vmul.f32 %v1571, 0.00390625
    %v1598 = vmul.f32 %v1574, 0.00390625
    %v1599 = vmul.f32 %v1585, 0.00390625
    %v1600 = vmul.f32 %v1588, 0.00390625
    %v1601 = vmul.f32 %v1591, 0.00390625
    %v1602 = vmul.f32 %v1594, 0.00390625
    %v1603 = vmul.f32 %v1595, %v1595
    %v1604 = vmul.f32 %v1596, %v1596
    %v1605 = vmul.f32 %v1597, %v1597
    %v1606 = vmul.f32 %v1598, %v1598
    %v1607 = vsub.f32 %v1599, %v1603
    %v1608 = vsub.f32 %v1600, %v1604
    %v1609 = vsub.f32 %v1601, %v1605
    %v1610 = vsub.f32 %v1602, %v1606
    %v1611 = vsub.f32 %v1547, %v1595
    %v1612 = vsub.f32 %v1548, %v1595
    %v1613 = vsub.f32 %v1551, %v1596
    %v1614 = vsub.f32 %v1552, %v1596
    %v1615 = vsub.f32 %v1555, %v1597
    %v1616 = vsub.f32 %v1556, %v1597
    %v1617 = vsub.f32 %v1559, %v1598
    %v1618 = vsub.f32 %v1560, %v1598
    %v1619 = vadd.f32 %v1607, 1e-05
    %v1620 = vadd.f32 %v1608, 1e-05
    %v1621 = vadd.f32 %v1609, 1e-05
    %v1622 = vadd.f32 %v1610, 1e-05
    %v1623 = vrsqrt.pop %v1619
    %v1624 = vrsqrt.pop %v1620
    %v1625 = vrsqrt.pop %v1621
    %v1626 = vrsqrt.pop %v1622
    %v1627 = vmul.f32 %v1611, %v1623
    %v1628 = vmul.f32 %v1612, %v1623
    %v1629 = vmul.f32 %v1613, %v1624
    %v1630 = vmul.f32 %v1614, %v1624
    %v1631 = vmul.f32 %v1615, %v1625
    %v1632 = vmul.f32 %v1616, %v1625
    %v1633 = vmul.f32 %v1617, %v1626
    %v1634 = vmul.f32 %v1618, %v1626
    %v1636 = vlaneseq
    %v1637 = vshrl.u32 %v1636, 7
    %v1638 = vsub.s32 0, %v1637
    %v1639 = vrot.slane %v30, %v1638
    %v1640 = vlaneseq
    %v1641 = vshrl.u32 %v1640, 7
    %v1642 = vsub.s32 1, %v1641
    %v1643 = vrot.slane %v30, %v1642
    %v1646 = vmul.f32 %v1627, %v1639
    %v1647 = vmul.f32 %v1628, %v1643
    %v1648 = vmul.f32 %v1629, %v1639
    %v1649 = vmul.f32 %v1630, %v1643
    %v1650 = vmul.f32 %v1631, %v1639
    %v1651 = vmul.f32 %v1632, %v1643
    %v1652 = vmul.f32 %v1633, %v1639
    %v1653 = vmul.f32 %v1634, %v1643
    %v1655 = vlaneseq
    %v1656 = vshrl.u32 %v1655, 7
    %v1657 = vsub.s32 0, %v1656
    %v1658 = vrot.slane %v32, %v1657
    %v1659 = vlaneseq
    %v1660 = vshrl.u32 %v1659, 7
    %v1661 = vsub.s32 1, %v1660
    %v1662 = vrot.slane %v32, %v1661
    %v1665 = vadd.f32 %v1646, %v1658
    %v1666 = vadd.f32 %v1647, %v1662
    %v1667 = vadd.f32 %v1648, %v1658
    %v1668 = vadd.f32 %v1649, %v1662
    %v1669 = vadd.f32 %v1650, %v1658
    %v1670 = vadd.f32 %v1651, %v1662
    %v1671 = vadd.f32 %v1652, %v1658
    %v1672 = vadd.f32 %v1653, %v1662
    %v1673 = vadd.f32 %v1549, %v1550
    %1674 = vadd.xlane.f32.xlu0 %v1673
    %v1675 = vpop.xlane.xlu0 %1674
    %v1676 = vadd.f32 %v1553, %v1554
    %1677 = vadd.xlane.f32.xlu0 %v1676
    %v1678 = vpop.xlane.xlu0 %1677
    %v1679 = vadd.f32 %v1557, %v1558
    %1680 = vadd.xlane.f32.xlu0 %v1679
    %v1681 = vpop.xlane.xlu0 %1680
    %v1682 = vadd.f32 %v1561, %v1562
    %1683 = vadd.xlane.f32.xlu0 %v1682
    %v1684 = vpop.xlane.xlu0 %1683
    %v1685 = vmul.f32 %v1549, %v1549
    %v1686 = vmul.f32 %v1550, %v1550
    %v1687 = vmul.f32 %v1553, %v1553
    %v1688 = vmul.f32 %v1554, %v1554
    %v1689 = vmul.f32 %v1557, %v1557
    %v1690 = vmul.f32 %v1558, %v1558
    %v1691 = vmul.f32 %v1561, %v1561
    %v1692 = vmul.f32 %v1562, %v1562
    %v1693 = vadd.f32 %v1685, %v1686
    %1694 = vadd.xlane.f32.xlu0 %v1693
    %v1695 = vpop.xlane.xlu0 %1694
    %v1696 = vadd.f32 %v1687, %v1688
    %1697 = vadd.xlane.f32.xlu0 %v1696
    %v1698 = vpop.xlane.xlu0 %1697
    %v1699 = vadd.f32 %v1689, %v1690
    %1700 = vadd.xlane.f32.xlu0 %v1699
    %v1701 = vpop.xlane.xlu0 %1700
    %v1702 = vadd.f32 %v1691, %v1692
    %1703 = vadd.xlane.f32.xlu0 %v1702
    %v1704 = vpop.xlane.xlu0 %1703
    %v1705 = vmul.f32 %v1675, 0.00390625
    %v1706 = vmul.f32 %v1678, 0.00390625
    %v1707 = vmul.f32 %v1681, 0.00390625
    %v1708 = vmul.f32 %v1684, 0.00390625
    %v1709 = vmul.f32 %v1695, 0.00390625
    %v1710 = vmul.f32 %v1698, 0.00390625
    %v1711 = vmul.f32 %v1701, 0.00390625
    %v1712 = vmul.f32 %v1704, 0.00390625
    %v1713 = vmul.f32 %v1705, %v1705
    %v1714 = vmul.f32 %v1706, %v1706
    %v1715 = vmul.f32 %v1707, %v1707
    %v1716 = vmul.f32 %v1708, %v1708
    %v1717 = vsub.f32 %v1709, %v1713
    %v1718 = vsub.f32 %v1710, %v1714
    %v1719 = vsub.f32 %v1711, %v1715
    %v1720 = vsub.f32 %v1712, %v1716
    %v1721 = vsub.f32 %v1549, %v1705
    %v1722 = vsub.f32 %v1550, %v1705
    %v1723 = vsub.f32 %v1553, %v1706
    %v1724 = vsub.f32 %v1554, %v1706
    %v1725 = vsub.f32 %v1557, %v1707
    %v1726 = vsub.f32 %v1558, %v1707
    %v1727 = vsub.f32 %v1561, %v1708
    %v1728 = vsub.f32 %v1562, %v1708
    %v1729 = vadd.f32 %v1717, 1e-05
    %v1730 = vadd.f32 %v1718, 1e-05
    %v1731 = vadd.f32 %v1719, 1e-05
    %v1732 = vadd.f32 %v1720, 1e-05
    %v1733 = vrsqrt.pop %v1729
    %v1734 = vrsqrt.pop %v1730
    %v1735 = vrsqrt.pop %v1731
    %v1736 = vrsqrt.pop %v1732
    %v1737 = vmul.f32 %v1721, %v1733
    %v1738 = vmul.f32 %v1722, %v1733
    %v1739 = vmul.f32 %v1723, %v1734
    %v1740 = vmul.f32 %v1724, %v1734
    %v1741 = vmul.f32 %v1725, %v1735
    %v1742 = vmul.f32 %v1726, %v1735
    %v1743 = vmul.f32 %v1727, %v1736
    %v1744 = vmul.f32 %v1728, %v1736
    %v1745 = vmul.f32 %v1737, %v1639
    %v1746 = vmul.f32 %v1738, %v1643
    %v1747 = vmul.f32 %v1739, %v1639
    %v1748 = vmul.f32 %v1740, %v1643
    %v1749 = vmul.f32 %v1741, %v1639
    %v1750 = vmul.f32 %v1742, %v1643
    %v1751 = vmul.f32 %v1743, %v1639
    %v1752 = vmul.f32 %v1744, %v1643
    %v1753 = vadd.f32 %v1745, %v1658
    %v1754 = vadd.f32 %v1746, %v1662
    %v1755 = vadd.f32 %v1747, %v1658
    %v1756 = vadd.f32 %v1748, %v1662
    %v1757 = vadd.f32 %v1749, %v1658
    %v1758 = vadd.f32 %v1750, %v1662
    %v1759 = vadd.f32 %v1751, %v1658
    %v1760 = vadd.f32 %v1752, %v1662
    %v1761 = vmul.f32 %v1665, 0.01
    %v1762 = vmul.f32 %v1666, 0.01
    %v1763 = vmul.f32 %v1753, 0.01
    %v1764 = vmul.f32 %v1754, 0.01
    %v1765 = vmul.f32 %v1667, 0.01
    %v1766 = vmul.f32 %v1668, 0.01
    %v1767 = vmul.f32 %v1755, 0.01
    %v1768 = vmul.f32 %v1756, 0.01
    %v1769 = vmul.f32 %v1669, 0.01
    %v1770 = vmul.f32 %v1670, 0.01
    %v1771 = vmul.f32 %v1757, 0.01
    %v1772 = vmul.f32 %v1758, 0.01
    %v1773 = vmul.f32 %v1671, 0.01
    %v1774 = vmul.f32 %v1672, 0.01
    %v1775 = vmul.f32 %v1759, 0.01
    %v1776 = vmul.f32 %v1760, 0.01
    %v1777 = vmax.f32 %v1665, %v1761
    %v1778 = vmax.f32 %v1666, %v1762
    %v1779 = vmax.f32 %v1753, %v1763
    %v1780 = vmax.f32 %v1754, %v1764
    %v1781 = vmax.f32 %v1667, %v1765
    %v1782 = vmax.f32 %v1668, %v1766
    %v1783 = vmax.f32 %v1755, %v1767
    %v1784 = vmax.f32 %v1756, %v1768
    %v1785 = vmax.f32 %v1669, %v1769
    %v1786 = vmax.f32 %v1670, %v1770
    %v1787 = vmax.f32 %v1757, %v1771
    %v1788 = vmax.f32 %v1758, %v1772
    %v1789 = vmax.f32 %v1671, %v1773
    %v1790 = vmax.f32 %v1672, %v1774
    %v1791 = vmax.f32 %v1759, %v1775
    %v1792 = vmax.f32 %v1760, %v1776
    %s1793 = sld [smem:[#allocation2]]
    %v1794 = vstv %s1793
    %v1795 = vmul.f32 %v1794, %v1777
    %v1796 = vmul.f32 %v1794, %v1778
    %v1797 = vmul.f32 %v1794, %v1779
    %v1798 = vmul.f32 %v1794, %v1780
    %v1799 = vmul.f32 %v1794, %v1781
    %v1800 = vmul.f32 %v1794, %v1782
    %v1801 = vmul.f32 %v1794, %v1783
    %v1802 = vmul.f32 %v1794, %v1784
    %v1803 = vmul.f32 %v1794, %v1785
    %v1804 = vmul.f32 %v1794, %v1786
    %v1805 = vmul.f32 %v1794, %v1787
    %v1806 = vmul.f32 %v1794, %v1788
    %v1807 = vmul.f32 %v1794, %v1789
    %v1808 = vmul.f32 %v1794, %v1790
    %v1809 = vmul.f32 %v1794, %v1791
    %v1810 = vmul.f32 %v1794, %v1792
    %v1811 = vadd.f32 %v1526, %v1795
    %v1812 = vadd.f32 %v1527, %v1796
    %v1813 = vadd.f32 %v1528, %v1797
    %v1814 = vadd.f32 %v1529, %v1798
    %v1815 = vadd.f32 %v1530, %v1799
    %v1816 = vadd.f32 %v1531, %v1800
    %v1817 = vadd.f32 %v1532, %v1801
    %v1818 = vadd.f32 %v1533, %v1802
    %v1819 = vadd.f32 %v1534, %v1803
    %v1820 = vadd.f32 %v1535, %v1804
    %v1821 = vadd.f32 %v1536, %v1805
    %v1822 = vadd.f32 %v1537, %v1806
    %v1823 = vadd.f32 %v1538, %v1807
    %v1824 = vadd.f32 %v1539, %v1808
    %v1825 = vadd.f32 %v1540, %v1809
    %v1826 = vadd.f32 %v1541, %v1810
    %v1827 = vld [vmem:[%s2 + $0xa8] sm:$0xff]
    %v1828 = vld [vmem:[%s2 + $0xb0] sm:$0xff]
    %v1829 = vld [vmem:[%s2 + $0xb8] sm:$0xff]
    %v1830 = vld [vmem:[%s2 + $0xc0] sm:$0xff]
    %v1831 = vld [vmem:[%s3 + $0x10] sm:$0xff]
    %v1832 = vld [vmem:[%s3 + $0x20] sm:$0xff]
    %v1833 = vld [vmem:[%s3 + $0x30] sm:$0xff]
    %v1834 = vld [vmem:[%s3 + $0x40] sm:$0xff]
    %1836 = vset.pattern.permute.xlu0 5
    %1837 = vperm.xlu0 %1836, %v1831
    %v1838 = vpop.permute.xlu0 %1837
    %1841 = vset.pattern.permute.xlu0 5
    %1842 = vperm.xlu0 %1841, %v1832
    %v1843 = vpop.permute.xlu0 %1842
    %1846 = vset.pattern.permute.xlu0 5
    %1847 = vperm.xlu0 %1846, %v1833
    %v1848 = vpop.permute.xlu0 %1847
    %1851 = vset.pattern.permute.xlu0 5
    %1852 = vperm.xlu0 %1851, %v1834
    %v1853 = vpop.permute.xlu0 %1852
    %v1856 = vsel %vm336, %v1827, 0
    %v1859 = vsel %vm336, %v1828, 0
    %v1862 = vsel %vm336, %v1829, 0
    %v1865 = vsel %vm336, %v1830, 0
    %1867 = vmatprep.subr.mxu0 0.0
    %1868 = vmatpush1.msra.mxu0 0.0
    %1869 = vmatprep.subr.mxu0 0.0
    %1870 = vmatpush1.msra.mxu0 0.0
    %1871 = vmatprep.subr.mxu0 0.0
    %1872 = vmatpush1.msra.mxu0 0.0
    %1873 = vmatprep.subr.mxu0 0.0
    %1874 = vmatpush1.msra.mxu0 0.0
    %1875 = vmatprep.subr.mxu0 0.0
    %1876 = vmatpush1.msra.mxu0 0.0
    %1877 = vmatprep.subr.mxu0 0.0
    %1878 = vmatpush1.msra.mxu0 0.0
    %1879 = vmatprep.subr.mxu0 0.0
    %1880 = vmatpush1.msra.mxu0 0.0
    %1881 = vmatprep.subr.mxu0 0.0
    %1882 = vmatpush1.msra.mxu0 0.0
    %1883 = vmatprep.subr.mxu0 0.0
    %1884 = vmatpush1.msra.mxu0 0.0
    %1885 = vmatprep.subr.mxu0 0.0
    %1886 = vmatpush1.msra.mxu0 0.0
    %1887 = vmatprep.subr.mxu0 0.0
    %1888 = vmatpush1.msra.mxu0 0.0
    %1889 = vmatprep.subr.mxu0 0.0
    %1890 = vmatpush1.msra.mxu0 0.0
    %1891 = vmatprep.subr.mxu0 %v1824
    %1892 = vmatpush1.msra.mxu0 %v1823
    %1893 = vmatprep.subr.mxu0 %v1820
    %1894 = vmatpush1.msra.mxu0 %v1819
    %1895 = vmatprep.subr.mxu0 %v1816
    %1896 = vmatpush1.msra.mxu0 %v1815
    %1897 = vmatprep.subr.mxu0 %v1812
    %1898 = vmatpush1.msra.mxu0 %v1811
    %1899 = vmatprep.subr.mxu0 0.0
    %1900 = vmatpush2.msra.mxu0 0.0
    %1901 = vmatprep.subr.mxu0 0.0
    %1902 = vmatpush2.msra.mxu0 0.0
    %1903 = vmatprep.subr.mxu0 0.0
    %1904 = vmatpush2.msra.mxu0 0.0
    %1905 = vmatprep.subr.mxu0 0.0
    %1906 = vmatpush2.msra.mxu0 0.0
    %1907 = vmatprep.subr.mxu0 0.0
    %1908 = vmatpush2.msra.mxu0 0.0
    %1909 = vmatprep.subr.mxu0 0.0
    %1910 = vmatpush2.msra.mxu0 0.0
    %1911 = vmatprep.subr.mxu0 0.0
    %1912 = vmatpush2.msra.mxu0 0.0
    %1913 = vmatprep.subr.mxu0 0.0
    %1914 = vmatpush2.msra.mxu0 0.0
    %1915 = vmatprep.subr.mxu0 0.0
    %1916 = vmatpush2.msra.mxu0 0.0
    %1917 = vmatprep.subr.mxu0 0.0
    %1918 = vmatpush2.msra.mxu0 0.0
    %1919 = vmatprep.subr.mxu0 0.0
    %1920 = vmatpush2.msra.mxu0 0.0
    %1921 = vmatprep.subr.mxu0 0.0
    %1922 = vmatpush2.msra.mxu0 0.0
    %1923 = vmatprep.subr.mxu0 0.0
    %1924 = vmatpush2.msra.mxu0 0.0
    %1925 = vmatprep.subr.mxu0 0.0
    %1926 = vmatpush2.msra.mxu0 0.0
    %1927 = vmatprep.subr.mxu0 0.0
    %1928 = vmatpush2.msra.mxu0 0.0
    %1929 = vmatprep.subr.mxu0 0.0
    %1930 = vmatpush2.msra.mxu0 0.0
    %1931 = vmatprep.mubr.f32.mxu0 0.0
    %1932 = vmatmul.mubr.f32.gmra.mxu0 %v1856
    %v1933 = vpop.f32.mrf.mxu0
    %v1934 = vadd.f32 %v1838, %v1933
    %v1935 = vpop.f32.mrf.mxu0
    %v1936 = vadd.f32 %v1838, %v1935
    %1937 = vmatprep.mubr.f32.mxu0 0.0
    %1938 = vmatmul.mubr.f32.gmra.mxu0 %v1859
    %v1939 = vpop.f32.mrf.mxu0
    %v1940 = vadd.f32 %v1843, %v1939
    %v1941 = vpop.f32.mrf.mxu0
    %v1942 = vadd.f32 %v1843, %v1941
    %1943 = vmatprep.mubr.f32.mxu0 0.0
    %1944 = vmatmul.mubr.f32.gmra.mxu0 %v1862
    %v1945 = vpop.f32.mrf.mxu0
    %v1946 = vadd.f32 %v1848, %v1945
    %v1947 = vpop.f32.mrf.mxu0
    %v1948 = vadd.f32 %v1848, %v1947
    %1949 = vmatprep.mubr.f32.mxu0 0.0
    %1950 = vmatmul.mubr.f32.gmra.mxu0 %v1865
    %v1951 = vpop.f32.mrf.mxu0
    %v1952 = vadd.f32 %v1853, %v1951
    %v1953 = vpop.f32.mrf.mxu0
    %v1954 = vadd.f32 %v1853, %v1953
    %1955 = vdwg.mxu0
    %1956 = vmatprep.subr.mxu0 0.0
    %1957 = vmatpush1.msra.mxu0 0.0
    %1958 = vmatprep.subr.mxu0 0.0
    %1959 = vmatpush1.msra.mxu0 0.0
    %1960 = vmatprep.subr.mxu0 0.0
    %1961 = vmatpush1.msra.mxu0 0.0
    %1962 = vmatprep.subr.mxu0 0.0
    %1963 = vmatpush1.msra.mxu0 0.0
    %1964 = vmatprep.subr.mxu0 0.0
    %1965 = vmatpush1.msra.mxu0 0.0
    %1966 = vmatprep.subr.mxu0 0.0
    %1967 = vmatpush1.msra.mxu0 0.0
    %1968 = vmatprep.subr.mxu0 0.0
    %1969 = vmatpush1.msra.mxu0 0.0
    %1970 = vmatprep.subr.mxu0 0.0
    %1971 = vmatpush1.msra.mxu0 0.0
    %1972 = vmatprep.subr.mxu0 0.0
    %1973 = vmatpush1.msra.mxu0 0.0
    %1974 = vmatprep.subr.mxu0 0.0
    %1975 = vmatpush1.msra.mxu0 0.0
    %1976 = vmatprep.subr.mxu0 0.0
    %1977 = vmatpush1.msra.mxu0 0.0
    %1978 = vmatprep.subr.mxu0 0.0
    %1979 = vmatpush1.msra.mxu0 0.0
    %1980 = vmatprep.subr.mxu0 %v1826
    %1981 = vmatpush1.msra.mxu0 %v1825
    %1982 = vmatprep.subr.mxu0 %v1822
    %1983 = vmatpush1.msra.mxu0 %v1821
    %1984 = vmatprep.subr.mxu0 %v1818
    %1985 = vmatpush1.msra.mxu0 %v1817
    %1986 = vmatprep.subr.mxu0 %v1814
    %1987 = vmatpush1.msra.mxu0 %v1813
    %1988 = vmatprep.subr.mxu0 0.0
    %1989 = vmatpush2.msra.mxu0 0.0
    %1990 = vmatprep.subr.mxu0 0.0
    %1991 = vmatpush2.msra.mxu0 0.0
    %1992 = vmatprep.subr.mxu0 0.0
    %1993 = vmatpush2.msra.mxu0 0.0
    %1994 = vmatprep.subr.mxu0 0.0
    %1995 = vmatpush2.msra.mxu0 0.0
    %1996 = vmatprep.subr.mxu0 0.0
    %1997 = vmatpush2.msra.mxu0 0.0
    %1998 = vmatprep.subr.mxu0 0.0
    %1999 = vmatpush2.msra.mxu0 0.0
    %2000 = vmatprep.subr.mxu0 0.0
    %2001 = vmatpush2.msra.mxu0 0.0
    %2002 = vmatprep.subr.mxu0 0.0
    %2003 = vmatpush2.msra.mxu0 0.0
    %2004 = vmatprep.subr.mxu0 0.0
    %2005 = vmatpush2.msra.mxu0 0.0
    %2006 = vmatprep.subr.mxu0 0.0
    %2007 = vmatpush2.msra.mxu0 0.0
    %2008 = vmatprep.subr.mxu0 0.0
    %2009 = vmatpush2.msra.mxu0 0.0
    %2010 = vmatprep.subr.mxu0 0.0
    %2011 = vmatpush2.msra.mxu0 0.0
    %2012 = vmatprep.subr.mxu0 0.0
    %2013 = vmatpush2.msra.mxu0 0.0
    %2014 = vmatprep.subr.mxu0 0.0
    %2015 = vmatpush2.msra.mxu0 0.0
    %2016 = vmatprep.subr.mxu0 0.0
    %2017 = vmatpush2.msra.mxu0 0.0
    %2018 = vmatprep.subr.mxu0 0.0
    %2019 = vmatpush2.msra.mxu0 0.0
    %2020 = vmatprep.mubr.f32.mxu0 0.0
    %2021 = vmatmul.mubr.f32.gmra.mxu0 %v1856
    %v2022 = vpop.f32.mrf.mxu0
    %v2023 = vadd.f32 %v1838, %v2022
    %v2024 = vpop.f32.mrf.mxu0
    %v2025 = vadd.f32 %v1838, %v2024
    %2026 = vmatprep.mubr.f32.mxu0 0.0
    %2027 = vmatmul.mubr.f32.gmra.mxu0 %v1859
    %v2028 = vpop.f32.mrf.mxu0
    %v2029 = vadd.f32 %v1843, %v2028
    %v2030 = vpop.f32.mrf.mxu0
    %v2031 = vadd.f32 %v1843, %v2030
    %2032 = vmatprep.mubr.f32.mxu0 0.0
    %2033 = vmatmul.mubr.f32.gmra.mxu0 %v1862
    %v2034 = vpop.f32.mrf.mxu0
    %v2035 = vadd.f32 %v1848, %v2034
    %v2036 = vpop.f32.mrf.mxu0
    %v2037 = vadd.f32 %v1848, %v2036
    %2038 = vmatprep.mubr.f32.mxu0 0.0
    %2039 = vmatmul.mubr.f32.gmra.mxu0 %v1865
    %v2040 = vpop.f32.mrf.mxu0
    %v2041 = vadd.f32 %v1853, %v2040
    %v2042 = vpop.f32.mrf.mxu0
    %v2043 = vadd.f32 %v1853, %v2042
    %2044 = vdwg.mxu0
    %v2045 = vmul.f32 %v1934, 0.01
    %v2046 = vmul.f32 %v1936, 0.01
    %v2047 = vmul.f32 %v2023, 0.01
    %v2048 = vmul.f32 %v2025, 0.01
    %v2049 = vmul.f32 %v1940, 0.01
    %v2050 = vmul.f32 %v1942, 0.01
    %v2051 = vmul.f32 %v2029, 0.01
    %v2052 = vmul.f32 %v2031, 0.01
    %v2053 = vmul.f32 %v1946, 0.01
    %v2054 = vmul.f32 %v1948, 0.01
    %v2055 = vmul.f32 %v2035, 0.01
    %v2056 = vmul.f32 %v2037, 0.01
    %v2057 = vmul.f32 %v1952, 0.01
    %v2058 = vmul.f32 %v1954, 0.01
    %v2059 = vmul.f32 %v2041, 0.01
    %v2060 = vmul.f32 %v2043, 0.01
    %v2061 = vmax.f32 %v1934, %v2045
    %v2062 = vmax.f32 %v1936, %v2046
    %v2063 = vmax.f32 %v2023, %v2047
    %v2064 = vmax.f32 %v2025, %v2048
    %v2065 = vmax.f32 %v1940, %v2049
    %v2066 = vmax.f32 %v1942, %v2050
    %v2067 = vmax.f32 %v2029, %v2051
    %v2068 = vmax.f32 %v2031, %v2052
    %v2069 = vmax.f32 %v1946, %v2053
    %v2070 = vmax.f32 %v1948, %v2054
    %v2071 = vmax.f32 %v2035, %v2055
    %v2072 = vmax.f32 %v2037, %v2056
    %v2073 = vmax.f32 %v1952, %v2057
    %v2074 = vmax.f32 %v1954, %v2058
    %v2075 = vmax.f32 %v2041, %v2059
    %v2076 = vmax.f32 %v2043, %v2060
    %v2077 = vld [vmem:[%s2 + $0x40] sm:$0xff]
    %v2078 = vld [vmem:[%s2 + $0x48] sm:$0xff]
    %v2079 = vld [vmem:[%s2 + $0x50] sm:$0xff]
    %v2080 = vld [vmem:[%s2 + $0x58] sm:$0xff]
    %v2081 = vld [vmem:[%s2 + $0x60] sm:$0xff]
    %v2082 = vld [vmem:[%s3 + $0x10] sm:$0xff]
    %v2083 = vld [vmem:[%s3 + $0x20] sm:$0xff]
    %v2084 = vld [vmem:[%s3 + $0x30] sm:$0xff]
    %v2085 = vld [vmem:[%s3 + $0x40] sm:$0xff]
    %v2086 = vld [vmem:[%s3 + $0x50] sm:$0xff]
    %2088 = vset.pattern.permute.xlu0 2
    %2089 = vperm.xlu0 %2088, %v2082
    %v2090 = vpop.permute.xlu0 %2089
    %2093 = vset.pattern.permute.xlu0 2
    %2094 = vperm.xlu0 %2093, %v2083
    %v2095 = vpop.permute.xlu0 %2094
    %2098 = vset.pattern.permute.xlu0 2
    %2099 = vperm.xlu0 %2098, %v2084
    %v2100 = vpop.permute.xlu0 %2099
    %2103 = vset.pattern.permute.xlu0 2
    %2104 = vperm.xlu0 %2103, %v2085
    %v2105 = vpop.permute.xlu0 %2104
    %2108 = vset.pattern.permute.xlu0 2
    %2109 = vperm.xlu0 %2108, %v2086
    %v2110 = vpop.permute.xlu0 %2109
    %v2113 = vsel %vm336, %v2077, 0
    %v2116 = vsel %vm336, %v2078, 0
    %v2119 = vsel %vm336, %v2079, 0
    %v2122 = vsel %vm336, %v2080, 0
    %v2125 = vsel %vm336, %v2081, 0
    %2127 = vmatprep.subr.mxu0 0.0
    %2128 = vmatpush1.msra.mxu0 0.0
    %2129 = vmatprep.subr.mxu0 0.0
    %2130 = vmatpush1.msra.mxu0 0.0
    %2131 = vmatprep.subr.mxu0 0.0
    %2132 = vmatpush1.msra.mxu0 0.0
    %2133 = vmatprep.subr.mxu0 0.0
    %2134 = vmatpush1.msra.mxu0 0.0
    %2135 = vmatprep.subr.mxu0 0.0
    %2136 = vmatpush1.msra.mxu0 0.0
    %2137 = vmatprep.subr.mxu0 0.0
    %2138 = vmatpush1.msra.mxu0 0.0
    %2139 = vmatprep.subr.mxu0 0.0
    %2140 = vmatpush1.msra.mxu0 0.0
    %2141 = vmatprep.subr.mxu0 0.0
    %2142 = vmatpush1.msra.mxu0 0.0
    %2143 = vmatprep.subr.mxu0 0.0
    %2144 = vmatpush1.msra.mxu0 0.0
    %2145 = vmatprep.subr.mxu0 0.0
    %2146 = vmatpush1.msra.mxu0 0.0
    %2147 = vmatprep.subr.mxu0 0.0
    %2148 = vmatpush1.msra.mxu0 0.0
    %2149 = vmatprep.subr.mxu0 0.0
    %2150 = vmatpush1.msra.mxu0 0.0
    %2151 = vmatprep.subr.mxu0 %v2074
    %2152 = vmatpush1.msra.mxu0 %v2073
    %2153 = vmatprep.subr.mxu0 %v2070
    %2154 = vmatpush1.msra.mxu0 %v2069
    %2155 = vmatprep.subr.mxu0 %v2066
    %2156 = vmatpush1.msra.mxu0 %v2065
    %2157 = vmatprep.subr.mxu0 %v2062
    %2158 = vmatpush1.msra.mxu0 %v2061
    %2159 = vmatprep.subr.mxu0 0.0
    %2160 = vmatpush2.msra.mxu0 0.0
    %2161 = vmatprep.subr.mxu0 0.0
    %2162 = vmatpush2.msra.mxu0 0.0
    %2163 = vmatprep.subr.mxu0 0.0
    %2164 = vmatpush2.msra.mxu0 0.0
    %2165 = vmatprep.subr.mxu0 0.0
    %2166 = vmatpush2.msra.mxu0 0.0
    %2167 = vmatprep.subr.mxu0 0.0
    %2168 = vmatpush2.msra.mxu0 0.0
    %2169 = vmatprep.subr.mxu0 0.0
    %2170 = vmatpush2.msra.mxu0 0.0
    %2171 = vmatprep.subr.mxu0 0.0
    %2172 = vmatpush2.msra.mxu0 0.0
    %2173 = vmatprep.subr.mxu0 0.0
    %2174 = vmatpush2.msra.mxu0 0.0
    %2175 = vmatprep.subr.mxu0 0.0
    %2176 = vmatpush2.msra.mxu0 0.0
    %2177 = vmatprep.subr.mxu0 0.0
    %2178 = vmatpush2.msra.mxu0 0.0
    %2179 = vmatprep.subr.mxu0 0.0
    %2180 = vmatpush2.msra.mxu0 0.0
    %2181 = vmatprep.subr.mxu0 0.0
    %2182 = vmatpush2.msra.mxu0 0.0
    %2183 = vmatprep.subr.mxu0 0.0
    %2184 = vmatpush2.msra.mxu0 0.0
    %2185 = vmatprep.subr.mxu0 0.0
    %2186 = vmatpush2.msra.mxu0 0.0
    %2187 = vmatprep.subr.mxu0 0.0
    %2188 = vmatpush2.msra.mxu0 0.0
    %2189 = vmatprep.subr.mxu0 0.0
    %2190 = vmatpush2.msra.mxu0 0.0
    %2191 = vmatprep.mubr.f32.mxu0 0.0
    %2192 = vmatmul.mubr.f32.gmra.mxu0 %v2113
    %v2193 = vpop.f32.mrf.mxu0
    %v2194 = vadd.f32 %v2090, %v2193
    %v2195 = vpop.f32.mrf.mxu0
    %v2196 = vadd.f32 %v2090, %v2195
    %2197 = vmatprep.mubr.f32.mxu0 0.0
    %2198 = vmatmul.mubr.f32.gmra.mxu0 %v2116
    %v2199 = vpop.f32.mrf.mxu0
    %v2200 = vadd.f32 %v2095, %v2199
    %v2201 = vpop.f32.mrf.mxu0
    %v2202 = vadd.f32 %v2095, %v2201
    %2203 = vmatprep.mubr.f32.mxu0 0.0
    %2204 = vmatmul.mubr.f32.gmra.mxu0 %v2119
    %v2205 = vpop.f32.mrf.mxu0
    %v2206 = vadd.f32 %v2100, %v2205
    %v2207 = vpop.f32.mrf.mxu0
    %v2208 = vadd.f32 %v2100, %v2207
    %2209 = vmatprep.mubr.f32.mxu0 0.0
    %2210 = vmatmul.mubr.f32.gmra.mxu0 %v2122
    %v2211 = vpop.f32.mrf.mxu0
    %v2212 = vadd.f32 %v2105, %v2211
    %v2213 = vpop.f32.mrf.mxu0
    %v2214 = vadd.f32 %v2105, %v2213
    %2215 = vmatprep.mubr.f32.mxu0 0.0
    %2216 = vmatmul.mubr.f32.gmra.mxu0 %v2125
    %v2217 = vpop.f32.mrf.mxu0
    %v2218 = vadd.f32 %v2110, %v2217
    %v2219 = vpop.f32.mrf.mxu0
    %v2220 = vadd.f32 %v2110, %v2219
    %2221 = vdwg.mxu0
    %2222 = vmatprep.subr.mxu0 0.0
    %2223 = vmatpush1.msra.mxu0 0.0
    %2224 = vmatprep.subr.mxu0 0.0
    %2225 = vmatpush1.msra.mxu0 0.0
    %2226 = vmatprep.subr.mxu0 0.0
    %2227 = vmatpush1.msra.mxu0 0.0
    %2228 = vmatprep.subr.mxu0 0.0
    %2229 = vmatpush1.msra.mxu0 0.0
    %2230 = vmatprep.subr.mxu0 0.0
    %2231 = vmatpush1.msra.mxu0 0.0
    %2232 = vmatprep.subr.mxu0 0.0
    %2233 = vmatpush1.msra.mxu0 0.0
    %2234 = vmatprep.subr.mxu0 0.0
    %2235 = vmatpush1.msra.mxu0 0.0
    %2236 = vmatprep.subr.mxu0 0.0
    %2237 = vmatpush1.msra.mxu0 0.0
    %2238 = vmatprep.subr.mxu0 0.0
    %2239 = vmatpush1.msra.mxu0 0.0
    %2240 = vmatprep.subr.mxu0 0.0
    %2241 = vmatpush1.msra.mxu0 0.0
    %2242 = vmatprep.subr.mxu0 0.0
    %2243 = vmatpush1.msra.mxu0 0.0
    %2244 = vmatprep.subr.mxu0 0.0
    %2245 = vmatpush1.msra.mxu0 0.0
    %2246 = vmatprep.subr.mxu0 %v2076
    %2247 = vmatpush1.msra.mxu0 %v2075
    %2248 = vmatprep.subr.mxu0 %v2072
    %2249 = vmatpush1.msra.mxu0 %v2071
    %2250 = vmatprep.subr.mxu0 %v2068
    %2251 = vmatpush1.msra.mxu0 %v2067
    %2252 = vmatprep.subr.mxu0 %v2064
    %2253 = vmatpush1.msra.mxu0 %v2063
    %2254 = vmatprep.subr.mxu0 0.0
    %2255 = vmatpush2.msra.mxu0 0.0
    %2256 = vmatprep.subr.mxu0 0.0
    %2257 = vmatpush2.msra.mxu0 0.0
    %2258 = vmatprep.subr.mxu0 0.0
    %2259 = vmatpush2.msra.mxu0 0.0
    %2260 = vmatprep.subr.mxu0 0.0
    %2261 = vmatpush2.msra.mxu0 0.0
    %2262 = vmatprep.subr.mxu0 0.0
    %2263 = vmatpush2.msra.mxu0 0.0
    %2264 = vmatprep.subr.mxu0 0.0
    %2265 = vmatpush2.msra.mxu0 0.0
    %2266 = vmatprep.subr.mxu0 0.0
    %2267 = vmatpush2.msra.mxu0 0.0
    %2268 = vmatprep.subr.mxu0 0.0
    %2269 = vmatpush2.msra.mxu0 0.0
    %2270 = vmatprep.subr.mxu0 0.0
    %2271 = vmatpush2.msra.mxu0 0.0
    %2272 = vmatprep.subr.mxu0 0.0
    %2273 = vmatpush2.msra.mxu0 0.0
    %2274 = vmatprep.subr.mxu0 0.0
    %2275 = vmatpush2.msra.mxu0 0.0
    %2276 = vmatprep.subr.mxu0 0.0
    %2277 = vmatpush2.msra.mxu0 0.0
    %2278 = vmatprep.subr.mxu0 0.0
    %2279 = vmatpush2.msra.mxu0 0.0
    %2280 = vmatprep.subr.mxu0 0.0
    %2281 = vmatpush2.msra.mxu0 0.0
    %2282 = vmatprep.subr.mxu0 0.0
    %2283 = vmatpush2.msra.mxu0 0.0
    %2284 = vmatprep.subr.mxu0 0.0
    %2285 = vmatpush2.msra.mxu0 0.0
    %2286 = vmatprep.mubr.f32.mxu0 0.0
    %2287 = vmatmul.mubr.f32.gmra.mxu0 %v2113
    %v2288 = vpop.f32.mrf.mxu0
    %v2289 = vadd.f32 %v2090, %v2288
    %v2290 = vpop.f32.mrf.mxu0
    %v2291 = vadd.f32 %v2090, %v2290
    %2292 = vmatprep.mubr.f32.mxu0 0.0
    %2293 = vmatmul.mubr.f32.gmra.mxu0 %v2116
    %v2294 = vpop.f32.mrf.mxu0
    %v2295 = vadd.f32 %v2095, %v2294
    %v2296 = vpop.f32.mrf.mxu0
    %v2297 = vadd.f32 %v2095, %v2296
    %2298 = vmatprep.mubr.f32.mxu0 0.0
    %2299 = vmatmul.mubr.f32.gmra.mxu0 %v2119
    %v2300 = vpop.f32.mrf.mxu0
    %v2301 = vadd.f32 %v2100, %v2300
    %v2302 = vpop.f32.mrf.mxu0
    %v2303 = vadd.f32 %v2100, %v2302
    %2304 = vmatprep.mubr.f32.mxu0 0.0
    %2305 = vmatmul.mubr.f32.gmra.mxu0 %v2122
    %v2306 = vpop.f32.mrf.mxu0
    %v2307 = vadd.f32 %v2105, %v2306
    %v2308 = vpop.f32.mrf.mxu0
    %v2309 = vadd.f32 %v2105, %v2308
    %2310 = vmatprep.mubr.f32.mxu0 0.0
    %2311 = vmatmul.mubr.f32.gmra.mxu0 %v2125
    %v2312 = vpop.f32.mrf.mxu0
    %v2313 = vadd.f32 %v2110, %v2312
    %v2314 = vpop.f32.mrf.mxu0
    %v2315 = vadd.f32 %v2110, %v2314
    %2316 = vdwg.mxu0
    %v2317 = vadd.f32 %v2194, %v2196
    %2318 = vadd.xlane.f32.xlu0 %v2317
    %v2319 = vpop.xlane.xlu0 %2318
    %v2320 = vmul.f32 %v2194, %v2194
    %v2321 = vmul.f32 %v2196, %v2196
    %v2322 = vadd.f32 %v2320, %v2321
    %2323 = vadd.xlane.f32.xlu0 %v2322
    %v2324 = vpop.xlane.xlu0 %2323
    %v2325 = vmul.f32 %v2319, 0.00390625
    %v2326 = vmul.f32 %v2324, 0.00390625
    %v2327 = vmul.f32 %v2325, %v2325
    %v2328 = vsub.f32 %v2326, %v2327
    %v2329 = vsub.f32 %v2194, %v2325
    %v2330 = vsub.f32 %v2196, %v2325
    %v2331 = vadd.f32 %v2328, 1e-05
    %v2332 = vrsqrt.pop %v2331
    %v2333 = vmul.f32 %v2329, %v2332
    %v2334 = vmul.f32 %v2330, %v2332
    %v2335 = vmul.f32 %v2333, %v1031
    %v2336 = vmul.f32 %v2334, %v1035
    %v2337 = vadd.f32 %v2335, %v1044
    %v2338 = vadd.f32 %v2336, %v1048
    %v2339 = vadd.f32 %v2289, %v2291
    %2340 = vadd.xlane.f32.xlu0 %v2339
    %v2341 = vpop.xlane.xlu0 %2340
    %v2342 = vmul.f32 %v2289, %v2289
    %v2343 = vmul.f32 %v2291, %v2291
    %v2344 = vadd.f32 %v2342, %v2343
    %2345 = vadd.xlane.f32.xlu0 %v2344
    %v2346 = vpop.xlane.xlu0 %2345
    %v2347 = vmul.f32 %v2341, 0.00390625
    %v2348 = vmul.f32 %v2346, 0.00390625
    %v2349 = vmul.f32 %v2347, %v2347
    %v2350 = vsub.f32 %v2348, %v2349
    %v2351 = vsub.f32 %v2289, %v2347
    %v2352 = vsub.f32 %v2291, %v2347
    %v2353 = vadd.f32 %v2350, 1e-05
    %v2354 = vrsqrt.pop %v2353
    %v2355 = vmul.f32 %v2351, %v2354
    %v2356 = vmul.f32 %v2352, %v2354
    %v2357 = vmul.f32 %v2355, %v1031
    %v2358 = vmul.f32 %v2356, %v1035
    %v2359 = vadd.f32 %v2357, %v1044
    %v2360 = vadd.f32 %v2358, %v1048
    %v2361 = vmul.f32 %v2337, 0.01
    %v2362 = vmul.f32 %v2338, 0.01
    %v2363 = vmul.f32 %v2359, 0.01
    %v2364 = vmul.f32 %v2360, 0.01
    %v2365 = vmax.f32 %v2337, %v2361
    %v2366 = vmax.f32 %v2338, %v2362
    %v2367 = vmax.f32 %v2359, %v2363
    %v2368 = vmax.f32 %v2360, %v2364
    %s2369 = sld [smem:[#allocation2 + $0x1]]
    %v2370 = vld [vmem:[%s2 + $0x68] sm:$0xff]
    %v2371 = vld [vmem:[%s2 + $0x70] sm:$0xff]
    %v2372 = vld [vmem:[%s2 + $0x78] sm:$0xff]
    %v2373 = vld [vmem:[%s2 + $0x80] sm:$0xff]
    %2374 = vset.pattern.permute.xlu0 3
    %2375 = vperm.xlu0 %2374, %v1831
    %v2376 = vpop.permute.xlu0 %2375
    %2378 = vset.pattern.permute.xlu0 3
    %2379 = vperm.xlu0 %2378, %v1832
    %v2380 = vpop.permute.xlu0 %2379
    %2382 = vset.pattern.permute.xlu0 3
    %2383 = vperm.xlu0 %2382, %v1833
    %v2384 = vpop.permute.xlu0 %2383
    %2386 = vset.pattern.permute.xlu0 3
    %2387 = vperm.xlu0 %2386, %v1834
    %v2388 = vpop.permute.xlu0 %2387
    %v2391 = vsel %vm1104, %v2370, 0
    %v2394 = vsel %vm1104, %v2371, 0
    %v2397 = vsel %vm1104, %v2372, 0
    %v2400 = vsel %vm1104, %v2373, 0
    %2402 = vmatprep.subr.mxu0 0.0
    %2403 = vmatpush1.msra.mxu0 0.0
    %2404 = vmatprep.subr.mxu0 0.0
    %2405 = vmatpush1.msra.mxu0 0.0
    %2406 = vmatprep.subr.mxu0 0.0
    %2407 = vmatpush1.msra.mxu0 0.0
    %2408 = vmatprep.subr.mxu0 0.0
    %2409 = vmatpush1.msra.mxu0 0.0
    %2410 = vmatprep.subr.mxu0 0.0
    %2411 = vmatpush1.msra.mxu0 0.0
    %2412 = vmatprep.subr.mxu0 0.0
    %2413 = vmatpush1.msra.mxu0 0.0
    %2414 = vmatprep.subr.mxu0 0.0
    %2415 = vmatpush1.msra.mxu0 0.0
    %2416 = vmatprep.subr.mxu0 0.0
    %2417 = vmatpush1.msra.mxu0 0.0
    %2418 = vmatprep.subr.mxu0 0.0
    %2419 = vmatpush1.msra.mxu0 0.0
    %2420 = vmatprep.subr.mxu0 0.0
    %2421 = vmatpush1.msra.mxu0 0.0
    %2422 = vmatprep.subr.mxu0 0.0
    %2423 = vmatpush1.msra.mxu0 0.0
    %2424 = vmatprep.subr.mxu0 0.0
    %2425 = vmatpush1.msra.mxu0 0.0
    %2426 = vmatprep.subr.mxu0 0.0
    %2427 = vmatpush1.msra.mxu0 0.0
    %2428 = vmatprep.subr.mxu0 0.0
    %2429 = vmatpush1.msra.mxu0 0.0
    %2430 = vmatprep.subr.mxu0 0.0
    %2431 = vmatpush1.msra.mxu0 0.0
    %2432 = vmatprep.subr.mxu0 %v2366
    %2433 = vmatpush1.msra.mxu0 %v2365
    %2434 = vmatprep.subr.mxu0 0.0
    %2435 = vmatpush2.msra.mxu0 0.0
    %2436 = vmatprep.subr.mxu0 0.0
    %2437 = vmatpush2.msra.mxu0 0.0
    %2438 = vmatprep.subr.mxu0 0.0
    %2439 = vmatpush2.msra.mxu0 0.0
    %2440 = vmatprep.subr.mxu0 0.0
    %2441 = vmatpush2.msra.mxu0 0.0
    %2442 = vmatprep.subr.mxu0 0.0
    %2443 = vmatpush2.msra.mxu0 0.0
    %2444 = vmatprep.subr.mxu0 0.0
    %2445 = vmatpush2.msra.mxu0 0.0
    %2446 = vmatprep.subr.mxu0 0.0
    %2447 = vmatpush2.msra.mxu0 0.0
    %2448 = vmatprep.subr.mxu0 0.0
    %2449 = vmatpush2.msra.mxu0 0.0
    %2450 = vmatprep.subr.mxu0 0.0
    %2451 = vmatpush2.msra.mxu0 0.0
    %2452 = vmatprep.subr.mxu0 0.0
    %2453 = vmatpush2.msra.mxu0 0.0
    %2454 = vmatprep.subr.mxu0 0.0
    %2455 = vmatpush2.msra.mxu0 0.0
    %2456 = vmatprep.subr.mxu0 0.0
    %2457 = vmatpush2.msra.mxu0 0.0
    %2458 = vmatprep.subr.mxu0 0.0
    %2459 = vmatpush2.msra.mxu0 0.0
    %2460 = vmatprep.subr.mxu0 0.0
    %2461 = vmatpush2.msra.mxu0 0.0
    %2462 = vmatprep.subr.mxu0 0.0
    %2463 = vmatpush2.msra.mxu0 0.0
    %2464 = vmatprep.subr.mxu0 0.0
    %2465 = vmatpush2.msra.mxu0 0.0
    %2466 = vmatprep.mubr.f32.mxu0 0.0
    %2467 = vmatmul.mubr.f32.gmra.mxu0 %v2391
    %v2468 = vpop.f32.mrf.mxu0
    %v2469 = vadd.f32 %v2376, %v2468
    %v2470 = vpop.f32.mrf.mxu0
    %v2471 = vadd.f32 %v2376, %v2470
    %2472 = vmatprep.mubr.f32.mxu0 0.0
    %2473 = vmatmul.mubr.f32.gmra.mxu0 %v2394
    %v2474 = vpop.f32.mrf.mxu0
    %v2475 = vadd.f32 %v2380, %v2474
    %v2476 = vpop.f32.mrf.mxu0
    %v2477 = vadd.f32 %v2380, %v2476
    %2478 = vmatprep.mubr.f32.mxu0 0.0
    %2479 = vmatmul.mubr.f32.gmra.mxu0 %v2397
    %v2480 = vpop.f32.mrf.mxu0
    %v2481 = vadd.f32 %v2384, %v2480
    %v2482 = vpop.f32.mrf.mxu0
    %v2483 = vadd.f32 %v2384, %v2482
    %2484 = vmatprep.mubr.f32.mxu0 0.0
    %2485 = vmatmul.mubr.f32.gmra.mxu0 %v2400
    %v2486 = vpop.f32.mrf.mxu0
    %v2487 = vadd.f32 %v2388, %v2486
    %v2488 = vpop.f32.mrf.mxu0
    %v2489 = vadd.f32 %v2388, %v2488
    %2490 = vdwg.mxu0
    %2491 = vmatprep.subr.mxu0 0.0
    %2492 = vmatpush1.msra.mxu0 0.0
    %2493 = vmatprep.subr.mxu0 0.0
    %2494 = vmatpush1.msra.mxu0 0.0
    %2495 = vmatprep.subr.mxu0 0.0
    %2496 = vmatpush1.msra.mxu0 0.0
    %2497 = vmatprep.subr.mxu0 0.0
    %2498 = vmatpush1.msra.mxu0 0.0
    %2499 = vmatprep.subr.mxu0 0.0
    %2500 = vmatpush1.msra.mxu0 0.0
    %2501 = vmatprep.subr.mxu0 0.0
    %2502 = vmatpush1.msra.mxu0 0.0
    %2503 = vmatprep.subr.mxu0 0.0
    %2504 = vmatpush1.msra.mxu0 0.0
    %2505 = vmatprep.subr.mxu0 0.0
    %2506 = vmatpush1.msra.mxu0 0.0
    %2507 = vmatprep.subr.mxu0 0.0
    %2508 = vmatpush1.msra.mxu0 0.0
    %2509 = vmatprep.subr.mxu0 0.0
    %2510 = vmatpush1.msra.mxu0 0.0
    %2511 = vmatprep.subr.mxu0 0.0
    %2512 = vmatpush1.msra.mxu0 0.0
    %2513 = vmatprep.subr.mxu0 0.0
    %2514 = vmatpush1.msra.mxu0 0.0
    %2515 = vmatprep.subr.mxu0 0.0
    %2516 = vmatpush1.msra.mxu0 0.0
    %2517 = vmatprep.subr.mxu0 0.0
    %2518 = vmatpush1.msra.mxu0 0.0
    %2519 = vmatprep.subr.mxu0 0.0
    %2520 = vmatpush1.msra.mxu0 0.0
    %2521 = vmatprep.subr.mxu0 %v2368
    %2522 = vmatpush1.msra.mxu0 %v2367
    %2523 = vmatprep.subr.mxu0 0.0
    %2524 = vmatpush2.msra.mxu0 0.0
    %2525 = vmatprep.subr.mxu0 0.0
    %2526 = vmatpush2.msra.mxu0 0.0
    %2527 = vmatprep.subr.mxu0 0.0
    %2528 = vmatpush2.msra.mxu0 0.0
    %2529 = vmatprep.subr.mxu0 0.0
    %2530 = vmatpush2.msra.mxu0 0.0
    %2531 = vmatprep.subr.mxu0 0.0
    %2532 = vmatpush2.msra.mxu0 0.0
    %2533 = vmatprep.subr.mxu0 0.0
    %2534 = vmatpush2.msra.mxu0 0.0
    %2535 = vmatprep.subr.mxu0 0.0
    %2536 = vmatpush2.msra.mxu0 0.0
    %2537 = vmatprep.subr.mxu0 0.0
    %2538 = vmatpush2.msra.mxu0 0.0
    %2539 = vmatprep.subr.mxu0 0.0
    %2540 = vmatpush2.msra.mxu0 0.0
    %2541 = vmatprep.subr.mxu0 0.0
    %2542 = vmatpush2.msra.mxu0 0.0
    %2543 = vmatprep.subr.mxu0 0.0
    %2544 = vmatpush2.msra.mxu0 0.0
    %2545 = vmatprep.subr.mxu0 0.0
    %2546 = vmatpush2.msra.mxu0 0.0
    %2547 = vmatprep.subr.mxu0 0.0
    %2548 = vmatpush2.msra.mxu0 0.0
    %2549 = vmatprep.subr.mxu0 0.0
    %2550 = vmatpush2.msra.mxu0 0.0
    %2551 = vmatprep.subr.mxu0 0.0
    %2552 = vmatpush2.msra.mxu0 0.0
    %2553 = vmatprep.subr.mxu0 0.0
    %2554 = vmatpush2.msra.mxu0 0.0
    %2555 = vmatprep.mubr.f32.mxu0 0.0
    %2556 = vmatmul.mubr.f32.gmra.mxu0 %v2391
    %v2557 = vpop.f32.mrf.mxu0
    %v2558 = vadd.f32 %v2376, %v2557
    %v2559 = vpop.f32.mrf.mxu0
    %v2560 = vadd.f32 %v2376, %v2559
    %2561 = vmatprep.mubr.f32.mxu0 0.0
    %2562 = vmatmul.mubr.f32.gmra.mxu0 %v2394
    %v2563 = vpop.f32.mrf.mxu0
    %v2564 = vadd.f32 %v2380, %v2563
    %v2565 = vpop.f32.mrf.mxu0
    %v2566 = vadd.f32 %v2380, %v2565
    %2567 = vmatprep.mubr.f32.mxu0 0.0
    %2568 = vmatmul.mubr.f32.gmra.mxu0 %v2397
    %v2569 = vpop.f32.mrf.mxu0
    %v2570 = vadd.f32 %v2384, %v2569
    %v2571 = vpop.f32.mrf.mxu0
    %v2572 = vadd.f32 %v2384, %v2571
    %2573 = vmatprep.mubr.f32.mxu0 0.0
    %2574 = vmatmul.mubr.f32.gmra.mxu0 %v2400
    %v2575 = vpop.f32.mrf.mxu0
    %v2576 = vadd.f32 %v2388, %v2575
    %v2577 = vpop.f32.mrf.mxu0
    %v2578 = vadd.f32 %v2388, %v2577
    %2579 = vdwg.mxu0
    %v2580 = vadd.f32 %v2469, %v2471
    %2581 = vadd.xlane.f32.xlu0 %v2580
    %v2582 = vpop.xlane.xlu0 %2581
    %v2583 = vadd.f32 %v2475, %v2477
    %2584 = vadd.xlane.f32.xlu0 %v2583
    %v2585 = vpop.xlane.xlu0 %2584
    %v2586 = vadd.f32 %v2481, %v2483
    %2587 = vadd.xlane.f32.xlu0 %v2586
    %v2588 = vpop.xlane.xlu0 %2587
    %v2589 = vadd.f32 %v2487, %v2489
    %2590 = vadd.xlane.f32.xlu0 %v2589
    %v2591 = vpop.xlane.xlu0 %2590
    %v2592 = vmul.f32 %v2469, %v2469
    %v2593 = vmul.f32 %v2471, %v2471
    %v2594 = vmul.f32 %v2475, %v2475
    %v2595 = vmul.f32 %v2477, %v2477
    %v2596 = vmul.f32 %v2481, %v2481
    %v2597 = vmul.f32 %v2483, %v2483
    %v2598 = vmul.f32 %v2487, %v2487
    %v2599 = vmul.f32 %v2489, %v2489
    %v2600 = vadd.f32 %v2592, %v2593
    %2601 = vadd.xlane.f32.xlu0 %v2600
    %v2602 = vpop.xlane.xlu0 %2601
    %v2603 = vadd.f32 %v2594, %v2595
    %2604 = vadd.xlane.f32.xlu0 %v2603
    %v2605 = vpop.xlane.xlu0 %2604
    %v2606 = vadd.f32 %v2596, %v2597
    %2607 = vadd.xlane.f32.xlu0 %v2606
    %v2608 = vpop.xlane.xlu0 %2607
    %v2609 = vadd.f32 %v2598, %v2599
    %2610 = vadd.xlane.f32.xlu0 %v2609
    %v2611 = vpop.xlane.xlu0 %2610
    %v2612 = vmul.f32 %v2582, 0.00390625
    %v2613 = vmul.f32 %v2585, 0.00390625
    %v2614 = vmul.f32 %v2588, 0.00390625
    %v2615 = vmul.f32 %v2591, 0.00390625
    %v2616 = vmul.f32 %v2602, 0.00390625
    %v2617 = vmul.f32 %v2605, 0.00390625
    %v2618 = vmul.f32 %v2608, 0.00390625
    %v2619 = vmul.f32 %v2611, 0.00390625
    %v2620 = vmul.f32 %v2612, %v2612
    %v2621 = vmul.f32 %v2613, %v2613
    %v2622 = vmul.f32 %v2614, %v2614
    %v2623 = vmul.f32 %v2615, %v2615
    %v2624 = vsub.f32 %v2616, %v2620
    %v2625 = vsub.f32 %v2617, %v2621
    %v2626 = vsub.f32 %v2618, %v2622
    %v2627 = vsub.f32 %v2619, %v2623
    %v2628 = vsub.f32 %v2469, %v2612
    %v2629 = vsub.f32 %v2471, %v2612
    %v2630 = vsub.f32 %v2475, %v2613
    %v2631 = vsub.f32 %v2477, %v2613
    %v2632 = vsub.f32 %v2481, %v2614
    %v2633 = vsub.f32 %v2483, %v2614
    %v2634 = vsub.f32 %v2487, %v2615
    %v2635 = vsub.f32 %v2489, %v2615
    %v2636 = vadd.f32 %v2624, 1e-05
    %v2637 = vadd.f32 %v2625, 1e-05
    %v2638 = vadd.f32 %v2626, 1e-05
    %v2639 = vadd.f32 %v2627, 1e-05
    %v2640 = vrsqrt.pop %v2636
    %v2641 = vrsqrt.pop %v2637
    %v2642 = vrsqrt.pop %v2638
    %v2643 = vrsqrt.pop %v2639
    %v2644 = vmul.f32 %v2628, %v2640
    %v2645 = vmul.f32 %v2629, %v2640
    %v2646 = vmul.f32 %v2630, %v2641
    %v2647 = vmul.f32 %v2631, %v2641
    %v2648 = vmul.f32 %v2632, %v2642
    %v2649 = vmul.f32 %v2633, %v2642
    %v2650 = vmul.f32 %v2634, %v2643
    %v2651 = vmul.f32 %v2635, %v2643
    %v2652 = vmul.f32 %v2644, %v1371
    %v2653 = vmul.f32 %v2645, %v1375
    %v2654 = vmul.f32 %v2646, %v1371
    %v2655 = vmul.f32 %v2647, %v1375
    %v2656 = vmul.f32 %v2648, %v1371
    %v2657 = vmul.f32 %v2649, %v1375
    %v2658 = vmul.f32 %v2650, %v1371
    %v2659 = vmul.f32 %v2651, %v1375
    %v2660 = vadd.f32 %v2652, %v1390
    %v2661 = vadd.f32 %v2653, %v1394
    %v2662 = vadd.f32 %v2654, %v1390
    %v2663 = vadd.f32 %v2655, %v1394
    %v2664 = vadd.f32 %v2656, %v1390
    %v2665 = vadd.f32 %v2657, %v1394
    %v2666 = vadd.f32 %v2658, %v1390
    %v2667 = vadd.f32 %v2659, %v1394
    %v2668 = vadd.f32 %v2558, %v2560
    %2669 = vadd.xlane.f32.xlu0 %v2668
    %v2670 = vpop.xlane.xlu0 %2669
    %v2671 = vadd.f32 %v2564, %v2566
    %2672 = vadd.xlane.f32.xlu0 %v2671
    %v2673 = vpop.xlane.xlu0 %2672
    %v2674 = vadd.f32 %v2570, %v2572
    %2675 = vadd.xlane.f32.xlu0 %v2674
    %v2676 = vpop.xlane.xlu0 %2675
    %v2677 = vadd.f32 %v2576, %v2578
    %2678 = vadd.xlane.f32.xlu0 %v2677
    %v2679 = vpop.xlane.xlu0 %2678
    %v2680 = vmul.f32 %v2558, %v2558
    %v2681 = vmul.f32 %v2560, %v2560
    %v2682 = vmul.f32 %v2564, %v2564
    %v2683 = vmul.f32 %v2566, %v2566
    %v2684 = vmul.f32 %v2570, %v2570
    %v2685 = vmul.f32 %v2572, %v2572
    %v2686 = vmul.f32 %v2576, %v2576
    %v2687 = vmul.f32 %v2578, %v2578
    %v2688 = vadd.f32 %v2680, %v2681
    %2689 = vadd.xlane.f32.xlu0 %v2688
    %v2690 = vpop.xlane.xlu0 %2689
    %v2691 = vadd.f32 %v2682, %v2683
    %2692 = vadd.xlane.f32.xlu0 %v2691
    %v2693 = vpop.xlane.xlu0 %2692
    %v2694 = vadd.f32 %v2684, %v2685
    %2695 = vadd.xlane.f32.xlu0 %v2694
    %v2696 = vpop.xlane.xlu0 %2695
    %v2697 = vadd.f32 %v2686, %v2687
    %2698 = vadd.xlane.f32.xlu0 %v2697
    %v2699 = vpop.xlane.xlu0 %2698
    %v2700 = vmul.f32 %v2670, 0.00390625
    %v2701 = vmul.f32 %v2673, 0.00390625
    %v2702 = vmul.f32 %v2676, 0.00390625
    %v2703 = vmul.f32 %v2679, 0.00390625
    %v2704 = vmul.f32 %v2690, 0.00390625
    %v2705 = vmul.f32 %v2693, 0.00390625
    %v2706 = vmul.f32 %v2696, 0.00390625
    %v2707 = vmul.f32 %v2699, 0.00390625
    %v2708 = vmul.f32 %v2700, %v2700
    %v2709 = vmul.f32 %v2701, %v2701
    %v2710 = vmul.f32 %v2702, %v2702
    %v2711 = vmul.f32 %v2703, %v2703
    %v2712 = vsub.f32 %v2704, %v2708
    %v2713 = vsub.f32 %v2705, %v2709
    %v2714 = vsub.f32 %v2706, %v2710
    %v2715 = vsub.f32 %v2707, %v2711
    %v2716 = vsub.f32 %v2558, %v2700
    %v2717 = vsub.f32 %v2560, %v2700
    %v2718 = vsub.f32 %v2564, %v2701
    %v2719 = vsub.f32 %v2566, %v2701
    %v2720 = vsub.f32 %v2570, %v2702
    %v2721 = vsub.f32 %v2572, %v2702
    %v2722 = vsub.f32 %v2576, %v2703
    %v2723 = vsub.f32 %v2578, %v2703
    %v2724 = vadd.f32 %v2712, 1e-05
    %v2725 = vadd.f32 %v2713, 1e-05
    %v2726 = vadd.f32 %v2714, 1e-05
    %v2727 = vadd.f32 %v2715, 1e-05
    %v2728 = vrsqrt.pop %v2724
    %v2729 = vrsqrt.pop %v2725
    %v2730 = vrsqrt.pop %v2726
    %v2731 = vrsqrt.pop %v2727
    %v2732 = vmul.f32 %v2716, %v2728
    %v2733 = vmul.f32 %v2717, %v2728
    %v2734 = vmul.f32 %v2718, %v2729
    %v2735 = vmul.f32 %v2719, %v2729
    %v2736 = vmul.f32 %v2720, %v2730
    %v2737 = vmul.f32 %v2721, %v2730
    %v2738 = vmul.f32 %v2722, %v2731
    %v2739 = vmul.f32 %v2723, %v2731
    %v2740 = vmul.f32 %v2732, %v1371
    %v2741 = vmul.f32 %v2733, %v1375
    %v2742 = vmul.f32 %v2734, %v1371
    %v2743 = vmul.f32 %v2735, %v1375
    %v2744 = vmul.f32 %v2736, %v1371
    %v2745 = vmul.f32 %v2737, %v1375
    %v2746 = vmul.f32 %v2738, %v1371
    %v2747 = vmul.f32 %v2739, %v1375
    %v2748 = vadd.f32 %v2740, %v1390
    %v2749 = vadd.f32 %v2741, %v1394
    %v2750 = vadd.f32 %v2742, %v1390
    %v2751 = vadd.f32 %v2743, %v1394
    %v2752 = vadd.f32 %v2744, %v1390
    %v2753 = vadd.f32 %v2745, %v1394
    %v2754 = vadd.f32 %v2746, %v1390
    %v2755 = vadd.f32 %v2747, %v1394
    %v2756 = vmul.f32 %v2660, 0.01
    %v2757 = vmul.f32 %v2661, 0.01
    %v2758 = vmul.f32 %v2748, 0.01
    %v2759 = vmul.f32 %v2749, 0.01
    %v2760 = vmul.f32 %v2662, 0.01
    %v2761 = vmul.f32 %v2663, 0.01
    %v2762 = vmul.f32 %v2750, 0.01
    %v2763 = vmul.f32 %v2751, 0.01
    %v2764 = vmul.f32 %v2664, 0.01
    %v2765 = vmul.f32 %v2665, 0.01
    %v2766 = vmul.f32 %v2752, 0.01
    %v2767 = vmul.f32 %v2753, 0.01
    %v2768 = vmul.f32 %v2666, 0.01
    %v2769 = vmul.f32 %v2667, 0.01
    %v2770 = vmul.f32 %v2754, 0.01
    %v2771 = vmul.f32 %v2755, 0.01
    %v2772 = vmax.f32 %v2660, %v2756
    %v2773 = vmax.f32 %v2661, %v2757
    %v2774 = vmax.f32 %v2748, %v2758
    %v2775 = vmax.f32 %v2749, %v2759
    %v2776 = vmax.f32 %v2662, %v2760
    %v2777 = vmax.f32 %v2663, %v2761
    %v2778 = vmax.f32 %v2750, %v2762
    %v2779 = vmax.f32 %v2751, %v2763
    %v2780 = vmax.f32 %v2664, %v2764
    %v2781 = vmax.f32 %v2665, %v2765
    %v2782 = vmax.f32 %v2752, %v2766
    %v2783 = vmax.f32 %v2753, %v2767
    %v2784 = vmax.f32 %v2666, %v2768
    %v2785 = vmax.f32 %v2667, %v2769
    %v2786 = vmax.f32 %v2754, %v2770
    %v2787 = vmax.f32 %v2755, %v2771
    %v2788 = vstv %s2369
    %v2789 = vmul.f32 %v2788, %v2772
    %v2790 = vmul.f32 %v2788, %v2773
    %v2791 = vmul.f32 %v2788, %v2774
    %v2792 = vmul.f32 %v2788, %v2775
    %v2793 = vmul.f32 %v2788, %v2776
    %v2794 = vmul.f32 %v2788, %v2777
    %v2795 = vmul.f32 %v2788, %v2778
    %v2796 = vmul.f32 %v2788, %v2779
    %v2797 = vmul.f32 %v2788, %v2780
    %v2798 = vmul.f32 %v2788, %v2781
    %v2799 = vmul.f32 %v2788, %v2782
    %v2800 = vmul.f32 %v2788, %v2783
    %v2801 = vmul.f32 %v2788, %v2784
    %v2802 = vmul.f32 %v2788, %v2785
    %v2803 = vmul.f32 %v2788, %v2786
    %v2804 = vmul.f32 %v2788, %v2787
    %s2805 = scalar_lea.vmem %s4, 16
    %2806 = vst [vmem:[%s2805] sm:$0xff] %v2365
    %2807 = vst [vmem:[%s2805 + $0x8] sm:$0xff] %v2366
    %s2808 = scalar_lea.vmem %s4, 64
    %2809 = vst [vmem:[%s2808] sm:$0xff] %v2367
    %2810 = vst [vmem:[%s2808 + $0x8] sm:$0xff] %v2368
    %v2811 = vadd.f32 %v416, %v2200
    %v2812 = vadd.f32 %v418, %v2202
    %v2813 = vadd.f32 %v505, %v2295
    %v2814 = vadd.f32 %v507, %v2297
    %v2815 = vadd.f32 %v422, %v2206
    %v2816 = vadd.f32 %v424, %v2208
    %v2817 = vadd.f32 %v511, %v2301
    %v2818 = vadd.f32 %v513, %v2303
    %v2819 = vadd.f32 %v428, %v2212
    %v2820 = vadd.f32 %v430, %v2214
    %v2821 = vadd.f32 %v517, %v2307
    %v2822 = vadd.f32 %v519, %v2309
    %v2823 = vadd.f32 %v434, %v2218
    %v2824 = vadd.f32 %v436, %v2220
    %v2825 = vadd.f32 %v523, %v2313
    %v2826 = vadd.f32 %v525, %v2315
    %v2827 = vadd.f32 %v2811, %v2812
    %2828 = vadd.xlane.f32.xlu0 %v2827
    %v2829 = vpop.xlane.xlu0 %2828
    %v2830 = vadd.f32 %v2815, %v2816
    %2831 = vadd.xlane.f32.xlu0 %v2830
    %v2832 = vpop.xlane.xlu0 %2831
    %v2833 = vadd.f32 %v2819, %v2820
    %2834 = vadd.xlane.f32.xlu0 %v2833
    %v2835 = vpop.xlane.xlu0 %2834
    %v2836 = vadd.f32 %v2823, %v2824
    %2837 = vadd.xlane.f32.xlu0 %v2836
    %v2838 = vpop.xlane.xlu0 %2837
    %v2839 = vmul.f32 %v2811, %v2811
    %v2840 = vmul.f32 %v2812, %v2812
    %v2841 = vmul.f32 %v2815, %v2815
    %v2842 = vmul.f32 %v2816, %v2816
    %v2843 = vmul.f32 %v2819, %v2819
    %v2844 = vmul.f32 %v2820, %v2820
    %v2845 = vmul.f32 %v2823, %v2823
    %v2846 = vmul.f32 %v2824, %v2824
    %v2847 = vadd.f32 %v2839, %v2840
    %2848 = vadd.xlane.f32.xlu0 %v2847
    %v2849 = vpop.xlane.xlu0 %2848
    %v2850 = vadd.f32 %v2841, %v2842
    %2851 = vadd.xlane.f32.xlu0 %v2850
    %v2852 = vpop.xlane.xlu0 %2851
    %v2853 = vadd.f32 %v2843, %v2844
    %2854 = vadd.xlane.f32.xlu0 %v2853
    %v2855 = vpop.xlane.xlu0 %2854
    %v2856 = vadd.f32 %v2845, %v2846
    %2857 = vadd.xlane.f32.xlu0 %v2856
    %v2858 = vpop.xlane.xlu0 %2857
    %v2859 = vmul.f32 %v2829, 0.00390625
    %v2860 = vmul.f32 %v2832, 0.00390625
    %v2861 = vmul.f32 %v2835, 0.00390625
    %v2862 = vmul.f32 %v2838, 0.00390625
    %v2863 = vmul.f32 %v2849, 0.00390625
    %v2864 = vmul.f32 %v2852, 0.00390625
    %v2865 = vmul.f32 %v2855, 0.00390625
    %v2866 = vmul.f32 %v2858, 0.00390625
    %v2867 = vmul.f32 %v2859, %v2859
    %v2868 = vmul.f32 %v2860, %v2860
    %v2869 = vmul.f32 %v2861, %v2861
    %v2870 = vmul.f32 %v2862, %v2862
    %v2871 = vsub.f32 %v2863, %v2867
    %v2872 = vsub.f32 %v2864, %v2868
    %v2873 = vsub.f32 %v2865, %v2869
    %v2874 = vsub.f32 %v2866, %v2870
    %v2875 = vsub.f32 %v2811, %v2859
    %v2876 = vsub.f32 %v2812, %v2859
    %v2877 = vsub.f32 %v2815, %v2860
    %v2878 = vsub.f32 %v2816, %v2860
    %v2879 = vsub.f32 %v2819, %v2861
    %v2880 = vsub.f32 %v2820, %v2861
    %v2881 = vsub.f32 %v2823, %v2862
    %v2882 = vsub.f32 %v2824, %v2862
    %v2883 = vadd.f32 %v2871, 1e-05
    %v2884 = vadd.f32 %v2872, 1e-05
    %v2885 = vadd.f32 %v2873, 1e-05
    %v2886 = vadd.f32 %v2874, 1e-05
    %v2887 = vrsqrt.pop %v2883
    %v2888 = vrsqrt.pop %v2884
    %v2889 = vrsqrt.pop %v2885
    %v2890 = vrsqrt.pop %v2886
    %v2891 = vmul.f32 %v2875, %v2887
    %v2892 = vmul.f32 %v2876, %v2887
    %v2893 = vmul.f32 %v2877, %v2888
    %v2894 = vmul.f32 %v2878, %v2888
    %v2895 = vmul.f32 %v2879, %v2889
    %v2896 = vmul.f32 %v2880, %v2889
    %v2897 = vmul.f32 %v2881, %v2890
    %v2898 = vmul.f32 %v2882, %v2890
    %v2899 = vmul.f32 %v2891, %v1639
    %v2900 = vmul.f32 %v2892, %v1643
    %v2901 = vmul.f32 %v2893, %v1639
    %v2902 = vmul.f32 %v2894, %v1643
    %v2903 = vmul.f32 %v2895, %v1639
    %v2904 = vmul.f32 %v2896, %v1643
    %v2905 = vmul.f32 %v2897, %v1639
    %v2906 = vmul.f32 %v2898, %v1643
    %v2907 = vadd.f32 %v2899, %v1658
    %v2908 = vadd.f32 %v2900, %v1662
    %v2909 = vadd.f32 %v2901, %v1658
    %v2910 = vadd.f32 %v2902, %v1662
    %v2911 = vadd.f32 %v2903, %v1658
    %v2912 = vadd.f32 %v2904, %v1662
    %v2913 = vadd.f32 %v2905, %v1658
    %v2914 = vadd.f32 %v2906, %v1662
    %v2915 = vadd.f32 %v2813, %v2814
    %2916 = vadd.xlane.f32.xlu0 %v2915
    %v2917 = vpop.xlane.xlu0 %2916
    %v2918 = vadd.f32 %v2817, %v2818
    %2919 = vadd.xlane.f32.xlu0 %v2918
    %v2920 = vpop.xlane.xlu0 %2919
    %v2921 = vadd.f32 %v2821, %v2822
    %2922 = vadd.xlane.f32.xlu0 %v2921
    %v2923 = vpop.xlane.xlu0 %2922
    %v2924 = vadd.f32 %v2825, %v2826
    %2925 = vadd.xlane.f32.xlu0 %v2924
    %v2926 = vpop.xlane.xlu0 %2925
    %v2927 = vmul.f32 %v2813, %v2813
    %v2928 = vmul.f32 %v2814, %v2814
    %v2929 = vmul.f32 %v2817, %v2817
    %v2930 = vmul.f32 %v2818, %v2818
    %v2931 = vmul.f32 %v2821, %v2821
    %v2932 = vmul.f32 %v2822, %v2822
    %v2933 = vmul.f32 %v2825, %v2825
    %v2934 = vmul.f32 %v2826, %v2826
    %v2935 = vadd.f32 %v2927, %v2928
    %2936 = vadd.xlane.f32.xlu0 %v2935
    %v2937 = vpop.xlane.xlu0 %2936
    %v2938 = vadd.f32 %v2929, %v2930
    %2939 = vadd.xlane.f32.xlu0 %v2938
    %v2940 = vpop.xlane.xlu0 %2939
    %v2941 = vadd.f32 %v2931, %v2932
    %2942 = vadd.xlane.f32.xlu0 %v2941
    %v2943 = vpop.xlane.xlu0 %2942
    %v2944 = vadd.f32 %v2933, %v2934
    %2945 = vadd.xlane.f32.xlu0 %v2944
    %v2946 = vpop.xlane.xlu0 %2945
    %v2947 = vmul.f32 %v2917, 0.00390625
    %v2948 = vmul.f32 %v2920, 0.00390625
    %v2949 = vmul.f32 %v2923, 0.00390625
    %v2950 = vmul.f32 %v2926, 0.00390625
    %v2951 = vmul.f32 %v2937, 0.00390625
    %v2952 = vmul.f32 %v2940, 0.00390625
    %v2953 = vmul.f32 %v2943, 0.00390625
    %v2954 = vmul.f32 %v2946, 0.00390625
    %v2955 = vmul.f32 %v2947, %v2947
    %v2956 = vmul.f32 %v2948, %v2948
    %v2957 = vmul.f32 %v2949, %v2949
    %v2958 = vmul.f32 %v2950, %v2950
    %v2959 = vsub.f32 %v2951, %v2955
    %v2960 = vsub.f32 %v2952, %v2956
    %v2961 = vsub.f32 %v2953, %v2957
    %v2962 = vsub.f32 %v2954, %v2958
    %v2963 = vsub.f32 %v2813, %v2947
    %v2964 = vsub.f32 %v2814, %v2947
    %v2965 = vsub.f32 %v2817, %v2948
    %v2966 = vsub.f32 %v2818, %v2948
    %v2967 = vsub.f32 %v2821, %v2949
    %v2968 = vsub.f32 %v2822, %v2949
    %v2969 = vsub.f32 %v2825, %v2950
    %v2970 = vsub.f32 %v2826, %v2950
    %v2971 = vadd.f32 %v2959, 1e-05
    %v2972 = vadd.f32 %v2960, 1e-05
    %v2973 = vadd.f32 %v2961, 1e-05
    %v2974 = vadd.f32 %v2962, 1e-05
    %v2975 = vrsqrt.pop %v2971
    %v2976 = vrsqrt.pop %v2972
    %v2977 = vrsqrt.pop %v2973
    %v2978 = vrsqrt.pop %v2974
    %v2979 = vmul.f32 %v2963, %v2975
    %v2980 = vmul.f32 %v2964, %v2975
    %v2981 = vmul.f32 %v2965, %v2976
    %v2982 = vmul.f32 %v2966, %v2976
    %v2983 = vmul.f32 %v2967, %v2977
    %v2984 = vmul.f32 %v2968, %v2977
    %v2985 = vmul.f32 %v2969, %v2978
    %v2986 = vmul.f32 %v2970, %v2978
    %v2987 = vmul.f32 %v2979, %v1639
    %v2988 = vmul.f32 %v2980, %v1643
    %v2989 = vmul.f32 %v2981, %v1639
    %v2990 = vmul.f32 %v2982, %v1643
    %v2991 = vmul.f32 %v2983, %v1639
    %v2992 = vmul.f32 %v2984, %v1643
    %v2993 = vmul.f32 %v2985, %v1639
    %v2994 = vmul.f32 %v2986, %v1643
    %v2995 = vadd.f32 %v2987, %v1658
    %v2996 = vadd.f32 %v2988, %v1662
    %v2997 = vadd.f32 %v2989, %v1658
    %v2998 = vadd.f32 %v2990, %v1662
    %v2999 = vadd.f32 %v2991, %v1658
    %v3000 = vadd.f32 %v2992, %v1662
    %v3001 = vadd.f32 %v2993, %v1658
    %v3002 = vadd.f32 %v2994, %v1662
    %v3003 = vmul.f32 %v2907, 0.01
    %v3004 = vmul.f32 %v2908, 0.01
    %v3005 = vmul.f32 %v2995, 0.01
    %v3006 = vmul.f32 %v2996, 0.01
    %v3007 = vmul.f32 %v2909, 0.01
    %v3008 = vmul.f32 %v2910, 0.01
    %v3009 = vmul.f32 %v2997, 0.01
    %v3010 = vmul.f32 %v2998, 0.01
    %v3011 = vmul.f32 %v2911, 0.01
    %v3012 = vmul.f32 %v2912, 0.01
    %v3013 = vmul.f32 %v2999, 0.01
    %v3014 = vmul.f32 %v3000, 0.01
    %v3015 = vmul.f32 %v2913, 0.01
    %v3016 = vmul.f32 %v2914, 0.01
    %v3017 = vmul.f32 %v3001, 0.01
    %v3018 = vmul.f32 %v3002, 0.01
    %v3019 = vmax.f32 %v2907, %v3003
    %v3020 = vmax.f32 %v2908, %v3004
    %v3021 = vmax.f32 %v2995, %v3005
    %v3022 = vmax.f32 %v2996, %v3006
    %v3023 = vmax.f32 %v2909, %v3007
    %v3024 = vmax.f32 %v2910, %v3008
    %v3025 = vmax.f32 %v2997, %v3009
    %v3026 = vmax.f32 %v2998, %v3010
    %v3027 = vmax.f32 %v2911, %v3011
    %v3028 = vmax.f32 %v2912, %v3012
    %v3029 = vmax.f32 %v2999, %v3013
    %v3030 = vmax.f32 %v3000, %v3014
    %v3031 = vmax.f32 %v2913, %v3015
    %v3032 = vmax.f32 %v2914, %v3016
    %v3033 = vmax.f32 %v3001, %v3017
    %v3034 = vmax.f32 %v3002, %v3018
    %s3035 = sld [smem:[#allocation2 + $0x1]]
    %v3036 = vstv %s3035
    %v3037 = vmul.f32 %v3036, %v3019
    %v3038 = vmul.f32 %v3036, %v3020
    %v3039 = vmul.f32 %v3036, %v3021
    %v3040 = vmul.f32 %v3036, %v3022
    %v3041 = vmul.f32 %v3036, %v3023
    %v3042 = vmul.f32 %v3036, %v3024
    %v3043 = vmul.f32 %v3036, %v3025
    %v3044 = vmul.f32 %v3036, %v3026
    %v3045 = vmul.f32 %v3036, %v3027
    %v3046 = vmul.f32 %v3036, %v3028
    %v3047 = vmul.f32 %v3036, %v3029
    %v3048 = vmul.f32 %v3036, %v3030
    %v3049 = vmul.f32 %v3036, %v3031
    %v3050 = vmul.f32 %v3036, %v3032
    %v3051 = vmul.f32 %v3036, %v3033
    %v3052 = vmul.f32 %v3036, %v3034
    %v3053 = vadd.f32 %v2789, %v3037
    %v3054 = vadd.f32 %v2790, %v3038
    %v3055 = vadd.f32 %v2791, %v3039
    %v3056 = vadd.f32 %v2792, %v3040
    %v3057 = vadd.f32 %v2793, %v3041
    %v3058 = vadd.f32 %v2794, %v3042
    %v3059 = vadd.f32 %v2795, %v3043
    %v3060 = vadd.f32 %v2796, %v3044
    %v3061 = vadd.f32 %v2797, %v3045
    %v3062 = vadd.f32 %v2798, %v3046
    %v3063 = vadd.f32 %v2799, %v3047
    %v3064 = vadd.f32 %v2800, %v3048
    %v3065 = vadd.f32 %v2801, %v3049
    %v3066 = vadd.f32 %v2802, %v3050
    %v3067 = vadd.f32 %v2803, %v3051
    %v3068 = vadd.f32 %v2804, %v3052
    %v3069 = vld [vmem:[%s2 + $0xc8] sm:$0xff]
    %v3070 = vld [vmem:[%s2 + $0xd0] sm:$0xff]
    %v3071 = vld [vmem:[%s2 + $0xd8] sm:$0xff]
    %v3072 = vld [vmem:[%s2 + $0xe0] sm:$0xff]
    %v3073 = vld [vmem:[%s3 + $0x10] sm:$0xff]
    %v3074 = vld [vmem:[%s3 + $0x20] sm:$0xff]
    %v3075 = vld [vmem:[%s3 + $0x30] sm:$0xff]
    %v3076 = vld [vmem:[%s3 + $0x40] sm:$0xff]
    %3078 = vset.pattern.permute.xlu0 6
    %3079 = vperm.xlu0 %3078, %v3073
    %v3080 = vpop.permute.xlu0 %3079
    %3083 = vset.pattern.permute.xlu0 6
    %3084 = vperm.xlu0 %3083, %v3074
    %v3085 = vpop.permute.xlu0 %3084
    %3088 = vset.pattern.permute.xlu0 6
    %3089 = vperm.xlu0 %3088, %v3075
    %v3090 = vpop.permute.xlu0 %3089
    %3093 = vset.pattern.permute.xlu0 6
    %3094 = vperm.xlu0 %3093, %v3076
    %v3095 = vpop.permute.xlu0 %3094
    %v3098 = vsel %vm336, %v3069, 0
    %v3101 = vsel %vm336, %v3070, 0
    %v3104 = vsel %vm336, %v3071, 0
    %v3107 = vsel %vm336, %v3072, 0
    %3109 = vmatprep.subr.mxu0 0.0
    %3110 = vmatpush1.msra.mxu0 0.0
    %3111 = vmatprep.subr.mxu0 0.0
    %3112 = vmatpush1.msra.mxu0 0.0
    %3113 = vmatprep.subr.mxu0 0.0
    %3114 = vmatpush1.msra.mxu0 0.0
    %3115 = vmatprep.subr.mxu0 0.0
    %3116 = vmatpush1.msra.mxu0 0.0
    %3117 = vmatprep.subr.mxu0 0.0
    %3118 = vmatpush1.msra.mxu0 0.0
    %3119 = vmatprep.subr.mxu0 0.0
    %3120 = vmatpush1.msra.mxu0 0.0
    %3121 = vmatprep.subr.mxu0 0.0
    %3122 = vmatpush1.msra.mxu0 0.0
    %3123 = vmatprep.subr.mxu0 0.0
    %3124 = vmatpush1.msra.mxu0 0.0
    %3125 = vmatprep.subr.mxu0 0.0
    %3126 = vmatpush1.msra.mxu0 0.0
    %3127 = vmatprep.subr.mxu0 0.0
    %3128 = vmatpush1.msra.mxu0 0.0
    %3129 = vmatprep.subr.mxu0 0.0
    %3130 = vmatpush1.msra.mxu0 0.0
    %3131 = vmatprep.subr.mxu0 0.0
    %3132 = vmatpush1.msra.mxu0 0.0
    %3133 = vmatprep.subr.mxu0 %v3066
    %3134 = vmatpush1.msra.mxu0 %v3065
    %3135 = vmatprep.subr.mxu0 %v3062
    %3136 = vmatpush1.msra.mxu0 %v3061
    %3137 = vmatprep.subr.mxu0 %v3058
    %3138 = vmatpush1.msra.mxu0 %v3057
    %3139 = vmatprep.subr.mxu0 %v3054
    %3140 = vmatpush1.msra.mxu0 %v3053
    %3141 = vmatprep.subr.mxu0 0.0
    %3142 = vmatpush2.msra.mxu0 0.0
    %3143 = vmatprep.subr.mxu0 0.0
    %3144 = vmatpush2.msra.mxu0 0.0
    %3145 = vmatprep.subr.mxu0 0.0
    %3146 = vmatpush2.msra.mxu0 0.0
    %3147 = vmatprep.subr.mxu0 0.0
    %3148 = vmatpush2.msra.mxu0 0.0
    %3149 = vmatprep.subr.mxu0 0.0
    %3150 = vmatpush2.msra.mxu0 0.0
    %3151 = vmatprep.subr.mxu0 0.0
    %3152 = vmatpush2.msra.mxu0 0.0
    %3153 = vmatprep.subr.mxu0 0.0
    %3154 = vmatpush2.msra.mxu0 0.0
    %3155 = vmatprep.subr.mxu0 0.0
    %3156 = vmatpush2.msra.mxu0 0.0
    %3157 = vmatprep.subr.mxu0 0.0
    %3158 = vmatpush2.msra.mxu0 0.0
    %3159 = vmatprep.subr.mxu0 0.0
    %3160 = vmatpush2.msra.mxu0 0.0
    %3161 = vmatprep.subr.mxu0 0.0
    %3162 = vmatpush2.msra.mxu0 0.0
    %3163 = vmatprep.subr.mxu0 0.0
    %3164 = vmatpush2.msra.mxu0 0.0
    %3165 = vmatprep.subr.mxu0 0.0
    %3166 = vmatpush2.msra.mxu0 0.0
    %3167 = vmatprep.subr.mxu0 0.0
    %3168 = vmatpush2.msra.mxu0 0.0
    %3169 = vmatprep.subr.mxu0 0.0
    %3170 = vmatpush2.msra.mxu0 0.0
    %3171 = vmatprep.subr.mxu0 0.0
    %3172 = vmatpush2.msra.mxu0 0.0
    %3173 = vmatprep.mubr.f32.mxu0 0.0
    %3174 = vmatmul.mubr.f32.gmra.mxu0 %v3098
    %v3175 = vpop.f32.mrf.mxu0
    %v3176 = vadd.f32 %v3080, %v3175
    %v3177 = vpop.f32.mrf.mxu0
    %v3178 = vadd.f32 %v3080, %v3177
    %3179 = vmatprep.mubr.f32.mxu0 0.0
    %3180 = vmatmul.mubr.f32.gmra.mxu0 %v3101
    %v3181 = vpop.f32.mrf.mxu0
    %v3182 = vadd.f32 %v3085, %v3181
    %v3183 = vpop.f32.mrf.mxu0
    %v3184 = vadd.f32 %v3085, %v3183
    %3185 = vmatprep.mubr.f32.mxu0 0.0
    %3186 = vmatmul.mubr.f32.gmra.mxu0 %v3104
    %v3187 = vpop.f32.mrf.mxu0
    %v3188 = vadd.f32 %v3090, %v3187
    %v3189 = vpop.f32.mrf.mxu0
    %v3190 = vadd.f32 %v3090, %v3189
    %3191 = vmatprep.mubr.f32.mxu0 0.0
    %3192 = vmatmul.mubr.f32.gmra.mxu0 %v3107
    %v3193 = vpop.f32.mrf.mxu0
    %v3194 = vadd.f32 %v3095, %v3193
    %v3195 = vpop.f32.mrf.mxu0
    %v3196 = vadd.f32 %v3095, %v3195
    %3197 = vdwg.mxu0
    %3198 = vmatprep.subr.mxu0 0.0
    %3199 = vmatpush1.msra.mxu0 0.0
    %3200 = vmatprep.subr.mxu0 0.0
    %3201 = vmatpush1.msra.mxu0 0.0
    %3202 = vmatprep.subr.mxu0 0.0
    %3203 = vmatpush1.msra.mxu0 0.0
    %3204 = vmatprep.subr.mxu0 0.0
    %3205 = vmatpush1.msra.mxu0 0.0
    %3206 = vmatprep.subr.mxu0 0.0
    %3207 = vmatpush1.msra.mxu0 0.0
    %3208 = vmatprep.subr.mxu0 0.0
    %3209 = vmatpush1.msra.mxu0 0.0
    %3210 = vmatprep.subr.mxu0 0.0
    %3211 = vmatpush1.msra.mxu0 0.0
    %3212 = vmatprep.subr.mxu0 0.0
    %3213 = vmatpush1.msra.mxu0 0.0
    %3214 = vmatprep.subr.mxu0 0.0
    %3215 = vmatpush1.msra.mxu0 0.0
    %3216 = vmatprep.subr.mxu0 0.0
    %3217 = vmatpush1.msra.mxu0 0.0
    %3218 = vmatprep.subr.mxu0 0.0
    %3219 = vmatpush1.msra.mxu0 0.0
    %3220 = vmatprep.subr.mxu0 0.0
    %3221 = vmatpush1.msra.mxu0 0.0
    %3222 = vmatprep.subr.mxu0 %v3068
    %3223 = vmatpush1.msra.mxu0 %v3067
    %3224 = vmatprep.subr.mxu0 %v3064
    %3225 = vmatpush1.msra.mxu0 %v3063
    %3226 = vmatprep.subr.mxu0 %v3060
    %3227 = vmatpush1.msra.mxu0 %v3059
    %3228 = vmatprep.subr.mxu0 %v3056
    %3229 = vmatpush1.msra.mxu0 %v3055
    %3230 = vmatprep.subr.mxu0 0.0
    %3231 = vmatpush2.msra.mxu0 0.0
    %3232 = vmatprep.subr.mxu0 0.0
    %3233 = vmatpush2.msra.mxu0 0.0
    %3234 = vmatprep.subr.mxu0 0.0
    %3235 = vmatpush2.msra.mxu0 0.0
    %3236 = vmatprep.subr.mxu0 0.0
    %3237 = vmatpush2.msra.mxu0 0.0
    %3238 = vmatprep.subr.mxu0 0.0
    %3239 = vmatpush2.msra.mxu0 0.0
    %3240 = vmatprep.subr.mxu0 0.0
    %3241 = vmatpush2.msra.mxu0 0.0
    %3242 = vmatprep.subr.mxu0 0.0
    %3243 = vmatpush2.msra.mxu0 0.0
    %3244 = vmatprep.subr.mxu0 0.0
    %3245 = vmatpush2.msra.mxu0 0.0
    %3246 = vmatprep.subr.mxu0 0.0
    %3247 = vmatpush2.msra.mxu0 0.0
    %3248 = vmatprep.subr.mxu0 0.0
    %3249 = vmatpush2.msra.mxu0 0.0
    %3250 = vmatprep.subr.mxu0 0.0
    %3251 = vmatpush2.msra.mxu0 0.0
    %3252 = vmatprep.subr.mxu0 0.0
    %3253 = vmatpush2.msra.mxu0 0.0
    %3254 = vmatprep.subr.mxu0 0.0
    %3255 = vmatpush2.msra.mxu0 0.0
    %3256 = vmatprep.subr.mxu0 0.0
    %3257 = vmatpush2.msra.mxu0 0.0
    %3258 = vmatprep.subr.mxu0 0.0
    %3259 = vmatpush2.msra.mxu0 0.0
    %3260 = vmatprep.subr.mxu0 0.0
    %3261 = vmatpush2.msra.mxu0 0.0
    %3262 = vmatprep.mubr.f32.mxu0 0.0
    %3263 = vmatmul.mubr.f32.gmra.mxu0 %v3098
    %v3264 = vpop.f32.mrf.mxu0
    %v3265 = vadd.f32 %v3080, %v3264
    %v3266 = vpop.f32.mrf.mxu0
    %v3267 = vadd.f32 %v3080, %v3266
    %3268 = vmatprep.mubr.f32.mxu0 0.0
    %3269 = vmatmul.mubr.f32.gmra.mxu0 %v3101
    %v3270 = vpop.f32.mrf.mxu0
    %v3271 = vadd.f32 %v3085, %v3270
    %v3272 = vpop.f32.mrf.mxu0
    %v3273 = vadd.f32 %v3085, %v3272
    %3274 = vmatprep.mubr.f32.mxu0 0.0
    %3275 = vmatmul.mubr.f32.gmra.mxu0 %v3104
    %v3276 = vpop.f32.mrf.mxu0
    %v3277 = vadd.f32 %v3090, %v3276
    %v3278 = vpop.f32.mrf.mxu0
    %v3279 = vadd.f32 %v3090, %v3278
    %3280 = vmatprep.mubr.f32.mxu0 0.0
    %3281 = vmatmul.mubr.f32.gmra.mxu0 %v3107
    %v3282 = vpop.f32.mrf.mxu0
    %v3283 = vadd.f32 %v3095, %v3282
    %v3284 = vpop.f32.mrf.mxu0
    %v3285 = vadd.f32 %v3095, %v3284
    %3286 = vdwg.mxu0
    %v3287 = vmul.f32 %v3176, 0.01
    %v3288 = vmul.f32 %v3178, 0.01
    %v3289 = vmul.f32 %v3265, 0.01
    %v3290 = vmul.f32 %v3267, 0.01
    %v3291 = vmul.f32 %v3182, 0.01
    %v3292 = vmul.f32 %v3184, 0.01
    %v3293 = vmul.f32 %v3271, 0.01
    %v3294 = vmul.f32 %v3273, 0.01
    %v3295 = vmul.f32 %v3188, 0.01
    %v3296 = vmul.f32 %v3190, 0.01
    %v3297 = vmul.f32 %v3277, 0.01
    %v3298 = vmul.f32 %v3279, 0.01
    %v3299 = vmul.f32 %v3194, 0.01
    %v3300 = vmul.f32 %v3196, 0.01
    %v3301 = vmul.f32 %v3283, 0.01
    %v3302 = vmul.f32 %v3285, 0.01
    %v3303 = vmax.f32 %v3176, %v3287
    %v3304 = vmax.f32 %v3178, %v3288
    %v3305 = vmax.f32 %v3265, %v3289
    %v3306 = vmax.f32 %v3267, %v3290
    %v3307 = vmax.f32 %v3182, %v3291
    %v3308 = vmax.f32 %v3184, %v3292
    %v3309 = vmax.f32 %v3271, %v3293
    %v3310 = vmax.f32 %v3273, %v3294
    %v3311 = vmax.f32 %v3188, %v3295
    %v3312 = vmax.f32 %v3190, %v3296
    %v3313 = vmax.f32 %v3277, %v3297
    %v3314 = vmax.f32 %v3279, %v3298
    %v3315 = vmax.f32 %v3194, %v3299
    %v3316 = vmax.f32 %v3196, %v3300
    %v3317 = vmax.f32 %v3283, %v3301
    %v3318 = vmax.f32 %v3285, %v3302
    %v3319 = vld [vmem:[%s2 + $0x40] sm:$0xff]
    %v3320 = vld [vmem:[%s3 + $0x10] sm:$0xff]
    %3322 = vset.pattern.permute.xlu0 2
    %3323 = vperm.xlu0 %3322, %v3320
    %v3324 = vpop.permute.xlu0 %3323
    %v3327 = vsel %vm336, %v3319, 0
    %3329 = vmatprep.subr.mxu0 0.0
    %3330 = vmatpush1.msra.mxu0 0.0
    %3331 = vmatprep.subr.mxu0 0.0
    %3332 = vmatpush1.msra.mxu0 0.0
    %3333 = vmatprep.subr.mxu0 0.0
    %3334 = vmatpush1.msra.mxu0 0.0
    %3335 = vmatprep.subr.mxu0 0.0
    %3336 = vmatpush1.msra.mxu0 0.0
    %3337 = vmatprep.subr.mxu0 0.0
    %3338 = vmatpush1.msra.mxu0 0.0
    %3339 = vmatprep.subr.mxu0 0.0
    %3340 = vmatpush1.msra.mxu0 0.0
    %3341 = vmatprep.subr.mxu0 0.0
    %3342 = vmatpush1.msra.mxu0 0.0
    %3343 = vmatprep.subr.mxu0 0.0
    %3344 = vmatpush1.msra.mxu0 0.0
    %3345 = vmatprep.subr.mxu0 0.0
    %3346 = vmatpush1.msra.mxu0 0.0
    %3347 = vmatprep.subr.mxu0 0.0
    %3348 = vmatpush1.msra.mxu0 0.0
    %3349 = vmatprep.subr.mxu0 0.0
    %3350 = vmatpush1.msra.mxu0 0.0
    %3351 = vmatprep.subr.mxu0 0.0
    %3352 = vmatpush1.msra.mxu0 0.0
    %3353 = vmatprep.subr.mxu0 %v3316
    %3354 = vmatpush1.msra.mxu0 %v3315
    %3355 = vmatprep.subr.mxu0 %v3312
    %3356 = vmatpush1.msra.mxu0 %v3311
    %3357 = vmatprep.subr.mxu0 %v3308
    %3358 = vmatpush1.msra.mxu0 %v3307
    %3359 = vmatprep.subr.mxu0 %v3304
    %3360 = vmatpush1.msra.mxu0 %v3303
    %3361 = vmatprep.subr.mxu0 0.0
    %3362 = vmatpush2.msra.mxu0 0.0
    %3363 = vmatprep.subr.mxu0 0.0
    %3364 = vmatpush2.msra.mxu0 0.0
    %3365 = vmatprep.subr.mxu0 0.0
    %3366 = vmatpush2.msra.mxu0 0.0
    %3367 = vmatprep.subr.mxu0 0.0
    %3368 = vmatpush2.msra.mxu0 0.0
    %3369 = vmatprep.subr.mxu0 0.0
    %3370 = vmatpush2.msra.mxu0 0.0
    %3371 = vmatprep.subr.mxu0 0.0
    %3372 = vmatpush2.msra.mxu0 0.0
    %3373 = vmatprep.subr.mxu0 0.0
    %3374 = vmatpush2.msra.mxu0 0.0
    %3375 = vmatprep.subr.mxu0 0.0
    %3376 = vmatpush2.msra.mxu0 0.0
    %3377 = vmatprep.subr.mxu0 0.0
    %3378 = vmatpush2.msra.mxu0 0.0
    %3379 = vmatprep.subr.mxu0 0.0
    %3380 = vmatpush2.msra.mxu0 0.0
    %3381 = vmatprep.subr.mxu0 0.0
    %3382 = vmatpush2.msra.mxu0 0.0
    %3383 = vmatprep.subr.mxu0 0.0
    %3384 = vmatpush2.msra.mxu0 0.0
    %3385 = vmatprep.subr.mxu0 0.0
    %3386 = vmatpush2.msra.mxu0 0.0
    %3387 = vmatprep.subr.mxu0 0.0
    %3388 = vmatpush2.msra.mxu0 0.0
    %3389 = vmatprep.subr.mxu0 0.0
    %3390 = vmatpush2.msra.mxu0 0.0
    %3391 = vmatprep.subr.mxu0 0.0
    %3392 = vmatpush2.msra.mxu0 0.0
    %3393 = vmatprep.mubr.f32.mxu0 0.0
    %3394 = vmatmul.mubr.f32.gmra.mxu0 %v3327
    %v3395 = vpop.f32.mrf.mxu0
    %v3396 = vadd.f32 %v3324, %v3395
    %v3397 = vpop.f32.mrf.mxu0
    %v3398 = vadd.f32 %v3324, %v3397
    %3399 = vdwg.mxu0
    %3400 = vmatprep.subr.mxu0 0.0
    %3401 = vmatpush1.msra.mxu0 0.0
    %3402 = vmatprep.subr.mxu0 0.0
    %3403 = vmatpush1.msra.mxu0 0.0
    %3404 = vmatprep.subr.mxu0 0.0
    %3405 = vmatpush1.msra.mxu0 0.0
    %3406 = vmatprep.subr.mxu0 0.0
    %3407 = vmatpush1.msra.mxu0 0.0
    %3408 = vmatprep.subr.mxu0 0.0
    %3409 = vmatpush1.msra.mxu0 0.0
    %3410 = vmatprep.subr.mxu0 0.0
    %3411 = vmatpush1.msra.mxu0 0.0
    %3412 = vmatprep.subr.mxu0 0.0
    %3413 = vmatpush1.msra.mxu0 0.0
    %3414 = vmatprep.subr.mxu0 0.0
    %3415 = vmatpush1.msra.mxu0 0.0
    %3416 = vmatprep.subr.mxu0 0.0
    %3417 = vmatpush1.msra.mxu0 0.0
    %3418 = vmatprep.subr.mxu0 0.0
    %3419 = vmatpush1.msra.mxu0 0.0
    %3420 = vmatprep.subr.mxu0 0.0
    %3421 = vmatpush1.msra.mxu0 0.0
    %3422 = vmatprep.subr.mxu0 0.0
    %3423 = vmatpush1.msra.mxu0 0.0
    %3424 = vmatprep.subr.mxu0 %v3318
    %3425 = vmatpush1.msra.mxu0 %v3317
    %3426 = vmatprep.subr.mxu0 %v3314
    %3427 = vmatpush1.msra.mxu0 %v3313
    %3428 = vmatprep.subr.mxu0 %v3310
    %3429 = vmatpush1.msra.mxu0 %v3309
    %3430 = vmatprep.subr.mxu0 %v3306
    %3431 = vmatpush1.msra.mxu0 %v3305
    %3432 = vmatprep.subr.mxu0 0.0
    %3433 = vmatpush2.msra.mxu0 0.0
    %3434 = vmatprep.subr.mxu0 0.0
    %3435 = vmatpush2.msra.mxu0 0.0
    %3436 = vmatprep.subr.mxu0 0.0
    %3437 = vmatpush2.msra.mxu0 0.0
    %3438 = vmatprep.subr.mxu0 0.0
    %3439 = vmatpush2.msra.mxu0 0.0
    %3440 = vmatprep.subr.mxu0 0.0
    %3441 = vmatpush2.msra.mxu0 0.0
    %3442 = vmatprep.subr.mxu0 0.0
    %3443 = vmatpush2.msra.mxu0 0.0
    %3444 = vmatprep.subr.mxu0 0.0
    %3445 = vmatpush2.msra.mxu0 0.0
    %3446 = vmatprep.subr.mxu0 0.0
    %3447 = vmatpush2.msra.mxu0 0.0
    %3448 = vmatprep.subr.mxu0 0.0
    %3449 = vmatpush2.msra.mxu0 0.0
    %3450 = vmatprep.subr.mxu0 0.0
    %3451 = vmatpush2.msra.mxu0 0.0
    %3452 = vmatprep.subr.mxu0 0.0
    %3453 = vmatpush2.msra.mxu0 0.0
    %3454 = vmatprep.subr.mxu0 0.0
    %3455 = vmatpush2.msra.mxu0 0.0
    %3456 = vmatprep.subr.mxu0 0.0
    %3457 = vmatpush2.msra.mxu0 0.0
    %3458 = vmatprep.subr.mxu0 0.0
    %3459 = vmatpush2.msra.mxu0 0.0
    %3460 = vmatprep.subr.mxu0 0.0
    %3461 = vmatpush2.msra.mxu0 0.0
    %3462 = vmatprep.subr.mxu0 0.0
    %3463 = vmatpush2.msra.mxu0 0.0
    %3464 = vmatprep.mubr.f32.mxu0 0.0
    %3465 = vmatmul.mubr.f32.gmra.mxu0 %v3327
    %v3466 = vpop.f32.mrf.mxu0
    %v3467 = vadd.f32 %v3324, %v3466
    %v3468 = vpop.f32.mrf.mxu0
    %v3469 = vadd.f32 %v3324, %v3468
    %3470 = vdwg.mxu0
    %v3471 = vadd.f32 %v3396, %v3398
    %3472 = vadd.xlane.f32.xlu0 %v3471
    %v3473 = vpop.xlane.xlu0 %3472
    %v3474 = vmul.f32 %v3396, %v3396
    %v3475 = vmul.f32 %v3398, %v3398
    %v3476 = vadd.f32 %v3474, %v3475
    %3477 = vadd.xlane.f32.xlu0 %v3476
    %v3478 = vpop.xlane.xlu0 %3477
    %v3479 = vmul.f32 %v3473, 0.00390625
    %v3480 = vmul.f32 %v3478, 0.00390625
    %v3481 = vmul.f32 %v3479, %v3479
    %v3482 = vsub.f32 %v3480, %v3481
    %v3483 = vsub.f32 %v3396, %v3479
    %v3484 = vsub.f32 %v3398, %v3479
    %v3485 = vadd.f32 %v3482, 1e-05
    %v3486 = vrsqrt.pop %v3485
    %v3487 = vmul.f32 %v3483, %v3486
    %v3488 = vmul.f32 %v3484, %v3486
    %v3489 = vmul.f32 %v3487, %v1031
    %v3490 = vmul.f32 %v3488, %v1035
    %v3491 = vadd.f32 %v3489, %v1044
    %v3492 = vadd.f32 %v3490, %v1048
    %v3493 = vadd.f32 %v3467, %v3469
    %3494 = vadd.xlane.f32.xlu0 %v3493
    %v3495 = vpop.xlane.xlu0 %3494
    %v3496 = vmul.f32 %v3467, %v3467
    %v3497 = vmul.f32 %v3469, %v3469
    %v3498 = vadd.f32 %v3496, %v3497
    %3499 = vadd.xlane.f32.xlu0 %v3498
    %v3500 = vpop.xlane.xlu0 %3499
    %v3501 = vmul.f32 %v3495, 0.00390625
    %v3502 = vmul.f32 %v3500, 0.00390625
    %v3503 = vmul.f32 %v3501, %v3501
    %v3504 = vsub.f32 %v3502, %v3503
    %v3505 = vsub.f32 %v3467, %v3501
    %v3506 = vsub.f32 %v3469, %v3501
    %v3507 = vadd.f32 %v3504, 1e-05
    %v3508 = vrsqrt.pop %v3507
    %v3509 = vmul.f32 %v3505, %v3508
    %v3510 = vmul.f32 %v3506, %v3508
    %v3511 = vmul.f32 %v3509, %v1031
    %v3512 = vmul.f32 %v3510, %v1035
    %v3513 = vadd.f32 %v3511, %v1044
    %v3514 = vadd.f32 %v3512, %v1048
    %v3515 = vmul.f32 %v3491, 0.01
    %v3516 = vmul.f32 %v3492, 0.01
    %v3517 = vmul.f32 %v3513, 0.01
    %v3518 = vmul.f32 %v3514, 0.01
    %v3519 = vmax.f32 %v3491, %v3515
    %v3520 = vmax.f32 %v3492, %v3516
    %v3521 = vmax.f32 %v3513, %v3517
    %v3522 = vmax.f32 %v3514, %v3518
    %s3523 = scalar_lea.vmem %s4, 32
    %3524 = vst [vmem:[%s3523] sm:$0xff] %v3519
    %3525 = vst [vmem:[%s3523 + $0x8] sm:$0xff] %v3520
    %s3526 = scalar_lea.vmem %s4, 80
    %3527 = vst [vmem:[%s3526] sm:$0xff] %v3521
    %3528 = vst [vmem:[%s3526 + $0x8] sm:$0xff] %v3522
    // Predicated region
    $region22: #{network_forward.1} parent=1 // pred_check
      _
    $region23: #{network_forward.1} parent=1 // pred_check_branch
      %3530 = sbr.rel (0) target = $region25
    $region24: #{network_forward.1} parent=1 // pred_region
      _
    $region25: #{network_forward.1} parent=1 // pred_fallthru
      _
    // Predicated region
    $region26: #{network_forward.1} parent=1 // pred_check
      _
    $region27: #{network_forward.1} parent=1 // pred_check_branch
      %3532 = sbr.rel (0) target = $region29
    $region28: #{network_forward.1} parent=1 // pred_region
      _
    $region29: #{network_forward.1} parent=1 // pred_fallthru
      _
    %3533 = vsyncpa [#allocation3], 1

</llo_original>
